<compile_context>
chip_gen: v7x
topology: tpu7x:2x2x1
jax: 0.10.0
libtpu: 0.0.40
codegen_flags: <defaults>
</compile_context>

<pallas_src>
import functools

import jax
import jax.numpy as jnp
import numpy as np
from jax.experimental import pallas as pl
from jax.experimental.pallas import tpu as pltpu


def _layer_norm(h, gamma, beta, eps=1e-5):
    mu = jnp.mean(h, axis=-1, keepdims=True)
    c = h - mu
    var = jnp.mean(c * c, axis=-1, keepdims=True)
    return c * jax.lax.rsqrt(var + eps) * gamma + beta


# ----------------------------------------------------------------------------
# Kernel: one full encoder layer for a single batch element.
# ----------------------------------------------------------------------------
def _context_kernel(
    src_ref,                     # (1, S, D)  f32
    wqkv_ref, bqkv_ref,          # (D, 3D) bf16, (1, 3D) f32
    wo_ref, bo_ref,              # (D, D)  bf16, (1, D)  f32
    w1_ref, b1_ref,              # (D, F)  bf16, (1, F)  f32
    w2_ref, b2_ref,              # (F, D)  bf16, (1, D)  f32
    g1_ref, be1_ref,             # (1, D) f32
    g2_ref, be2_ref,             # (1, D) f32
    out_ref,                     # (1, S, D)
    *,
    nhead: int,
):
    x = src_ref[0]                                    # (S, D) f32
    S, D = x.shape
    Dh = D // nhead
    scale = 1.0 / float(np.sqrt(Dh))

    # ---- fused QKV projection (bf16 MXU, f32 accumulate) ---------------------
    qkv = jnp.dot(x.astype(jnp.bfloat16), wqkv_ref[...],
                  preferred_element_type=jnp.float32) + bqkv_ref[0]   # (S, 3D)
    q = (qkv[:, 0:D] * scale).astype(jnp.bfloat16)
    k = qkv[:, D:2 * D].astype(jnp.bfloat16)
    v = qkv[:, 2 * D:3 * D].astype(jnp.bfloat16)

    # ---- per-head attention: one (S, S) tile live at a time, no transposes ---
    attn = None
    for h in range(nhead):                            # nhead is small & static
        lo, hi = h * Dh, (h + 1) * Dh
        qh = q[:, lo:hi]
        kh = k[:, lo:hi]
        vh = v[:, lo:hi]
        s = jax.lax.dot_general(qh, kh, (((1,), (1,)), ((), ())),
                                preferred_element_type=jnp.float32)   # (S, S)
        s = s - jnp.max(s, axis=-1, keepdims=True)
        p = jnp.exp(s)
        p = p * pl.reciprocal(jnp.sum(p, axis=-1, keepdims=True), approx=True)
        ctx_h = jnp.dot(p.astype(jnp.bfloat16), vh,
                        preferred_element_type=jnp.float32)           # (S, Dh)
        part = jnp.dot(ctx_h.astype(jnp.bfloat16), wo_ref[lo:hi, :],
                       preferred_element_type=jnp.float32)            # (S, D)
        attn = part if attn is None else attn + part
    attn = attn + bo_ref[0]

    # ---- residual + LayerNorm1 (f32) -----------------------------------------
    h1 = _layer_norm(x + attn, g1_ref[0], be1_ref[0])

    # ---- feed-forward (bf16 MXU) ----------------------------------------------
    f = jnp.dot(h1.astype(jnp.bfloat16), w1_ref[...],
                preferred_element_type=jnp.float32) + b1_ref[0]
    f = jnp.maximum(f, 0.0)                                           # ReLU
    f = jnp.dot(f.astype(jnp.bfloat16), w2_ref[...],
                preferred_element_type=jnp.float32) + b2_ref[0]

    # ---- residual + LayerNorm2 (f32) ------------------------------------------
    out = _layer_norm(h1 + f, g2_ref[0], be2_ref[0])
    out_ref[0] = out.astype(out_ref.dtype)


# ----------------------------------------------------------------------------
# Wrapper.
# ----------------------------------------------------------------------------
def _vmem_budget_bytes(S, D, F):
    f32, bf16 = 4, 2
    io = 2 * 2 * S * D * f32                                # src + out, 2 buffers each
    weights = (3 * D * D + D * D + D * F + F * D) * bf16    # bf16 weight tiles
    biases = (3 * D + D + F + D + 4 * D) * f32
    scratch = (S * 3 * D + 6 * S * D + S * F + 2 * S * S) * f32
    total = io + 2 * weights + biases + 2 * scratch         # generous headroom
    return int(min(100 * 1024 * 1024, max(32 * 1024 * 1024, 2 * total)))


def _build_context_fn(S, B, D, F, nhead, out_dtype, *, single_buffer_weights):
    extra = {}
    if single_buffer_weights:
        # Grid-invariant weights do not need the default 2-deep pipeline; halving
        # their VMEM footprint matters most on v7x (64 MiB physical VMEM).
        extra["pipeline_mode"] = pl.Buffered(1)

    def wspec(shape):
        return pl.BlockSpec(shape, lambda b: (0, 0), **extra)

    in_specs = [
        pl.BlockSpec((1, S, D), lambda b: (b, 0, 0)),       # src
        wspec((D, 3 * D)), wspec((1, 3 * D)),               # wqkv, bqkv
        wspec((D, D)), wspec((1, D)),                       # wo, bo
        wspec((D, F)), wspec((1, F)),                       # w1, b1
        wspec((F, D)), wspec((1, D)),                       # w2, b2
        wspec((1, D)), wspec((1, D)),                       # gamma1, beta1
        wspec((1, D)), wspec((1, D)),                       # gamma2, beta2
    ]
    return pl.pallas_call(
        functools.partial(_context_kernel, nhead=nhead),
        out_shape=jax.ShapeDtypeStruct((B, S, D), out_dtype),
        grid_spec=pltpu.PrefetchScalarGridSpec(
            num_scalar_prefetch=0,
            grid=(B,),
            in_specs=in_specs,
            out_specs=pl.BlockSpec((1, S, D), lambda b: (b, 0, 0)),
        ),
        compiler_params=pltpu.CompilerParams(
            dimension_semantics=("parallel",),              # megacore-sharded batch
            vmem_limit_bytes=_vmem_budget_bytes(S, D, F),
        ),
    )


def context_module_forward(src_sbd, params, *, nhead):
    """src_sbd: (S, B, D) float32 (PyTorch nn.MultiheadAttention convention)."""
    S, B, D = src_sbd.shape
    F = params["w1"].shape[1]

    # (S,B,D) -> (B,S,D); accepted extra HBM pass so per-step slabs stay lane-dense.
    src_bsd = jnp.transpose(src_sbd, (1, 0, 2))

    bf = jnp.bfloat16
    wqkv = jnp.concatenate([params["wq"], params["wk"], params["wv"]], axis=1)
    bqkv = jnp.concatenate([params["bq"], params["bk"], params["bv"]], axis=1)
    args = (
        src_bsd,
        wqkv.astype(bf), bqkv,
        params["wo"].astype(bf), params["bo"],
        params["w1"].astype(bf), params["b1"],
        params["w2"].astype(bf), params["b2"],
        params["gamma1"], params["beta1"],
        params["gamma2"], params["beta2"],
    )

    try:
        fn = _build_context_fn(S, B, D, F, nhead, src_sbd.dtype,
                               single_buffer_weights=True)
        out_bsd = jax.block_until_ready(fn(*args))
    except Exception:
        # Fallback if pl.Buffered(1) is not supported by the installed JAX.
        fn = _build_context_fn(S, B, D, F, nhead, src_sbd.dtype,
                               single_buffer_weights=False)
        out_bsd = fn(*args)

    return jnp.transpose(out_bsd, (1, 0, 2))                # back to (S, B, D)


# ----------------------------------------------------------------------------
# Pure-JAX reference mirroring the kernel's bf16 MXU precision.
# ----------------------------------------------------------------------------
def context_module_ref(src_sbd, params, *, nhead):
    bf = jnp.bfloat16

    def mm(a, w):
        return jnp.dot(a.astype(bf), w.astype(bf),
                       preferred_element_type=jnp.float32)

    def ln(h, g, b):
        mu = jnp.mean(h, axis=-1, keepdims=True)
        var = jnp.mean((h - mu) ** 2, axis=-1, keepdims=True)
        return (h - mu) / jnp.sqrt(var + 1e-5) * g[0] + b[0]

    S, B, D = src_sbd.shape
    Dh = D // nhead
    x = jnp.transpose(src_sbd, (1, 0, 2))                   # (B, S, D)

    wqkv = jnp.concatenate([params["wq"], params["wk"], params["wv"]], axis=1)
    bqkv = jnp.concatenate([params["bq"], params["bk"], params["bv"]], axis=1)
    qkv = mm(x, wqkv) + bqkv[0]                             # (B, S, 3D)
    q, k, v = qkv[..., :D], qkv[..., D:2 * D], qkv[..., 2 * D:]

    qh = (q / np.sqrt(Dh)).reshape(B, S, nhead, Dh).transpose(0, 2, 1, 3)
    kh = k.reshape(B, S, nhead, Dh).transpose(0, 2, 1, 3)
    vh = v.reshape(B, S, nhead, Dh).transpose(0, 2, 1, 3)
    scores = jnp.einsum("bhqd,bhkd->bhqk", qh.astype(bf), kh.astype(bf),
                        preferred_element_type=jnp.float32)
    p = jax.nn.softmax(scores, axis=-1)
    ctx = jnp.einsum("bhqk,bhkd->bhqd", p.astype(bf), vh.astype(bf),
                     preferred_element_type=jnp.float32)
    ctx = ctx.transpose(0, 2, 1, 3).reshape(B, S, D)
    attn = mm(ctx, params["wo"]) + params["bo"][0]

    h = ln(x + attn, params["gamma1"], params["beta1"])
    f = jnp.maximum(mm(h, params["w1"]) + params["b1"][0], 0.0)
    f = mm(f, params["w2"]) + params["b2"][0]
    out = ln(h + f, params["gamma2"], params["beta2"])
    return jnp.transpose(out, (1, 0, 2))


# ----------------------------------------------------------------------------
def make_params(key, d_model, nhead, dim_feedforward):
    ks = jax.random.split(key, 8)
    s_attn = 1.0 / np.sqrt(d_model)
    s_ff = 1.0 / np.sqrt(dim_feedforward)
    # Weights stored as (in_features, out_features), i.e. pre-transposed
    # relative to PyTorch's nn.Linear / in_proj (out, in) storage.
    return {
        "wq": jax.random.normal(ks[0], (d_model, d_model), jnp.float32) * s_attn,
        "bq": jnp.zeros((1, d_model), jnp.float32),
        "wk": jax.random.normal(ks[1], (d_model, d_model), jnp.float32) * s_attn,
        "bk": jnp.zeros((1, d_model), jnp.float32),
        "wv": jax.random.normal(ks[2], (d_model, d_model), jnp.float32) * s_attn,
        "bv": jnp.zeros((1, d_model), jnp.float32),
        "wo": jax.random.normal(ks[3], (d_model, d_model), jnp.float32) * s_attn,
        "bo": jax.random.normal(ks[4], (1, d_model), jnp.float32) * 0.01,
        "w1": jax.random.normal(ks[5], (d_model, dim_feedforward), jnp.float32) * s_attn,
        "b1": jnp.zeros((1, dim_feedforward), jnp.float32),
        "w2": jax.random.normal(ks[6], (dim_feedforward, d_model), jnp.float32) * s_ff,
        "b2": jnp.zeros((1, d_model), jnp.float32),
        "gamma1": jnp.ones((1, d_model), jnp.float32),
        "beta1": jnp.zeros((1, d_model), jnp.float32),
        "gamma2": jnp.ones((1, d_model), jnp.float32),
        "beta2": jnp.zeros((1, d_model), jnp.float32),
    }


if __name__ == "__main__":
    # seq, batch, d_model, nhead, dim_feedforward — small but lane-dense (D, F
    # multiples of 128) so all stores are full-lane.
    S, B, D, H, FF = 16, 2, 128, 4, 256

    key = jax.random.PRNGKey(0)
    k_src, k_par = jax.random.split(key)
    src = jax.random.normal(k_src, (S, B, D), jnp.float32)   # (seq, batch, d_model)
    params = make_params(k_par, D, H, FF)

    out = context_module_forward(src, params, nhead=H)
    out = jax.block_until_ready(out)

    ref = context_module_ref(src, params, nhead=H)
    np.testing.assert_allclose(np.asarray(out), np.asarray(ref),
                               rtol=1e-2, atol=1e-2)

    # Dropout layers are identity here (eval-mode semantics).
    print("KERNEL_OK")
</pallas_src>

<mosaic_0001>
module attributes {stable_mosaic.version = 11 : i64} {
  func.func @_context_kernel(%arg0: i32, %arg1: memref<1x16x128xf32, #tpu.memory_space<vmem>>, %arg2: memref<128x384xbf16, #tpu.memory_space<vmem>>, %arg3: memref<1x384xf32, #tpu.memory_space<vmem>>, %arg4: memref<128x128xbf16, #tpu.memory_space<vmem>>, %arg5: memref<1x128xf32, #tpu.memory_space<vmem>>, %arg6: memref<128x256xbf16, #tpu.memory_space<vmem>>, %arg7: memref<1x256xf32, #tpu.memory_space<vmem>>, %arg8: memref<256x128xbf16, #tpu.memory_space<vmem>>, %arg9: memref<1x128xf32, #tpu.memory_space<vmem>>, %arg10: memref<1x128xf32, #tpu.memory_space<vmem>>, %arg11: memref<1x128xf32, #tpu.memory_space<vmem>>, %arg12: memref<1x128xf32, #tpu.memory_space<vmem>>, %arg13: memref<1x128xf32, #tpu.memory_space<vmem>>, %arg14: memref<1x16x128xf32, #tpu.memory_space<vmem>>) attributes {dimension_semantics = [#tpu.dimension_semantics<parallel>], iteration_bounds = array<i64: 2>, scalar_prefetch = 0 : i64, scratch_operands = 0 : i64, tpu.core_type = #tpu.core_type<tc>, window_params = [{transform_indices = @transform_0, window_bounds = array<i64: 1, 16, 128>}, {pipeline_mode = #tpu.pipeline_mode<synchronous>, transform_indices = @transform_1, window_bounds = array<i64: 128, 384>}, {pipeline_mode = #tpu.pipeline_mode<synchronous>, transform_indices = @transform_2, window_bounds = array<i64: 1, 384>}, {pipeline_mode = #tpu.pipeline_mode<synchronous>, transform_indices = @transform_3, window_bounds = array<i64: 128, 128>}, {pipeline_mode = #tpu.pipeline_mode<synchronous>, transform_indices = @transform_4, window_bounds = array<i64: 1, 128>}, {pipeline_mode = #tpu.pipeline_mode<synchronous>, transform_indices = @transform_5, window_bounds = array<i64: 128, 256>}, {pipeline_mode = #tpu.pipeline_mode<synchronous>, transform_indices = @transform_6, window_bounds = array<i64: 1, 256>}, {pipeline_mode = #tpu.pipeline_mode<synchronous>, transform_indices = @transform_7, window_bounds = array<i64: 256, 128>}, {pipeline_mode = #tpu.pipeline_mode<synchronous>, transform_indices = @transform_8, window_bounds = array<i64: 1, 128>}, {pipeline_mode = #tpu.pipeline_mode<synchronous>, transform_indices = @transform_9, window_bounds = array<i64: 1, 128>}, {pipeline_mode = #tpu.pipeline_mode<synchronous>, transform_indices = @transform_10, window_bounds = array<i64: 1, 128>}, {pipeline_mode = #tpu.pipeline_mode<synchronous>, transform_indices = @transform_11, window_bounds = array<i64: 1, 128>}, {pipeline_mode = #tpu.pipeline_mode<synchronous>, transform_indices = @transform_12, window_bounds = array<i64: 1, 128>}, {transform_indices = @transform_13, window_bounds = array<i64: 1, 16, 128>}]} {
    %c0 = arith.constant 0 : index
    %c0_0 = arith.constant 0 : index
    %c0_1 = arith.constant 0 : index
    %0 = vector.load %arg1[%c0, %c0_0, %c0_1] : memref<1x16x128xf32, #tpu.memory_space<vmem>>, vector<1x16x128xf32>
    %1 = vector.shape_cast %0 : vector<1x16x128xf32> to vector<16x128xf32>
    %2 = arith.truncf %1 : vector<16x128xf32> to vector<16x128xbf16>
    %c0_2 = arith.constant 0 : index
    %c0_3 = arith.constant 0 : index
    %3 = vector.load %arg2[%c0_2, %c0_3] : memref<128x384xbf16, #tpu.memory_space<vmem>>, vector<128x384xbf16>
    %cst = arith.constant dense<0.000000e+00> : vector<16x384xf32>
    %4 = tpu.matmul %2, %3, %cst {dimension_numbers = #tpu.dot_dimension_numbers<[1], [0], [0], [1], [0, 0, 1, 1], [], []>} : vector<16x128xbf16>, vector<128x384xbf16>, vector<16x384xf32> -> vector<16x384xf32>
    %c0_4 = arith.constant 0 : index
    %c0_5 = arith.constant 0 : index
    %5 = vector.load %arg3[%c0_4, %c0_5] : memref<1x384xf32, #tpu.memory_space<vmem>>, vector<1x384xf32>
    %6 = vector.shape_cast %5 : vector<1x384xf32> to vector<384xf32>
    %7 = vector.shape_cast %6 : vector<384xf32> to vector<1x384xf32>
    %8 = vector.broadcast %7 : vector<1x384xf32> to vector<16x384xf32>
    %9 = arith.addf %4, %8 : vector<16x384xf32>
    %10 = vector.extract_strided_slice %9 {offsets = [0, 0], sizes = [16, 128], strides = [1, 1]} : vector<16x384xf32> to vector<16x128xf32>
    %cst_6 = arith.constant 0.176776692 : f32
    %11 = vector.broadcast %cst_6 : f32 to vector<16x128xf32>
    %12 = arith.mulf %10, %11 : vector<16x128xf32>
    %13 = arith.truncf %12 : vector<16x128xf32> to vector<16x128xbf16>
    %14 = vector.extract_strided_slice %9 {offsets = [0, 128], sizes = [16, 128], strides = [1, 1]} : vector<16x384xf32> to vector<16x128xf32>
    %15 = arith.truncf %14 : vector<16x128xf32> to vector<16x128xbf16>
    %16 = vector.extract_strided_slice %9 {offsets = [0, 256], sizes = [16, 128], strides = [1, 1]} : vector<16x384xf32> to vector<16x128xf32>
    %17 = arith.truncf %16 : vector<16x128xf32> to vector<16x128xbf16>
    %18 = vector.extract_strided_slice %13 {offsets = [0, 0], sizes = [16, 32], strides = [1, 1]} : vector<16x128xbf16> to vector<16x32xbf16>
    %19 = vector.extract_strided_slice %15 {offsets = [0, 0], sizes = [16, 32], strides = [1, 1]} : vector<16x128xbf16> to vector<16x32xbf16>
    %20 = vector.extract_strided_slice %17 {offsets = [0, 0], sizes = [16, 32], strides = [1, 1]} : vector<16x128xbf16> to vector<16x32xbf16>
    %cst_7 = arith.constant dense<0.000000e+00> : vector<16x16xf32>
    %21 = tpu.matmul %18, %19, %cst_7 {dimension_numbers = #tpu.dot_dimension_numbers<[1], [1], [0], [0], [0, 0, 1, 0], [], []>} : vector<16x32xbf16>, vector<16x32xbf16>, vector<16x16xf32> -> vector<16x16xf32>
    %cst_8 = arith.constant dense<0xFF800000> : vector<16xf32>
    %22 = vector.multi_reduction <maximumf>, %21, %cst_8 [1] : vector<16x16xf32> to vector<16xf32>
    %23 = vector.shape_cast %22 : vector<16xf32> to vector<16x1xf32>
    %24 = vector.broadcast %23 : vector<16x1xf32> to vector<16x16xf32>
    %25 = arith.subf %21, %24 : vector<16x16xf32>
    %26 = math.exp %25 : vector<16x16xf32>
    %cst_9 = arith.constant dense<0.000000e+00> : vector<16xf32>
    %27 = vector.multi_reduction <add>, %26, %cst_9 [1] : vector<16x16xf32> to vector<16xf32>
    %28 = vector.shape_cast %27 : vector<16xf32> to vector<16x1xf32>
    %29 = tpu.reciprocal %28 {approx = true} : vector<16x1xf32> -> vector<16x1xf32>
    %30 = vector.broadcast %29 : vector<16x1xf32> to vector<16x16xf32>
    %31 = arith.mulf %26, %30 : vector<16x16xf32>
    %32 = arith.truncf %31 : vector<16x16xf32> to vector<16x16xbf16>
    %cst_10 = arith.constant dense<0.000000e+00> : vector<16x32xf32>
    %33 = tpu.matmul %32, %20, %cst_10 {dimension_numbers = #tpu.dot_dimension_numbers<[1], [0], [0], [1], [0, 0, 1, 1], [], []>} : vector<16x16xbf16>, vector<16x32xbf16>, vector<16x32xf32> -> vector<16x32xf32>
    %34 = arith.truncf %33 : vector<16x32xf32> to vector<16x32xbf16>
    %c0_11 = arith.constant 0 : index
    %c0_12 = arith.constant 0 : index
    %35 = vector.load %arg4[%c0_11, %c0_12] : memref<128x128xbf16, #tpu.memory_space<vmem>>, vector<32x128xbf16>
    %cst_13 = arith.constant dense<0.000000e+00> : vector<16x128xf32>
    %36 = tpu.matmul %34, %35, %cst_13 {dimension_numbers = #tpu.dot_dimension_numbers<[1], [0], [0], [1], [0, 0, 1, 1], [], []>} : vector<16x32xbf16>, vector<32x128xbf16>, vector<16x128xf32> -> vector<16x128xf32>
    %37 = vector.extract_strided_slice %13 {offsets = [0, 32], sizes = [16, 32], strides = [1, 1]} : vector<16x128xbf16> to vector<16x32xbf16>
    %38 = vector.extract_strided_slice %15 {offsets = [0, 32], sizes = [16, 32], strides = [1, 1]} : vector<16x128xbf16> to vector<16x32xbf16>
    %39 = vector.extract_strided_slice %17 {offsets = [0, 32], sizes = [16, 32], strides = [1, 1]} : vector<16x128xbf16> to vector<16x32xbf16>
    %cst_14 = arith.constant dense<0.000000e+00> : vector<16x16xf32>
    %40 = tpu.matmul %37, %38, %cst_14 {dimension_numbers = #tpu.dot_dimension_numbers<[1], [1], [0], [0], [0, 0, 1, 0], [], []>} : vector<16x32xbf16>, vector<16x32xbf16>, vector<16x16xf32> -> vector<16x16xf32>
    %cst_15 = arith.constant dense<0xFF800000> : vector<16xf32>
    %41 = vector.multi_reduction <maximumf>, %40, %cst_15 [1] : vector<16x16xf32> to vector<16xf32>
    %42 = vector.shape_cast %41 : vector<16xf32> to vector<16x1xf32>
    %43 = vector.broadcast %42 : vector<16x1xf32> to vector<16x16xf32>
    %44 = arith.subf %40, %43 : vector<16x16xf32>
    %45 = math.exp %44 : vector<16x16xf32>
    %cst_16 = arith.constant dense<0.000000e+00> : vector<16xf32>
    %46 = vector.multi_reduction <add>, %45, %cst_16 [1] : vector<16x16xf32> to vector<16xf32>
    %47 = vector.shape_cast %46 : vector<16xf32> to vector<16x1xf32>
    %48 = tpu.reciprocal %47 {approx = true} : vector<16x1xf32> -> vector<16x1xf32>
    %49 = vector.broadcast %48 : vector<16x1xf32> to vector<16x16xf32>
    %50 = arith.mulf %45, %49 : vector<16x16xf32>
    %51 = arith.truncf %50 : vector<16x16xf32> to vector<16x16xbf16>
    %cst_17 = arith.constant dense<0.000000e+00> : vector<16x32xf32>
    %52 = tpu.matmul %51, %39, %cst_17 {dimension_numbers = #tpu.dot_dimension_numbers<[1], [0], [0], [1], [0, 0, 1, 1], [], []>} : vector<16x16xbf16>, vector<16x32xbf16>, vector<16x32xf32> -> vector<16x32xf32>
    %53 = arith.truncf %52 : vector<16x32xf32> to vector<16x32xbf16>
    %c32 = arith.constant 32 : index
    %c0_18 = arith.constant 0 : index
    %54 = vector.load %arg4[%c32, %c0_18] : memref<128x128xbf16, #tpu.memory_space<vmem>>, vector<32x128xbf16>
    %cst_19 = arith.constant dense<0.000000e+00> : vector<16x128xf32>
    %55 = tpu.matmul %53, %54, %cst_19 {dimension_numbers = #tpu.dot_dimension_numbers<[1], [0], [0], [1], [0, 0, 1, 1], [], []>} : vector<16x32xbf16>, vector<32x128xbf16>, vector<16x128xf32> -> vector<16x128xf32>
    %56 = arith.addf %36, %55 : vector<16x128xf32>
    %57 = vector.extract_strided_slice %13 {offsets = [0, 64], sizes = [16, 32], strides = [1, 1]} : vector<16x128xbf16> to vector<16x32xbf16>
    %58 = vector.extract_strided_slice %15 {offsets = [0, 64], sizes = [16, 32], strides = [1, 1]} : vector<16x128xbf16> to vector<16x32xbf16>
    %59 = vector.extract_strided_slice %17 {offsets = [0, 64], sizes = [16, 32], strides = [1, 1]} : vector<16x128xbf16> to vector<16x32xbf16>
    %cst_20 = arith.constant dense<0.000000e+00> : vector<16x16xf32>
    %60 = tpu.matmul %57, %58, %cst_20 {dimension_numbers = #tpu.dot_dimension_numbers<[1], [1], [0], [0], [0, 0, 1, 0], [], []>} : vector<16x32xbf16>, vector<16x32xbf16>, vector<16x16xf32> -> vector<16x16xf32>
    %cst_21 = arith.constant dense<0xFF800000> : vector<16xf32>
    %61 = vector.multi_reduction <maximumf>, %60, %cst_21 [1] : vector<16x16xf32> to vector<16xf32>
    %62 = vector.shape_cast %61 : vector<16xf32> to vector<16x1xf32>
    %63 = vector.broadcast %62 : vector<16x1xf32> to vector<16x16xf32>
    %64 = arith.subf %60, %63 : vector<16x16xf32>
    %65 = math.exp %64 : vector<16x16xf32>
    %cst_22 = arith.constant dense<0.000000e+00> : vector<16xf32>
    %66 = vector.multi_reduction <add>, %65, %cst_22 [1] : vector<16x16xf32> to vector<16xf32>
    %67 = vector.shape_cast %66 : vector<16xf32> to vector<16x1xf32>
    %68 = tpu.reciprocal %67 {approx = true} : vector<16x1xf32> -> vector<16x1xf32>
    %69 = vector.broadcast %68 : vector<16x1xf32> to vector<16x16xf32>
    %70 = arith.mulf %65, %69 : vector<16x16xf32>
    %71 = arith.truncf %70 : vector<16x16xf32> to vector<16x16xbf16>
    %cst_23 = arith.constant dense<0.000000e+00> : vector<16x32xf32>
    %72 = tpu.matmul %71, %59, %cst_23 {dimension_numbers = #tpu.dot_dimension_numbers<[1], [0], [0], [1], [0, 0, 1, 1], [], []>} : vector<16x16xbf16>, vector<16x32xbf16>, vector<16x32xf32> -> vector<16x32xf32>
    %73 = arith.truncf %72 : vector<16x32xf32> to vector<16x32xbf16>
    %c64 = arith.constant 64 : index
    %c0_24 = arith.constant 0 : index
    %74 = vector.load %arg4[%c64, %c0_24] : memref<128x128xbf16, #tpu.memory_space<vmem>>, vector<32x128xbf16>
    %cst_25 = arith.constant dense<0.000000e+00> : vector<16x128xf32>
    %75 = tpu.matmul %73, %74, %cst_25 {dimension_numbers = #tpu.dot_dimension_numbers<[1], [0], [0], [1], [0, 0, 1, 1], [], []>} : vector<16x32xbf16>, vector<32x128xbf16>, vector<16x128xf32> -> vector<16x128xf32>
    %76 = arith.addf %56, %75 : vector<16x128xf32>
    %77 = vector.extract_strided_slice %13 {offsets = [0, 96], sizes = [16, 32], strides = [1, 1]} : vector<16x128xbf16> to vector<16x32xbf16>
    %78 = vector.extract_strided_slice %15 {offsets = [0, 96], sizes = [16, 32], strides = [1, 1]} : vector<16x128xbf16> to vector<16x32xbf16>
    %79 = vector.extract_strided_slice %17 {offsets = [0, 96], sizes = [16, 32], strides = [1, 1]} : vector<16x128xbf16> to vector<16x32xbf16>
    %cst_26 = arith.constant dense<0.000000e+00> : vector<16x16xf32>
    %80 = tpu.matmul %77, %78, %cst_26 {dimension_numbers = #tpu.dot_dimension_numbers<[1], [1], [0], [0], [0, 0, 1, 0], [], []>} : vector<16x32xbf16>, vector<16x32xbf16>, vector<16x16xf32> -> vector<16x16xf32>
    %cst_27 = arith.constant dense<0xFF800000> : vector<16xf32>
    %81 = vector.multi_reduction <maximumf>, %80, %cst_27 [1] : vector<16x16xf32> to vector<16xf32>
    %82 = vector.shape_cast %81 : vector<16xf32> to vector<16x1xf32>
    %83 = vector.broadcast %82 : vector<16x1xf32> to vector<16x16xf32>
    %84 = arith.subf %80, %83 : vector<16x16xf32>
    %85 = math.exp %84 : vector<16x16xf32>
    %cst_28 = arith.constant dense<0.000000e+00> : vector<16xf32>
    %86 = vector.multi_reduction <add>, %85, %cst_28 [1] : vector<16x16xf32> to vector<16xf32>
    %87 = vector.shape_cast %86 : vector<16xf32> to vector<16x1xf32>
    %88 = tpu.reciprocal %87 {approx = true} : vector<16x1xf32> -> vector<16x1xf32>
    %89 = vector.broadcast %88 : vector<16x1xf32> to vector<16x16xf32>
    %90 = arith.mulf %85, %89 : vector<16x16xf32>
    %91 = arith.truncf %90 : vector<16x16xf32> to vector<16x16xbf16>
    %cst_29 = arith.constant dense<0.000000e+00> : vector<16x32xf32>
    %92 = tpu.matmul %91, %79, %cst_29 {dimension_numbers = #tpu.dot_dimension_numbers<[1], [0], [0], [1], [0, 0, 1, 1], [], []>} : vector<16x16xbf16>, vector<16x32xbf16>, vector<16x32xf32> -> vector<16x32xf32>
    %93 = arith.truncf %92 : vector<16x32xf32> to vector<16x32xbf16>
    %c96 = arith.constant 96 : index
    %c0_30 = arith.constant 0 : index
    %94 = vector.load %arg4[%c96, %c0_30] : memref<128x128xbf16, #tpu.memory_space<vmem>>, vector<32x128xbf16>
    %cst_31 = arith.constant dense<0.000000e+00> : vector<16x128xf32>
    %95 = tpu.matmul %93, %94, %cst_31 {dimension_numbers = #tpu.dot_dimension_numbers<[1], [0], [0], [1], [0, 0, 1, 1], [], []>} : vector<16x32xbf16>, vector<32x128xbf16>, vector<16x128xf32> -> vector<16x128xf32>
    %96 = arith.addf %76, %95 : vector<16x128xf32>
    %c0_32 = arith.constant 0 : index
    %c0_33 = arith.constant 0 : index
    %97 = vector.load %arg5[%c0_32, %c0_33] : memref<1x128xf32, #tpu.memory_space<vmem>>, vector<1x128xf32>
    %98 = vector.shape_cast %97 : vector<1x128xf32> to vector<128xf32>
    %99 = vector.shape_cast %98 : vector<128xf32> to vector<1x128xf32>
    %100 = vector.broadcast %99 : vector<1x128xf32> to vector<16x128xf32>
    %101 = arith.addf %96, %100 : vector<16x128xf32>
    %102 = arith.addf %1, %101 : vector<16x128xf32>
    %c0_34 = arith.constant 0 : index
    %c0_35 = arith.constant 0 : index
    %103 = vector.load %arg10[%c0_34, %c0_35] : memref<1x128xf32, #tpu.memory_space<vmem>>, vector<1x128xf32>
    %104 = vector.shape_cast %103 : vector<1x128xf32> to vector<128xf32>
    %c0_36 = arith.constant 0 : index
    %c0_37 = arith.constant 0 : index
    %105 = vector.load %arg11[%c0_36, %c0_37] : memref<1x128xf32, #tpu.memory_space<vmem>>, vector<1x128xf32>
    %106 = vector.shape_cast %105 : vector<1x128xf32> to vector<128xf32>
    %cst_38 = arith.constant dense<0.000000e+00> : vector<16xf32>
    %107 = vector.multi_reduction <add>, %102, %cst_38 [1] : vector<16x128xf32> to vector<16xf32>
    %108 = vector.shape_cast %107 : vector<16xf32> to vector<16x1xf32>
    %cst_39 = arith.constant 1.280000e+02 : f32
    %109 = vector.broadcast %cst_39 : f32 to vector<16x1xf32>
    %110 = arith.divf %108, %109 : vector<16x1xf32>
    %111 = vector.broadcast %110 : vector<16x1xf32> to vector<16x128xf32>
    %112 = arith.subf %102, %111 : vector<16x128xf32>
    %113 = arith.mulf %112, %112 : vector<16x128xf32>
    %cst_40 = arith.constant dense<0.000000e+00> : vector<16xf32>
    %114 = vector.multi_reduction <add>, %113, %cst_40 [1] : vector<16x128xf32> to vector<16xf32>
    %115 = vector.shape_cast %114 : vector<16xf32> to vector<16x1xf32>
    %cst_41 = arith.constant 1.280000e+02 : f32
    %116 = vector.broadcast %cst_41 : f32 to vector<16x1xf32>
    %117 = arith.divf %115, %116 : vector<16x1xf32>
    %cst_42 = arith.constant 9.99999974E-6 : f32
    %118 = vector.broadcast %cst_42 : f32 to vector<16x1xf32>
    %119 = arith.addf %117, %118 : vector<16x1xf32>
    %120 = math.rsqrt %119 : vector<16x1xf32>
    %121 = vector.broadcast %120 : vector<16x1xf32> to vector<16x128xf32>
    %122 = arith.mulf %112, %121 : vector<16x128xf32>
    %123 = vector.shape_cast %104 : vector<128xf32> to vector<1x128xf32>
    %124 = vector.broadcast %123 : vector<1x128xf32> to vector<16x128xf32>
    %125 = arith.mulf %122, %124 : vector<16x128xf32>
    %126 = vector.shape_cast %106 : vector<128xf32> to vector<1x128xf32>
    %127 = vector.broadcast %126 : vector<1x128xf32> to vector<16x128xf32>
    %128 = arith.addf %125, %127 : vector<16x128xf32>
    %129 = arith.truncf %128 : vector<16x128xf32> to vector<16x128xbf16>
    %c0_43 = arith.constant 0 : index
    %c0_44 = arith.constant 0 : index
    %130 = vector.load %arg6[%c0_43, %c0_44] : memref<128x256xbf16, #tpu.memory_space<vmem>>, vector<128x256xbf16>
    %cst_45 = arith.constant dense<0.000000e+00> : vector<16x256xf32>
    %131 = tpu.matmul %129, %130, %cst_45 {dimension_numbers = #tpu.dot_dimension_numbers<[1], [0], [0], [1], [0, 0, 1, 1], [], []>} : vector<16x128xbf16>, vector<128x256xbf16>, vector<16x256xf32> -> vector<16x256xf32>
    %c0_46 = arith.constant 0 : index
    %c0_47 = arith.constant 0 : index
    %132 = vector.load %arg7[%c0_46, %c0_47] : memref<1x256xf32, #tpu.memory_space<vmem>>, vector<1x256xf32>
    %133 = vector.shape_cast %132 : vector<1x256xf32> to vector<256xf32>
    %134 = vector.shape_cast %133 : vector<256xf32> to vector<1x256xf32>
    %135 = vector.broadcast %134 : vector<1x256xf32> to vector<16x256xf32>
    %136 = arith.addf %131, %135 : vector<16x256xf32>
    %cst_48 = arith.constant 0.000000e+00 : f32
    %137 = vector.broadcast %cst_48 : f32 to vector<16x256xf32>
    %138 = arith.maximumf %136, %137 : vector<16x256xf32>
    %139 = arith.truncf %138 : vector<16x256xf32> to vector<16x256xbf16>
    %c0_49 = arith.constant 0 : index
    %c0_50 = arith.constant 0 : index
    %140 = vector.load %arg8[%c0_49, %c0_50] : memref<256x128xbf16, #tpu.memory_space<vmem>>, vector<256x128xbf16>
    %cst_51 = arith.constant dense<0.000000e+00> : vector<16x128xf32>
    %141 = tpu.matmul %139, %140, %cst_51 {dimension_numbers = #tpu.dot_dimension_numbers<[1], [0], [0], [1], [0, 0, 1, 1], [], []>} : vector<16x256xbf16>, vector<256x128xbf16>, vector<16x128xf32> -> vector<16x128xf32>
    %c0_52 = arith.constant 0 : index
    %c0_53 = arith.constant 0 : index
    %142 = vector.load %arg9[%c0_52, %c0_53] : memref<1x128xf32, #tpu.memory_space<vmem>>, vector<1x128xf32>
    %143 = vector.shape_cast %142 : vector<1x128xf32> to vector<128xf32>
    %144 = vector.shape_cast %143 : vector<128xf32> to vector<1x128xf32>
    %145 = vector.broadcast %144 : vector<1x128xf32> to vector<16x128xf32>
    %146 = arith.addf %141, %145 : vector<16x128xf32>
    %147 = arith.addf %128, %146 : vector<16x128xf32>
    %c0_54 = arith.constant 0 : index
    %c0_55 = arith.constant 0 : index
    %148 = vector.load %arg12[%c0_54, %c0_55] : memref<1x128xf32, #tpu.memory_space<vmem>>, vector<1x128xf32>
    %149 = vector.shape_cast %148 : vector<1x128xf32> to vector<128xf32>
    %c0_56 = arith.constant 0 : index
    %c0_57 = arith.constant 0 : index
    %150 = vector.load %arg13[%c0_56, %c0_57] : memref<1x128xf32, #tpu.memory_space<vmem>>, vector<1x128xf32>
    %151 = vector.shape_cast %150 : vector<1x128xf32> to vector<128xf32>
    %cst_58 = arith.constant dense<0.000000e+00> : vector<16xf32>
    %152 = vector.multi_reduction <add>, %147, %cst_58 [1] : vector<16x128xf32> to vector<16xf32>
    %153 = vector.shape_cast %152 : vector<16xf32> to vector<16x1xf32>
    %cst_59 = arith.constant 1.280000e+02 : f32
    %154 = vector.broadcast %cst_59 : f32 to vector<16x1xf32>
    %155 = arith.divf %153, %154 : vector<16x1xf32>
    %156 = vector.broadcast %155 : vector<16x1xf32> to vector<16x128xf32>
    %157 = arith.subf %147, %156 : vector<16x128xf32>
    %158 = arith.mulf %157, %157 : vector<16x128xf32>
    %cst_60 = arith.constant dense<0.000000e+00> : vector<16xf32>
    %159 = vector.multi_reduction <add>, %158, %cst_60 [1] : vector<16x128xf32> to vector<16xf32>
    %160 = vector.shape_cast %159 : vector<16xf32> to vector<16x1xf32>
    %cst_61 = arith.constant 1.280000e+02 : f32
    %161 = vector.broadcast %cst_61 : f32 to vector<16x1xf32>
    %162 = arith.divf %160, %161 : vector<16x1xf32>
    %cst_62 = arith.constant 9.99999974E-6 : f32
    %163 = vector.broadcast %cst_62 : f32 to vector<16x1xf32>
    %164 = arith.addf %162, %163 : vector<16x1xf32>
    %165 = math.rsqrt %164 : vector<16x1xf32>
    %166 = vector.broadcast %165 : vector<16x1xf32> to vector<16x128xf32>
    %167 = arith.mulf %157, %166 : vector<16x128xf32>
    %168 = vector.shape_cast %149 : vector<128xf32> to vector<1x128xf32>
    %169 = vector.broadcast %168 : vector<1x128xf32> to vector<16x128xf32>
    %170 = arith.mulf %167, %169 : vector<16x128xf32>
    %171 = vector.shape_cast %151 : vector<128xf32> to vector<1x128xf32>
    %172 = vector.broadcast %171 : vector<1x128xf32> to vector<16x128xf32>
    %173 = arith.addf %170, %172 : vector<16x128xf32>
    %c0_63 = arith.constant 0 : index
    %c0_64 = arith.constant 0 : index
    %c0_65 = arith.constant 0 : index
    %174 = vector.load %arg14[%c0_63, %c0_64, %c0_65] : memref<1x16x128xf32, #tpu.memory_space<vmem>>, vector<1x16x128xf32>
    %175 = vector.shape_cast %174 : vector<1x16x128xf32> to vector<16x128xf32>
    %176 = vector.shape_cast %173 : vector<16x128xf32> to vector<1x16x128xf32>
    tpu.vector_store %arg14[%c0_63, %c0_64, %c0_65], %176 {strides = array<i32>} : memref<1x16x128xf32, #tpu.memory_space<vmem>>, vector<1x16x128xf32>,
    return
  }
  func.func @transform_0(%arg0: i32) -> (i32, i32, i32) {
    %c0_i32 = arith.constant 0 : i32
    %c0_i32_0 = arith.constant 0 : i32
    %c0_i32_1 = arith.constant 0 : i32
    return %arg0, %c0_i32, %c0_i32_0 : i32, i32, i32
  }
  func.func @transform_1(%arg0: i32) -> (i32, i32) {
    %c0_i32 = arith.constant 0 : i32
    %c0_i32_0 = arith.constant 0 : i32
    %c0_i32_1 = arith.constant 0 : i32
    return %c0_i32, %c0_i32_0 : i32, i32
  }
  func.func @transform_2(%arg0: i32) -> (i32, i32) {
    %c0_i32 = arith.constant 0 : i32
    %c0_i32_0 = arith.constant 0 : i32
    %c0_i32_1 = arith.constant 0 : i32
    return %c0_i32, %c0_i32_0 : i32, i32
  }
  func.func @transform_3(%arg0: i32) -> (i32, i32) {
    %c0_i32 = arith.constant 0 : i32
    %c0_i32_0 = arith.constant 0 : i32
    %c0_i32_1 = arith.constant 0 : i32
    return %c0_i32, %c0_i32_0 : i32, i32
  }
  func.func @transform_4(%arg0: i32) -> (i32, i32) {
    %c0_i32 = arith.constant 0 : i32
    %c0_i32_0 = arith.constant 0 : i32
    %c0_i32_1 = arith.constant 0 : i32
    return %c0_i32, %c0_i32_0 : i32, i32
  }
  func.func @transform_5(%arg0: i32) -> (i32, i32) {
    %c0_i32 = arith.constant 0 : i32
    %c0_i32_0 = arith.constant 0 : i32
    %c0_i32_1 = arith.constant 0 : i32
    return %c0_i32, %c0_i32_0 : i32, i32
  }
  func.func @transform_6(%arg0: i32) -> (i32, i32) {
    %c0_i32 = arith.constant 0 : i32
    %c0_i32_0 = arith.constant 0 : i32
    %c0_i32_1 = arith.constant 0 : i32
    return %c0_i32, %c0_i32_0 : i32, i32
  }
  func.func @transform_7(%arg0: i32) -> (i32, i32) {
    %c0_i32 = arith.constant 0 : i32
    %c0_i32_0 = arith.constant 0 : i32
    %c0_i32_1 = arith.constant 0 : i32
    return %c0_i32, %c0_i32_0 : i32, i32
  }
  func.func @transform_8(%arg0: i32) -> (i32, i32) {
    %c0_i32 = arith.constant 0 : i32
    %c0_i32_0 = arith.constant 0 : i32
    %c0_i32_1 = arith.constant 0 : i32
    return %c0_i32, %c0_i32_0 : i32, i32
  }
  func.func @transform_9(%arg0: i32) -> (i32, i32) {
    %c0_i32 = arith.constant 0 : i32
    %c0_i32_0 = arith.constant 0 : i32
    %c0_i32_1 = arith.constant 0 : i32
    return %c0_i32, %c0_i32_0 : i32, i32
  }
  func.func @transform_10(%arg0: i32) -> (i32, i32) {
    %c0_i32 = arith.constant 0 : i32
    %c0_i32_0 = arith.constant 0 : i32
    %c0_i32_1 = arith.constant 0 : i32
    return %c0_i32, %c0_i32_0 : i32, i32
  }
  func.func @transform_11(%arg0: i32) -> (i32, i32) {
    %c0_i32 = arith.constant 0 : i32
    %c0_i32_0 = arith.constant 0 : i32
    %c0_i32_1 = arith.constant 0 : i32
    return %c0_i32, %c0_i32_0 : i32, i32
  }
  func.func @transform_12(%arg0: i32) -> (i32, i32) {
    %c0_i32 = arith.constant 0 : i32
    %c0_i32_0 = arith.constant 0 : i32
    %c0_i32_1 = arith.constant 0 : i32
    return %c0_i32, %c0_i32_0 : i32, i32
  }
  func.func @transform_13(%arg0: i32) -> (i32, i32, i32) {
    %c0_i32 = arith.constant 0 : i32
    %c0_i32_0 = arith.constant 0 : i32
    %c0_i32_1 = arith.constant 0 : i32
    return %arg0, %c0_i32, %c0_i32_0 : i32, i32, i32
  }
}

module attributes {stable_mosaic.version = 11 : i64} {
  func.func @_context_kernel(%arg0: i32, %arg1: memref<1x16x128xf32, #tpu.memory_space<vmem>>, %arg2: memref<128x384xbf16, #tpu.memory_space<vmem>>, %arg3: memref<1x384xf32, #tpu.memory_space<vmem>>, %arg4: memref<128x128xbf16, #tpu.memory_space<vmem>>, %arg5: memref<1x128xf32, #tpu.memory_space<vmem>>, %arg6: memref<128x256xbf16, #tpu.memory_space<vmem>>, %arg7: memref<1x256xf32, #tpu.memory_space<vmem>>, %arg8: memref<256x128xbf16, #tpu.memory_space<vmem>>, %arg9: memref<1x128xf32, #tpu.memory_space<vmem>>, %arg10: memref<1x128xf32, #tpu.memory_space<vmem>>, %arg11: memref<1x128xf32, #tpu.memory_space<vmem>>, %arg12: memref<1x128xf32, #tpu.memory_space<vmem>>, %arg13: memref<1x128xf32, #tpu.memory_space<vmem>>, %arg14: memref<1x16x128xf32, #tpu.memory_space<vmem>>) attributes {dimension_semantics = [#tpu.dimension_semantics<parallel>], iteration_bounds = array<i64: 2>, scalar_prefetch = 0 : i64, scratch_operands = 0 : i64, tpu.core_type = #tpu.core_type<tc>, window_params = [{transform_indices = @transform_0, window_bounds = array<i64: 1, 16, 128>}, {pipeline_mode = #tpu.pipeline_mode<synchronous>, transform_indices = @transform_1, window_bounds = array<i64: 128, 384>}, {pipeline_mode = #tpu.pipeline_mode<synchronous>, transform_indices = @transform_2, window_bounds = array<i64: 1, 384>}, {pipeline_mode = #tpu.pipeline_mode<synchronous>, transform_indices = @transform_3, window_bounds = array<i64: 128, 128>}, {pipeline_mode = #tpu.pipeline_mode<synchronous>, transform_indices = @transform_4, window_bounds = array<i64: 1, 128>}, {pipeline_mode = #tpu.pipeline_mode<synchronous>, transform_indices = @transform_5, window_bounds = array<i64: 128, 256>}, {pipeline_mode = #tpu.pipeline_mode<synchronous>, transform_indices = @transform_6, window_bounds = array<i64: 1, 256>}, {pipeline_mode = #tpu.pipeline_mode<synchronous>, transform_indices = @transform_7, window_bounds = array<i64: 256, 128>}, {pipeline_mode = #tpu.pipeline_mode<synchronous>, transform_indices = @transform_8, window_bounds = array<i64: 1, 128>}, {pipeline_mode = #tpu.pipeline_mode<synchronous>, transform_indices = @transform_9, window_bounds = array<i64: 1, 128>}, {pipeline_mode = #tpu.pipeline_mode<synchronous>, transform_indices = @transform_10, window_bounds = array<i64: 1, 128>}, {pipeline_mode = #tpu.pipeline_mode<synchronous>, transform_indices = @transform_11, window_bounds = array<i64: 1, 128>}, {pipeline_mode = #tpu.pipeline_mode<synchronous>, transform_indices = @transform_12, window_bounds = array<i64: 1, 128>}, {transform_indices = @transform_13, window_bounds = array<i64: 1, 16, 128>}]} {
    %c0 = arith.constant 0 : index
    %c0_0 = arith.constant 0 : index
    %c0_1 = arith.constant 0 : index
    %0 = vector.load %arg1[%c0, %c0_0, %c0_1] : memref<1x16x128xf32, #tpu.memory_space<vmem>>, vector<1x16x128xf32>
    %1 = vector.shape_cast %0 : vector<1x16x128xf32> to vector<16x128xf32>
    %2 = arith.truncf %1 : vector<16x128xf32> to vector<16x128xbf16>
    %c0_2 = arith.constant 0 : index
    %c0_3 = arith.constant 0 : index
    %3 = vector.load %arg2[%c0_2, %c0_3] : memref<128x384xbf16, #tpu.memory_space<vmem>>, vector<128x384xbf16>
    %cst = arith.constant dense<0.000000e+00> : vector<16x384xf32>
    %4 = tpu.matmul %2, %3, %cst {dimension_numbers = #tpu.dot_dimension_numbers<[1], [0], [0], [1], [0, 0, 1, 1], [], []>} : vector<16x128xbf16>, vector<128x384xbf16>, vector<16x384xf32> -> vector<16x384xf32>
    %c0_4 = arith.constant 0 : index
    %c0_5 = arith.constant 0 : index
    %5 = vector.load %arg3[%c0_4, %c0_5] : memref<1x384xf32, #tpu.memory_space<vmem>>, vector<1x384xf32>
    %6 = vector.shape_cast %5 : vector<1x384xf32> to vector<384xf32>
    %7 = vector.shape_cast %6 : vector<384xf32> to vector<1x384xf32>
    %8 = vector.broadcast %7 : vector<1x384xf32> to vector<16x384xf32>
    %9 = arith.addf %4, %8 : vector<16x384xf32>
    %10 = vector.extract_strided_slice %9 {offsets = [0, 0], sizes = [16, 128], strides = [1, 1]} : vector<16x384xf32> to vector<16x128xf32>
    %cst_6 = arith.constant 0.176776692 : f32
    %11 = vector.broadcast %cst_6 : f32 to vector<16x128xf32>
    %12 = arith.mulf %10, %11 : vector<16x128xf32>
    %13 = arith.truncf %12 : vector<16x128xf32> to vector<16x128xbf16>
    %14 = vector.extract_strided_slice %9 {offsets = [0, 128], sizes = [16, 128], strides = [1, 1]} : vector<16x384xf32> to vector<16x128xf32>
    %15 = arith.truncf %14 : vector<16x128xf32> to vector<16x128xbf16>
    %16 = vector.extract_strided_slice %9 {offsets = [0, 256], sizes = [16, 128], strides = [1, 1]} : vector<16x384xf32> to vector<16x128xf32>
    %17 = arith.truncf %16 : vector<16x128xf32> to vector<16x128xbf16>
    %18 = vector.extract_strided_slice %13 {offsets = [0, 0], sizes = [16, 32], strides = [1, 1]} : vector<16x128xbf16> to vector<16x32xbf16>
    %19 = vector.extract_strided_slice %15 {offsets = [0, 0], sizes = [16, 32], strides = [1, 1]} : vector<16x128xbf16> to vector<16x32xbf16>
    %20 = vector.extract_strided_slice %17 {offsets = [0, 0], sizes = [16, 32], strides = [1, 1]} : vector<16x128xbf16> to vector<16x32xbf16>
    %cst_7 = arith.constant dense<0.000000e+00> : vector<16x16xf32>
    %21 = tpu.matmul %18, %19, %cst_7 {dimension_numbers = #tpu.dot_dimension_numbers<[1], [1], [0], [0], [0, 0, 1, 0], [], []>} : vector<16x32xbf16>, vector<16x32xbf16>, vector<16x16xf32> -> vector<16x16xf32>
    %cst_8 = arith.constant dense<0xFF800000> : vector<16xf32>
    %22 = vector.multi_reduction <maximumf>, %21, %cst_8 [1] : vector<16x16xf32> to vector<16xf32>
    %23 = vector.shape_cast %22 : vector<16xf32> to vector<16x1xf32>
    %24 = vector.broadcast %23 : vector<16x1xf32> to vector<16x16xf32>
    %25 = arith.subf %21, %24 : vector<16x16xf32>
    %26 = math.exp %25 : vector<16x16xf32>
    %cst_9 = arith.constant dense<0.000000e+00> : vector<16xf32>
    %27 = vector.multi_reduction <add>, %26, %cst_9 [1] : vector<16x16xf32> to vector<16xf32>
    %28 = vector.shape_cast %27 : vector<16xf32> to vector<16x1xf32>
    %29 = tpu.reciprocal %28 {approx = true} : vector<16x1xf32> -> vector<16x1xf32>
    %30 = vector.broadcast %29 : vector<16x1xf32> to vector<16x16xf32>
    %31 = arith.mulf %26, %30 : vector<16x16xf32>
    %32 = arith.truncf %31 : vector<16x16xf32> to vector<16x16xbf16>
    %cst_10 = arith.constant dense<0.000000e+00> : vector<16x32xf32>
    %33 = tpu.matmul %32, %20, %cst_10 {dimension_numbers = #tpu.dot_dimension_numbers<[1], [0], [0], [1], [0, 0, 1, 1], [], []>} : vector<16x16xbf16>, vector<16x32xbf16>, vector<16x32xf32> -> vector<16x32xf32>
    %34 = arith.truncf %33 : vector<16x32xf32> to vector<16x32xbf16>
    %c0_11 = arith.constant 0 : index
    %c0_12 = arith.constant 0 : index
    %35 = vector.load %arg4[%c0_11, %c0_12] : memref<128x128xbf16, #tpu.memory_space<vmem>>, vector<32x128xbf16>
    %cst_13 = arith.constant dense<0.000000e+00> : vector<16x128xf32>
    %36 = tpu.matmul %34, %35, %cst_13 {dimension_numbers = #tpu.dot_dimension_numbers<[1], [0], [0], [1], [0, 0, 1, 1], [], []>} : vector<16x32xbf16>, vector<32x128xbf16>, vector<16x128xf32> -> vector<16x128xf32>
    %37 = vector.extract_strided_slice %13 {offsets = [0, 32], sizes = [16, 32], strides = [1, 1]} : vector<16x128xbf16> to vector<16x32xbf16>
    %38 = vector.extract_strided_slice %15 {offsets = [0, 32], sizes = [16, 32], strides = [1, 1]} : vector<16x128xbf16> to vector<16x32xbf16>
    %39 = vector.extract_strided_slice %17 {offsets = [0, 32], sizes = [16, 32], strides = [1, 1]} : vector<16x128xbf16> to vector<16x32xbf16>
    %cst_14 = arith.constant dense<0.000000e+00> : vector<16x16xf32>
    %40 = tpu.matmul %37, %38, %cst_14 {dimension_numbers = #tpu.dot_dimension_numbers<[1], [1], [0], [0], [0, 0, 1, 0], [], []>} : vector<16x32xbf16>, vector<16x32xbf16>, vector<16x16xf32> -> vector<16x16xf32>
    %cst_15 = arith.constant dense<0xFF800000> : vector<16xf32>
    %41 = vector.multi_reduction <maximumf>, %40, %cst_15 [1] : vector<16x16xf32> to vector<16xf32>
    %42 = vector.shape_cast %41 : vector<16xf32> to vector<16x1xf32>
    %43 = vector.broadcast %42 : vector<16x1xf32> to vector<16x16xf32>
    %44 = arith.subf %40, %43 : vector<16x16xf32>
    %45 = math.exp %44 : vector<16x16xf32>
    %cst_16 = arith.constant dense<0.000000e+00> : vector<16xf32>
    %46 = vector.multi_reduction <add>, %45, %cst_16 [1] : vector<16x16xf32> to vector<16xf32>
    %47 = vector.shape_cast %46 : vector<16xf32> to vector<16x1xf32>
    %48 = tpu.reciprocal %47 {approx = true} : vector<16x1xf32> -> vector<16x1xf32>
    %49 = vector.broadcast %48 : vector<16x1xf32> to vector<16x16xf32>
    %50 = arith.mulf %45, %49 : vector<16x16xf32>
    %51 = arith.truncf %50 : vector<16x16xf32> to vector<16x16xbf16>
    %cst_17 = arith.constant dense<0.000000e+00> : vector<16x32xf32>
    %52 = tpu.matmul %51, %39, %cst_17 {dimension_numbers = #tpu.dot_dimension_numbers<[1], [0], [0], [1], [0, 0, 1, 1], [], []>} : vector<16x16xbf16>, vector<16x32xbf16>, vector<16x32xf32> -> vector<16x32xf32>
    %53 = arith.truncf %52 : vector<16x32xf32> to vector<16x32xbf16>
    %c32 = arith.constant 32 : index
    %c0_18 = arith.constant 0 : index
    %54 = vector.load %arg4[%c32, %c0_18] : memref<128x128xbf16, #tpu.memory_space<vmem>>, vector<32x128xbf16>
    %cst_19 = arith.constant dense<0.000000e+00> : vector<16x128xf32>
    %55 = tpu.matmul %53, %54, %cst_19 {dimension_numbers = #tpu.dot_dimension_numbers<[1], [0], [0], [1], [0, 0, 1, 1], [], []>} : vector<16x32xbf16>, vector<32x128xbf16>, vector<16x128xf32> -> vector<16x128xf32>
    %56 = arith.addf %36, %55 : vector<16x128xf32>
    %57 = vector.extract_strided_slice %13 {offsets = [0, 64], sizes = [16, 32], strides = [1, 1]} : vector<16x128xbf16> to vector<16x32xbf16>
    %58 = vector.extract_strided_slice %15 {offsets = [0, 64], sizes = [16, 32], strides = [1, 1]} : vector<16x128xbf16> to vector<16x32xbf16>
    %59 = vector.extract_strided_slice %17 {offsets = [0, 64], sizes = [16, 32], strides = [1, 1]} : vector<16x128xbf16> to vector<16x32xbf16>
    %cst_20 = arith.constant dense<0.000000e+00> : vector<16x16xf32>
    %60 = tpu.matmul %57, %58, %cst_20 {dimension_numbers = #tpu.dot_dimension_numbers<[1], [1], [0], [0], [0, 0, 1, 0], [], []>} : vector<16x32xbf16>, vector<16x32xbf16>, vector<16x16xf32> -> vector<16x16xf32>
    %cst_21 = arith.constant dense<0xFF800000> : vector<16xf32>
    %61 = vector.multi_reduction <maximumf>, %60, %cst_21 [1] : vector<16x16xf32> to vector<16xf32>
    %62 = vector.shape_cast %61 : vector<16xf32> to vector<16x1xf32>
    %63 = vector.broadcast %62 : vector<16x1xf32> to vector<16x16xf32>
    %64 = arith.subf %60, %63 : vector<16x16xf32>
    %65 = math.exp %64 : vector<16x16xf32>
    %cst_22 = arith.constant dense<0.000000e+00> : vector<16xf32>
    %66 = vector.multi_reduction <add>, %65, %cst_22 [1] : vector<16x16xf32> to vector<16xf32>
    %67 = vector.shape_cast %66 : vector<16xf32> to vector<16x1xf32>
    %68 = tpu.reciprocal %67 {approx = true} : vector<16x1xf32> -> vector<16x1xf32>
    %69 = vector.broadcast %68 : vector<16x1xf32> to vector<16x16xf32>
    %70 = arith.mulf %65, %69 : vector<16x16xf32>
    %71 = arith.truncf %70 : vector<16x16xf32> to vector<16x16xbf16>
    %cst_23 = arith.constant dense<0.000000e+00> : vector<16x32xf32>
    %72 = tpu.matmul %71, %59, %cst_23 {dimension_numbers = #tpu.dot_dimension_numbers<[1], [0], [0], [1], [0, 0, 1, 1], [], []>} : vector<16x16xbf16>, vector<16x32xbf16>, vector<16x32xf32> -> vector<16x32xf32>
    %73 = arith.truncf %72 : vector<16x32xf32> to vector<16x32xbf16>
    %c64 = arith.constant 64 : index
    %c0_24 = arith.constant 0 : index
    %74 = vector.load %arg4[%c64, %c0_24] : memref<128x128xbf16, #tpu.memory_space<vmem>>, vector<32x128xbf16>
    %cst_25 = arith.constant dense<0.000000e+00> : vector<16x128xf32>
    %75 = tpu.matmul %73, %74, %cst_25 {dimension_numbers = #tpu.dot_dimension_numbers<[1], [0], [0], [1], [0, 0, 1, 1], [], []>} : vector<16x32xbf16>, vector<32x128xbf16>, vector<16x128xf32> -> vector<16x128xf32>
    %76 = arith.addf %56, %75 : vector<16x128xf32>
    %77 = vector.extract_strided_slice %13 {offsets = [0, 96], sizes = [16, 32], strides = [1, 1]} : vector<16x128xbf16> to vector<16x32xbf16>
    %78 = vector.extract_strided_slice %15 {offsets = [0, 96], sizes = [16, 32], strides = [1, 1]} : vector<16x128xbf16> to vector<16x32xbf16>
    %79 = vector.extract_strided_slice %17 {offsets = [0, 96], sizes = [16, 32], strides = [1, 1]} : vector<16x128xbf16> to vector<16x32xbf16>
    %cst_26 = arith.constant dense<0.000000e+00> : vector<16x16xf32>
    %80 = tpu.matmul %77, %78, %cst_26 {dimension_numbers = #tpu.dot_dimension_numbers<[1], [1], [0], [0], [0, 0, 1, 0], [], []>} : vector<16x32xbf16>, vector<16x32xbf16>, vector<16x16xf32> -> vector<16x16xf32>
    %cst_27 = arith.constant dense<0xFF800000> : vector<16xf32>
    %81 = vector.multi_reduction <maximumf>, %80, %cst_27 [1] : vector<16x16xf32> to vector<16xf32>
    %82 = vector.shape_cast %81 : vector<16xf32> to vector<16x1xf32>
    %83 = vector.broadcast %82 : vector<16x1xf32> to vector<16x16xf32>
    %84 = arith.subf %80, %83 : vector<16x16xf32>
    %85 = math.exp %84 : vector<16x16xf32>
    %cst_28 = arith.constant dense<0.000000e+00> : vector<16xf32>
    %86 = vector.multi_reduction <add>, %85, %cst_28 [1] : vector<16x16xf32> to vector<16xf32>
    %87 = vector.shape_cast %86 : vector<16xf32> to vector<16x1xf32>
    %88 = tpu.reciprocal %87 {approx = true} : vector<16x1xf32> -> vector<16x1xf32>
    %89 = vector.broadcast %88 : vector<16x1xf32> to vector<16x16xf32>
    %90 = arith.mulf %85, %89 : vector<16x16xf32>
    %91 = arith.truncf %90 : vector<16x16xf32> to vector<16x16xbf16>
    %cst_29 = arith.constant dense<0.000000e+00> : vector<16x32xf32>
    %92 = tpu.matmul %91, %79, %cst_29 {dimension_numbers = #tpu.dot_dimension_numbers<[1], [0], [0], [1], [0, 0, 1, 1], [], []>} : vector<16x16xbf16>, vector<16x32xbf16>, vector<16x32xf32> -> vector<16x32xf32>
    %93 = arith.truncf %92 : vector<16x32xf32> to vector<16x32xbf16>
    %c96 = arith.constant 96 : index
    %c0_30 = arith.constant 0 : index
    %94 = vector.load %arg4[%c96, %c0_30] : memref<128x128xbf16, #tpu.memory_space<vmem>>, vector<32x128xbf16>
    %cst_31 = arith.constant dense<0.000000e+00> : vector<16x128xf32>
    %95 = tpu.matmul %93, %94, %cst_31 {dimension_numbers = #tpu.dot_dimension_numbers<[1], [0], [0], [1], [0, 0, 1, 1], [], []>} : vector<16x32xbf16>, vector<32x128xbf16>, vector<16x128xf32> -> vector<16x128xf32>
    %96 = arith.addf %76, %95 : vector<16x128xf32>
    %c0_32 = arith.constant 0 : index
    %c0_33 = arith.constant 0 : index
    %97 = vector.load %arg5[%c0_32, %c0_33] : memref<1x128xf32, #tpu.memory_space<vmem>>, vector<1x128xf32>
    %98 = vector.shape_cast %97 : vector<1x128xf32> to vector<128xf32>
    %99 = vector.shape_cast %98 : vector<128xf32> to vector<1x128xf32>
    %100 = vector.broadcast %99 : vector<1x128xf32> to vector<16x128xf32>
    %101 = arith.addf %96, %100 : vector<16x128xf32>
    %102 = arith.addf %1, %101 : vector<16x128xf32>
    %c0_34 = arith.constant 0 : index
    %c0_35 = arith.constant 0 : index
    %103 = vector.load %arg10[%c0_34, %c0_35] : memref<1x128xf32, #tpu.memory_space<vmem>>, vector<1x128xf32>
    %104 = vector.shape_cast %103 : vector<1x128xf32> to vector<128xf32>
    %c0_36 = arith.constant 0 : index
    %c0_37 = arith.constant 0 : index
    %105 = vector.load %arg11[%c0_36, %c0_37] : memref<1x128xf32, #tpu.memory_space<vmem>>, vector<1x128xf32>
    %106 = vector.shape_cast %105 : vector<1x128xf32> to vector<128xf32>
    %cst_38 = arith.constant dense<0.000000e+00> : vector<16xf32>
    %107 = vector.multi_reduction <add>, %102, %cst_38 [1] : vector<16x128xf32> to vector<16xf32>
    %108 = vector.shape_cast %107 : vector<16xf32> to vector<16x1xf32>
    %cst_39 = arith.constant 1.280000e+02 : f32
    %109 = vector.broadcast %cst_39 : f32 to vector<16x1xf32>
    %110 = arith.divf %108, %109 : vector<16x1xf32>
    %111 = vector.broadcast %110 : vector<16x1xf32> to vector<16x128xf32>
    %112 = arith.subf %102, %111 : vector<16x128xf32>
    %113 = arith.mulf %112, %112 : vector<16x128xf32>
    %cst_40 = arith.constant dense<0.000000e+00> : vector<16xf32>
    %114 = vector.multi_reduction <add>, %113, %cst_40 [1] : vector<16x128xf32> to vector<16xf32>
    %115 = vector.shape_cast %114 : vector<16xf32> to vector<16x1xf32>
    %cst_41 = arith.constant 1.280000e+02 : f32
    %116 = vector.broadcast %cst_41 : f32 to vector<16x1xf32>
    %117 = arith.divf %115, %116 : vector<16x1xf32>
    %cst_42 = arith.constant 9.99999974E-6 : f32
    %118 = vector.broadcast %cst_42 : f32 to vector<16x1xf32>
    %119 = arith.addf %117, %118 : vector<16x1xf32>
    %120 = math.rsqrt %119 : vector<16x1xf32>
    %121 = vector.broadcast %120 : vector<16x1xf32> to vector<16x128xf32>
    %122 = arith.mulf %112, %121 : vector<16x128xf32>
    %123 = vector.shape_cast %104 : vector<128xf32> to vector<1x128xf32>
    %124 = vector.broadcast %123 : vector<1x128xf32> to vector<16x128xf32>
    %125 = arith.mulf %122, %124 : vector<16x128xf32>
    %126 = vector.shape_cast %106 : vector<128xf32> to vector<1x128xf32>
    %127 = vector.broadcast %126 : vector<1x128xf32> to vector<16x128xf32>
    %128 = arith.addf %125, %127 : vector<16x128xf32>
    %129 = arith.truncf %128 : vector<16x128xf32> to vector<16x128xbf16>
    %c0_43 = arith.constant 0 : index
    %c0_44 = arith.constant 0 : index
    %130 = vector.load %arg6[%c0_43, %c0_44] : memref<128x256xbf16, #tpu.memory_space<vmem>>, vector<128x256xbf16>
    %cst_45 = arith.constant dense<0.000000e+00> : vector<16x256xf32>
    %131 = tpu.matmul %129, %130, %cst_45 {dimension_numbers = #tpu.dot_dimension_numbers<[1], [0], [0], [1], [0, 0, 1, 1], [], []>} : vector<16x128xbf16>, vector<128x256xbf16>, vector<16x256xf32> -> vector<16x256xf32>
    %c0_46 = arith.constant 0 : index
    %c0_47 = arith.constant 0 : index
    %132 = vector.load %arg7[%c0_46, %c0_47] : memref<1x256xf32, #tpu.memory_space<vmem>>, vector<1x256xf32>
    %133 = vector.shape_cast %132 : vector<1x256xf32> to vector<256xf32>
    %134 = vector.shape_cast %133 : vector<256xf32> to vector<1x256xf32>
    %135 = vector.broadcast %134 : vector<1x256xf32> to vector<16x256xf32>
    %136 = arith.addf %131, %135 : vector<16x256xf32>
    %cst_48 = arith.constant 0.000000e+00 : f32
    %137 = vector.broadcast %cst_48 : f32 to vector<16x256xf32>
    %138 = arith.maximumf %136, %137 : vector<16x256xf32>
    %139 = arith.truncf %138 : vector<16x256xf32> to vector<16x256xbf16>
    %c0_49 = arith.constant 0 : index
    %c0_50 = arith.constant 0 : index
    %140 = vector.load %arg8[%c0_49, %c0_50] : memref<256x128xbf16, #tpu.memory_space<vmem>>, vector<256x128xbf16>
    %cst_51 = arith.constant dense<0.000000e+00> : vector<16x128xf32>
    %141 = tpu.matmul %139, %140, %cst_51 {dimension_numbers = #tpu.dot_dimension_numbers<[1], [0], [0], [1], [0, 0, 1, 1], [], []>} : vector<16x256xbf16>, vector<256x128xbf16>, vector<16x128xf32> -> vector<16x128xf32>
    %c0_52 = arith.constant 0 : index
    %c0_53 = arith.constant 0 : index
    %142 = vector.load %arg9[%c0_52, %c0_53] : memref<1x128xf32, #tpu.memory_space<vmem>>, vector<1x128xf32>
    %143 = vector.shape_cast %142 : vector<1x128xf32> to vector<128xf32>
    %144 = vector.shape_cast %143 : vector<128xf32> to vector<1x128xf32>
    %145 = vector.broadcast %144 : vector<1x128xf32> to vector<16x128xf32>
    %146 = arith.addf %141, %145 : vector<16x128xf32>
    %147 = arith.addf %128, %146 : vector<16x128xf32>
    %c0_54 = arith.constant 0 : index
    %c0_55 = arith.constant 0 : index
    %148 = vector.load %arg12[%c0_54, %c0_55] : memref<1x128xf32, #tpu.memory_space<vmem>>, vector<1x128xf32>
    %149 = vector.shape_cast %148 : vector<1x128xf32> to vector<128xf32>
    %c0_56 = arith.constant 0 : index
    %c0_57 = arith.constant 0 : index
    %150 = vector.load %arg13[%c0_56, %c0_57] : memref<1x128xf32, #tpu.memory_space<vmem>>, vector<1x128xf32>
    %151 = vector.shape_cast %150 : vector<1x128xf32> to vector<128xf32>
    %cst_58 = arith.constant dense<0.000000e+00> : vector<16xf32>
    %152 = vector.multi_reduction <add>, %147, %cst_58 [1] : vector<16x128xf32> to vector<16xf32>
    %153 = vector.shape_cast %152 : vector<16xf32> to vector<16x1xf32>
    %cst_59 = arith.constant 1.280000e+02 : f32
    %154 = vector.broadcast %cst_59 : f32 to vector<16x1xf32>
    %155 = arith.divf %153, %154 : vector<16x1xf32>
    %156 = vector.broadcast %155 : vector<16x1xf32> to vector<16x128xf32>
    %157 = arith.subf %147, %156 : vector<16x128xf32>
    %158 = arith.mulf %157, %157 : vector<16x128xf32>
    %cst_60 = arith.constant dense<0.000000e+00> : vector<16xf32>
    %159 = vector.multi_reduction <add>, %158, %cst_60 [1] : vector<16x128xf32> to vector<16xf32>
    %160 = vector.shape_cast %159 : vector<16xf32> to vector<16x1xf32>
    %cst_61 = arith.constant 1.280000e+02 : f32
    %161 = vector.broadcast %cst_61 : f32 to vector<16x1xf32>
    %162 = arith.divf %160, %161 : vector<16x1xf32>
    %cst_62 = arith.constant 9.99999974E-6 : f32
    %163 = vector.broadcast %cst_62 : f32 to vector<16x1xf32>
    %164 = arith.addf %162, %163 : vector<16x1xf32>
    %165 = math.rsqrt %164 : vector<16x1xf32>
    %166 = vector.broadcast %165 : vector<16x1xf32> to vector<16x128xf32>
    %167 = arith.mulf %157, %166 : vector<16x128xf32>
    %168 = vector.shape_cast %149 : vector<128xf32> to vector<1x128xf32>
    %169 = vector.broadcast %168 : vector<1x128xf32> to vector<16x128xf32>
    %170 = arith.mulf %167, %169 : vector<16x128xf32>
    %171 = vector.shape_cast %151 : vector<128xf32> to vector<1x128xf32>
    %172 = vector.broadcast %171 : vector<1x128xf32> to vector<16x128xf32>
    %173 = arith.addf %170, %172 : vector<16x128xf32>
    %c0_63 = arith.constant 0 : index
    %c0_64 = arith.constant 0 : index
    %c0_65 = arith.constant 0 : index
    %174 = vector.load %arg14[%c0_63, %c0_64, %c0_65] : memref<1x16x128xf32, #tpu.memory_space<vmem>>, vector<1x16x128xf32>
    %175 = vector.shape_cast %174 : vector<1x16x128xf32> to vector<16x128xf32>
    %176 = vector.shape_cast %173 : vector<16x128xf32> to vector<1x16x128xf32>
    tpu.vector_store %arg14[%c0_63, %c0_64, %c0_65], %176 {strides = array<i32>} : memref<1x16x128xf32, #tpu.memory_space<vmem>>, vector<1x16x128xf32>,
    return
  }
  func.func @transform_0(%arg0: i32) -> (i32, i32, i32) {
    %c0_i32 = arith.constant 0 : i32
    %c0_i32_0 = arith.constant 0 : i32
    %c0_i32_1 = arith.constant 0 : i32
    return %arg0, %c0_i32, %c0_i32_0 : i32, i32, i32
  }
  func.func @transform_1(%arg0: i32) -> (i32, i32) {
    %c0_i32 = arith.constant 0 : i32
    %c0_i32_0 = arith.constant 0 : i32
    %c0_i32_1 = arith.constant 0 : i32
    return %c0_i32, %c0_i32_0 : i32, i32
  }
  func.func @transform_2(%arg0: i32) -> (i32, i32) {
    %c0_i32 = arith.constant 0 : i32
    %c0_i32_0 = arith.constant 0 : i32
    %c0_i32_1 = arith.constant 0 : i32
    return %c0_i32, %c0_i32_0 : i32, i32
  }
  func.func @transform_3(%arg0: i32) -> (i32, i32) {
    %c0_i32 = arith.constant 0 : i32
    %c0_i32_0 = arith.constant 0 : i32
    %c0_i32_1 = arith.constant 0 : i32
    return %c0_i32, %c0_i32_0 : i32, i32
  }
  func.func @transform_4(%arg0: i32) -> (i32, i32) {
    %c0_i32 = arith.constant 0 : i32
    %c0_i32_0 = arith.constant 0 : i32
    %c0_i32_1 = arith.constant 0 : i32
    return %c0_i32, %c0_i32_0 : i32, i32
  }
  func.func @transform_5(%arg0: i32) -> (i32, i32) {
    %c0_i32 = arith.constant 0 : i32
    %c0_i32_0 = arith.constant 0 : i32
    %c0_i32_1 = arith.constant 0 : i32
    return %c0_i32, %c0_i32_0 : i32, i32
  }
  func.func @transform_6(%arg0: i32) -> (i32, i32) {
    %c0_i32 = arith.constant 0 : i32
    %c0_i32_0 = arith.constant 0 : i32
    %c0_i32_1 = arith.constant 0 : i32
    return %c0_i32, %c0_i32_0 : i32, i32
  }
  func.func @transform_7(%arg0: i32) -> (i32, i32) {
    %c0_i32 = arith.constant 0 : i32
    %c0_i32_0 = arith.constant 0 : i32
    %c0_i32_1 = arith.constant 0 : i32
    return %c0_i32, %c0_i32_0 : i32, i32
  }
  func.func @transform_8(%arg0: i32) -> (i32, i32) {
    %c0_i32 = arith.constant 0 : i32
    %c0_i32_0 = arith.constant 0 : i32
    %c0_i32_1 = arith.constant 0 : i32
    return %c0_i32, %c0_i32_0 : i32, i32
  }
  func.func @transform_9(%arg0: i32) -> (i32, i32) {
    %c0_i32 = arith.constant 0 : i32
    %c0_i32_0 = arith.constant 0 : i32
    %c0_i32_1 = arith.constant 0 : i32
    return %c0_i32, %c0_i32_0 : i32, i32
  }
  func.func @transform_10(%arg0: i32) -> (i32, i32) {
    %c0_i32 = arith.constant 0 : i32
    %c0_i32_0 = arith.constant 0 : i32
    %c0_i32_1 = arith.constant 0 : i32
    return %c0_i32, %c0_i32_0 : i32, i32
  }
  func.func @transform_11(%arg0: i32) -> (i32, i32) {
    %c0_i32 = arith.constant 0 : i32
    %c0_i32_0 = arith.constant 0 : i32
    %c0_i32_1 = arith.constant 0 : i32
    return %c0_i32, %c0_i32_0 : i32, i32
  }
  func.func @transform_12(%arg0: i32) -> (i32, i32) {
    %c0_i32 = arith.constant 0 : i32
    %c0_i32_0 = arith.constant 0 : i32
    %c0_i32_1 = arith.constant 0 : i32
    return %c0_i32, %c0_i32_0 : i32, i32
  }
  func.func @transform_13(%arg0: i32) -> (i32, i32, i32) {
    %c0_i32 = arith.constant 0 : i32
    %c0_i32_0 = arith.constant 0 : i32
    %c0_i32_1 = arith.constant 0 : i32
    return %arg0, %c0_i32, %c0_i32_0 : i32, i32, i32
  }
}

</mosaic_0001>

<llo_original>
// kernel: tpu_custom_call.1
$region0: #{tpu_custom_call.1}
  #allocation0 [shape = 'u32[]', space=smem, size = 0x4, offset = 0x4, fixed_abs, tag = 'smem constant byte address 0x4 - core index']
  #allocation1 [shape = 'u32[144,128]{1,0:T(1,128)}', space=vmem, size = 0x12000, scoped, tag = 'internal scratch']
  %s0 = inlined_call_operand.hbm [shape: f32[2,16,128], index: 0, kind: input, shape index: {}]
  %s1 = inlined_call_operand.hbm [shape: bf16[128,384], index: 1, kind: input, shape index: {}]
  %s2 = inlined_call_operand.vmem [shape: f32[1,384], index: 2, kind: input, shape index: {}]
  %s3 = inlined_call_operand.hbm [shape: bf16[128,128], index: 3, kind: input, shape index: {}]
  %s4 = inlined_call_operand.vmem [shape: f32[1,128], index: 4, kind: input, shape index: {}]
  %s5 = inlined_call_operand.hbm [shape: bf16[128,256], index: 5, kind: input, shape index: {}]
  %s6 = inlined_call_operand.vmem [shape: f32[1,256], index: 6, kind: input, shape index: {}]
  %s7 = inlined_call_operand.hbm [shape: bf16[256,128], index: 7, kind: input, shape index: {}]
  %s8 = inlined_call_operand.vmem [shape: f32[1,128], index: 8, kind: input, shape index: {}]
  %s9 = inlined_call_operand.vmem [shape: f32[1,128], index: 9, kind: input, shape index: {}]
  %s10 = inlined_call_operand.vmem [shape: f32[1,128], index: 10, kind: input, shape index: {}]
  %s11 = inlined_call_operand.vmem [shape: f32[1,128], index: 11, kind: input, shape index: {}]
  %s12 = inlined_call_operand.vmem [shape: f32[1,128], index: 12, kind: input, shape index: {}]
  %s13 = inlined_call_operand.hbm [shape: f32[2,16,128], index: 13, kind: output, shape index: {}]
  %s14 = sld [smem:[#allocation0]]
  $region105: #{tpu_custom_call.1} parent=0
    _
  %s16 = ssub.s32 1, %s14
  %s17 = scalar_select 0, %s16, %s14
  $region1: #{tpu_custom_call.1} parent=0
    #allocation2 [shape = 'u8[16384]{0}', space=vmem, size = 0x4000, scoped, tag = 'input window, operand 0']
    #allocation3 [shape = 's32[2]{0}', space=sflag, size = 0x8, scoped, tag = 'scoped memory for tpu_custom_call.1']
    #allocation4 [shape = 's32[2]{0}', space=sflag, size = 0x8, scoped, tag = 'scoped memory for tpu_custom_call.1']
    #allocation5 [shape = 'u8[98304]{0}', space=vmem, size = 0x18000, scoped, tag = 'input window, operand 1, single buffered']
    #allocation6 [shape = 's32[1]{0}', space=sflag, size = 0x4, scoped, tag = 'scoped memory for tpu_custom_call.1']
    #allocation7 [shape = 'u8[32768]{0}', space=vmem, size = 0x8000, scoped, tag = 'input window, operand 3, single buffered']
    #allocation8 [shape = 'u8[65536]{0}', space=vmem, size = 0x10000, scoped, tag = 'input window, operand 5, single buffered']
    #allocation9 [shape = 's32[1]{0}', space=sflag, size = 0x4, scoped, tag = 'scoped memory for tpu_custom_call.1']
    #allocation10 [shape = 'u8[65536]{0}', space=vmem, size = 0x10000, scoped, tag = 'input window, operand 7, single buffered']
    #allocation11 [shape = 'u8[16384]{0}', space=vmem, size = 0x4000, scoped, tag = 'output window, operand 0']
    %18 = vsyncpa [#allocation3], 0
    %s19 = scalar_lea.sflag [#allocation3], 1
    %20 = vsyncpa %s19, 0
    %21 = vsyncpa [#allocation6], 0
    %22 = vsyncpa [#allocation9], 0
    %23 = vsyncpa [#allocation4], 0
    %s24 = scalar_lea.sflag [#allocation4], 1
    %25 = vsyncpa %s24, 0
    loop: start=0, step=1, limit=4
    $region2: #{tpu_custom_call.1} parent=1 // loop_pre_header
      _
    $region3: #{tpu_custom_call.1} parent=1 // loop_header
      %s27 = sphi 0, %s31
      %p28 = scmp.ge.s32.totalorder %s27, 4
      %s37 = sphi 0, %s39
      %s40 = sphi 0, %s37
      %s41 = sphi 0, %s40
      %s57 = sphi 0, %s41
      %s61 = sphi 0, %s61
      %s63 = sphi 0, %s61
      %s64 = sphi 0, %s63
      %s78 = sphi 0, %s64
      %s82 = sphi 0, %s82
      %s84 = sphi 0, %s82
      %s85 = sphi 0, %s84
      %s99 = sphi 0, %s85
      %s103 = sphi 0, %s103
      %s105 = sphi 0, %s103
      %s106 = sphi 0, %s105
      %s120 = sphi 0, %s106
      %s124 = sphi 0, %s124
      %s126 = sphi 0, %s124
      %s127 = sphi 0, %s126
      %s141 = sphi 0, %s127
      %s145 = sphi 0, %s145
      %s147 = sphi 0, %s145
      %s148 = sphi 0, %s147
      %s162 = sphi 0, %s148
      %s166 = sphi 0, %s166
      %s168 = sphi 0, %s166
      %s169 = sphi 0, %s168
      %s183 = sphi 0, %s169
      %s187 = sphi 0, %s187
      %s189 = sphi 0, %s187
      %s190 = sphi 0, %s189
      %s204 = sphi 0, %s190
      %s208 = sphi 0, %s208
      %s210 = sphi 0, %s208
      %s211 = sphi 0, %s210
      %s225 = sphi 0, %s211
      %s229 = sphi 0, %s229
      %s231 = sphi 0, %s229
      %s232 = sphi 0, %s231
      %s246 = sphi 0, %s232
      %s250 = sphi 0, %s250
      %s252 = sphi 0, %s250
      %s253 = sphi 0, %s252
      %s267 = sphi 0, %s253
      %s271 = sphi 0, %s271
      %s273 = sphi 0, %s271
      %s274 = sphi 0, %s273
      %s288 = sphi 0, %s274
      %s292 = sphi 0, %s292
      %s294 = sphi 0, %s292
      %s295 = sphi 0, %s294
      %s309 = sphi 0, %s295
      %s315 = sphi 0, %s317
      %s318 = sphi 0, %s315
      %s319 = sphi 0, %s318
      %s335 = sphi 0, %s319
    $region4: #{tpu_custom_call.1} parent=1 // loop_header_branch
      %30 = sbr.rel (%p28) target = $region8
    $region5: #{tpu_custom_call.1} parent=1 // loop_body
      %s32 = ssub.s32 %s27, 1
      %s33 = ssub.s32 %s27, 2
      %s34 = sadd.s32 %s27, 1
      %s35 = ssub.s32 %s27, %s34
      %p36 = scmp.eq.s32.totalorder %s35, 0
      %s38 = sadd.s32 %s37, 1
      %s39 = scalar_select %p36, %s37, %s38
      %p42 = pneg %p36
      %p43 = scmp.eq.s32.totalorder %s27, 1
      %p44 = por %p42, %p43
      %p45 = scmp.ne.s32.totalorder %s37, %s40
      %p46 = scmp.eq.s32.totalorder %s27, 0
      %p47 = por %p45, %p46
      %p48 = scmp.ne.s32.totalorder %s37, %s40
      %p49 = scmp.eq.s32.totalorder %s32, 1
      %p50 = por %p48, %p49
      %p51 = scmp.ne.s32.totalorder %s40, %s41
      %p52 = scmp.eq.s32.totalorder %s32, 0
      %p53 = por %p51, %p52
      %p54 = scmp.ne.s32.totalorder %s40, %s41
      %p55 = scmp.eq.s32.totalorder %s33, 1
      %p56 = por %p54, %p55
      %p58 = scmp.ne.s32.totalorder %s41, %s57
      %p59 = scmp.eq.s32.totalorder %s33, 0
      %p60 = por %p58, %p59
      %s62 = sadd.s32 %s61, 1
      %p65 = scmp.eq.s32.totalorder %s27, 1
      %p66 = scmp.ne.s32.totalorder %s61, %s63
      %p67 = scmp.eq.s32.totalorder %s27, 0
      %p68 = por %p66, %p67
      %p69 = scmp.ne.s32.totalorder %s61, %s63
      %p70 = scmp.eq.s32.totalorder %s32, 1
      %p71 = por %p69, %p70
      %p72 = scmp.ne.s32.totalorder %s63, %s64
      %p73 = scmp.eq.s32.totalorder %s32, 0
      %p74 = por %p72, %p73
      %p75 = scmp.ne.s32.totalorder %s63, %s64
      %p76 = scmp.eq.s32.totalorder %s33, 1
      %p77 = por %p75, %p76
      %p79 = scmp.ne.s32.totalorder %s64, %s78
      %p80 = scmp.eq.s32.totalorder %s33, 0
      %p81 = por %p79, %p80
      %s83 = sadd.s32 %s82, 1
      %p86 = scmp.eq.s32.totalorder %s27, 1
      %p87 = scmp.ne.s32.totalorder %s82, %s84
      %p88 = scmp.eq.s32.totalorder %s27, 0
      %p89 = por %p87, %p88
      %p90 = scmp.ne.s32.totalorder %s82, %s84
      %p91 = scmp.eq.s32.totalorder %s32, 1
      %p92 = por %p90, %p91
      %p93 = scmp.ne.s32.totalorder %s84, %s85
      %p94 = scmp.eq.s32.totalorder %s32, 0
      %p95 = por %p93, %p94
      %p96 = scmp.ne.s32.totalorder %s84, %s85
      %p97 = scmp.eq.s32.totalorder %s33, 1
      %p98 = por %p96, %p97
      %p100 = scmp.ne.s32.totalorder %s85, %s99
      %p101 = scmp.eq.s32.totalorder %s33, 0
      %p102 = por %p100, %p101
      %s104 = sadd.s32 %s103, 1
      %p107 = scmp.eq.s32.totalorder %s27, 1
      %p108 = scmp.ne.s32.totalorder %s103, %s105
      %p109 = scmp.eq.s32.totalorder %s27, 0
      %p110 = por %p108, %p109
      %p111 = scmp.ne.s32.totalorder %s103, %s105
      %p112 = scmp.eq.s32.totalorder %s32, 1
      %p113 = por %p111, %p112
      %p114 = scmp.ne.s32.totalorder %s105, %s106
      %p115 = scmp.eq.s32.totalorder %s32, 0
      %p116 = por %p114, %p115
      %p117 = scmp.ne.s32.totalorder %s105, %s106
      %p118 = scmp.eq.s32.totalorder %s33, 1
      %p119 = por %p117, %p118
      %p121 = scmp.ne.s32.totalorder %s106, %s120
      %p122 = scmp.eq.s32.totalorder %s33, 0
      %p123 = por %p121, %p122
      %s125 = sadd.s32 %s124, 1
      %p128 = scmp.eq.s32.totalorder %s27, 1
      %p129 = scmp.ne.s32.totalorder %s124, %s126
      %p130 = scmp.eq.s32.totalorder %s27, 0
      %p131 = por %p129, %p130
      %p132 = scmp.ne.s32.totalorder %s124, %s126
      %p133 = scmp.eq.s32.totalorder %s32, 1
      %p134 = por %p132, %p133
      %p135 = scmp.ne.s32.totalorder %s126, %s127
      %p136 = scmp.eq.s32.totalorder %s32, 0
      %p137 = por %p135, %p136
      %p138 = scmp.ne.s32.totalorder %s126, %s127
      %p139 = scmp.eq.s32.totalorder %s33, 1
      %p140 = por %p138, %p139
      %p142 = scmp.ne.s32.totalorder %s127, %s141
      %p143 = scmp.eq.s32.totalorder %s33, 0
      %p144 = por %p142, %p143
      %s146 = sadd.s32 %s145, 1
      %p149 = scmp.eq.s32.totalorder %s27, 1
      %p150 = scmp.ne.s32.totalorder %s145, %s147
      %p151 = scmp.eq.s32.totalorder %s27, 0
      %p152 = por %p150, %p151
      %p153 = scmp.ne.s32.totalorder %s145, %s147
      %p154 = scmp.eq.s32.totalorder %s32, 1
      %p155 = por %p153, %p154
      %p156 = scmp.ne.s32.totalorder %s147, %s148
      %p157 = scmp.eq.s32.totalorder %s32, 0
      %p158 = por %p156, %p157
      %p159 = scmp.ne.s32.totalorder %s147, %s148
      %p160 = scmp.eq.s32.totalorder %s33, 1
      %p161 = por %p159, %p160
      %p163 = scmp.ne.s32.totalorder %s148, %s162
      %p164 = scmp.eq.s32.totalorder %s33, 0
      %p165 = por %p163, %p164
      %s167 = sadd.s32 %s166, 1
      %p170 = scmp.eq.s32.totalorder %s27, 1
      %p171 = scmp.ne.s32.totalorder %s166, %s168
      %p172 = scmp.eq.s32.totalorder %s27, 0
      %p173 = por %p171, %p172
      %p174 = scmp.ne.s32.totalorder %s166, %s168
      %p175 = scmp.eq.s32.totalorder %s32, 1
      %p176 = por %p174, %p175
      %p177 = scmp.ne.s32.totalorder %s168, %s169
      %p178 = scmp.eq.s32.totalorder %s32, 0
      %p179 = por %p177, %p178
      %p180 = scmp.ne.s32.totalorder %s168, %s169
      %p181 = scmp.eq.s32.totalorder %s33, 1
      %p182 = por %p180, %p181
      %p184 = scmp.ne.s32.totalorder %s169, %s183
      %p185 = scmp.eq.s32.totalorder %s33, 0
      %p186 = por %p184, %p185
      %s188 = sadd.s32 %s187, 1
      %p191 = scmp.eq.s32.totalorder %s27, 1
      %p192 = scmp.ne.s32.totalorder %s187, %s189
      %p193 = scmp.eq.s32.totalorder %s27, 0
      %p194 = por %p192, %p193
      %p195 = scmp.ne.s32.totalorder %s187, %s189
      %p196 = scmp.eq.s32.totalorder %s32, 1
      %p197 = por %p195, %p196
      %p198 = scmp.ne.s32.totalorder %s189, %s190
      %p199 = scmp.eq.s32.totalorder %s32, 0
      %p200 = por %p198, %p199
      %p201 = scmp.ne.s32.totalorder %s189, %s190
      %p202 = scmp.eq.s32.totalorder %s33, 1
      %p203 = por %p201, %p202
      %p205 = scmp.ne.s32.totalorder %s190, %s204
      %p206 = scmp.eq.s32.totalorder %s33, 0
      %p207 = por %p205, %p206
      %s209 = sadd.s32 %s208, 1
      %p212 = scmp.eq.s32.totalorder %s27, 1
      %p213 = scmp.ne.s32.totalorder %s208, %s210
      %p214 = scmp.eq.s32.totalorder %s27, 0
      %p215 = por %p213, %p214
      %p216 = scmp.ne.s32.totalorder %s208, %s210
      %p217 = scmp.eq.s32.totalorder %s32, 1
      %p218 = por %p216, %p217
      %p219 = scmp.ne.s32.totalorder %s210, %s211
      %p220 = scmp.eq.s32.totalorder %s32, 0
      %p221 = por %p219, %p220
      %p222 = scmp.ne.s32.totalorder %s210, %s211
      %p223 = scmp.eq.s32.totalorder %s33, 1
      %p224 = por %p222, %p223
      %p226 = scmp.ne.s32.totalorder %s211, %s225
      %p227 = scmp.eq.s32.totalorder %s33, 0
      %p228 = por %p226, %p227
      %s230 = sadd.s32 %s229, 1
      %p233 = scmp.eq.s32.totalorder %s27, 1
      %p234 = scmp.ne.s32.totalorder %s229, %s231
      %p235 = scmp.eq.s32.totalorder %s27, 0
      %p236 = por %p234, %p235
      %p237 = scmp.ne.s32.totalorder %s229, %s231
      %p238 = scmp.eq.s32.totalorder %s32, 1
      %p239 = por %p237, %p238
      %p240 = scmp.ne.s32.totalorder %s231, %s232
      %p241 = scmp.eq.s32.totalorder %s32, 0
      %p242 = por %p240, %p241
      %p243 = scmp.ne.s32.totalorder %s231, %s232
      %p244 = scmp.eq.s32.totalorder %s33, 1
      %p245 = por %p243, %p244
      %p247 = scmp.ne.s32.totalorder %s232, %s246
      %p248 = scmp.eq.s32.totalorder %s33, 0
      %p249 = por %p247, %p248
      %s251 = sadd.s32 %s250, 1
      %p254 = scmp.eq.s32.totalorder %s27, 1
      %p255 = scmp.ne.s32.totalorder %s250, %s252
      %p256 = scmp.eq.s32.totalorder %s27, 0
      %p257 = por %p255, %p256
      %p258 = scmp.ne.s32.totalorder %s250, %s252
      %p259 = scmp.eq.s32.totalorder %s32, 1
      %p260 = por %p258, %p259
      %p261 = scmp.ne.s32.totalorder %s252, %s253
      %p262 = scmp.eq.s32.totalorder %s32, 0
      %p263 = por %p261, %p262
      %p264 = scmp.ne.s32.totalorder %s252, %s253
      %p265 = scmp.eq.s32.totalorder %s33, 1
      %p266 = por %p264, %p265
      %p268 = scmp.ne.s32.totalorder %s253, %s267
      %p269 = scmp.eq.s32.totalorder %s33, 0
      %p270 = por %p268, %p269
      %s272 = sadd.s32 %s271, 1
      %p275 = scmp.eq.s32.totalorder %s27, 1
      %p276 = scmp.ne.s32.totalorder %s271, %s273
      %p277 = scmp.eq.s32.totalorder %s27, 0
      %p278 = por %p276, %p277
      %p279 = scmp.ne.s32.totalorder %s271, %s273
      %p280 = scmp.eq.s32.totalorder %s32, 1
      %p281 = por %p279, %p280
      %p282 = scmp.ne.s32.totalorder %s273, %s274
      %p283 = scmp.eq.s32.totalorder %s32, 0
      %p284 = por %p282, %p283
      %p285 = scmp.ne.s32.totalorder %s273, %s274
      %p286 = scmp.eq.s32.totalorder %s33, 1
      %p287 = por %p285, %p286
      %p289 = scmp.ne.s32.totalorder %s274, %s288
      %p290 = scmp.eq.s32.totalorder %s33, 0
      %p291 = por %p289, %p290
      %s293 = sadd.s32 %s292, 1
      %p296 = scmp.eq.s32.totalorder %s27, 1
      %p297 = scmp.ne.s32.totalorder %s292, %s294
      %p298 = scmp.eq.s32.totalorder %s27, 0
      %p299 = por %p297, %p298
      %p300 = scmp.ne.s32.totalorder %s292, %s294
      %p301 = scmp.eq.s32.totalorder %s32, 1
      %p302 = por %p300, %p301
      %p303 = scmp.ne.s32.totalorder %s294, %s295
      %p304 = scmp.eq.s32.totalorder %s32, 0
      %p305 = por %p303, %p304
      %p306 = scmp.ne.s32.totalorder %s294, %s295
      %p307 = scmp.eq.s32.totalorder %s33, 1
      %p308 = por %p306, %p307
      %p310 = scmp.ne.s32.totalorder %s295, %s309
      %p311 = scmp.eq.s32.totalorder %s33, 0
      %p312 = por %p310, %p311
      %s313 = ssub.s32 %s27, %s34
      %p314 = scmp.eq.s32.totalorder %s313, 0
      %s316 = sadd.s32 %s315, 1
      %s317 = scalar_select %p314, %s315, %s316
      %p320 = pneg %p314
      %p321 = scmp.eq.s32.totalorder %s27, 1
      %p322 = por %p320, %p321
      %p323 = scmp.ne.s32.totalorder %s315, %s318
      %p324 = scmp.eq.s32.totalorder %s27, 0
      %p325 = por %p323, %p324
      %p326 = scmp.ne.s32.totalorder %s315, %s318
      %p327 = scmp.eq.s32.totalorder %s32, 1
      %p328 = por %p326, %p327
      %p329 = scmp.ne.s32.totalorder %s318, %s319
      %p330 = scmp.eq.s32.totalorder %s32, 0
      %p331 = por %p329, %p330
      %p332 = scmp.ne.s32.totalorder %s318, %s319
      %p333 = scmp.eq.s32.totalorder %s33, 1
      %p334 = por %p332, %p333
      %p336 = scmp.ne.s32.totalorder %s319, %s335
      %p337 = scmp.eq.s32.totalorder %s33, 0
      %p338 = por %p336, %p337
      %p339 = scmp.le.s32.totalorder 1, %s27
      %p340 = scmp.lt.s32.totalorder %s27, 3
      %p341 = pnand %p339, %p340
      %p342 = pneg %p341
      // Predicated region
      $region9: #{tpu_custom_call.1} parent=5 // pred_check
        _
      $region10: #{tpu_custom_call.1} parent=5 // pred_check_branch
        %344 = sbr.rel (%p341) target = $region12
      $region11: #{tpu_custom_call.1} parent=5 // pred_region
        %s345 = ssub.s32 %s27, 1
        // Predicated region
        $region13: #{tpu_custom_call.1} parent=11 // pred_check
          %p346 = pneg %p74
        $region14: #{tpu_custom_call.1} parent=11 // pred_check_branch
          %348 = sbr.rel (%p346) target = $region16
        $region15: #{tpu_custom_call.1} parent=11 // pred_region
          %s350 = ssub.s32 3072, 3072
          %351 = vsyncadd [#allocation6], %s350
          %s352 = sshll.u32 [#allocation5], 4
          %s353 = int_to_ptr.vmem [resolvable:$true] %s352
          %358 = dma.hbm_to_vmem [thread:$0]  %s1, 3072, %s353, [#allocation6], 192, 192, 12
        $region16: #{tpu_custom_call.1} parent=11 // pred_fallthru
          _
        // Predicated region
        $region17: #{tpu_custom_call.1} parent=11 // pred_check
          %p359 = pneg %p95
        $region18: #{tpu_custom_call.1} parent=11 // pred_check_branch
          %361 = sbr.rel (%p359) target = $region20
        $region19: #{tpu_custom_call.1} parent=11 // pred_region
          _
        $region20: #{tpu_custom_call.1} parent=11 // pred_fallthru
          _
        // Predicated region
        $region21: #{tpu_custom_call.1} parent=11 // pred_check
          %p362 = pneg %p116
        $region22: #{tpu_custom_call.1} parent=11 // pred_check_branch
          %364 = sbr.rel (%p362) target = $region24
        $region23: #{tpu_custom_call.1} parent=11 // pred_region
          %s366 = ssub.s32 1024, 1024
          %367 = vsyncadd [#allocation6], %s366
          %s368 = sshll.u32 [#allocation7], 4
          %s369 = int_to_ptr.vmem [resolvable:$true] %s368
          %374 = dma.hbm_to_vmem [thread:$0]  %s3, 1024, %s369, [#allocation6], 64, 64, 4
        $region24: #{tpu_custom_call.1} parent=11 // pred_fallthru
          _
        // Predicated region
        $region25: #{tpu_custom_call.1} parent=11 // pred_check
          %p375 = pneg %p137
        $region26: #{tpu_custom_call.1} parent=11 // pred_check_branch
          %377 = sbr.rel (%p375) target = $region28
        $region27: #{tpu_custom_call.1} parent=11 // pred_region
          _
        $region28: #{tpu_custom_call.1} parent=11 // pred_fallthru
          _
        // Predicated region
        $region29: #{tpu_custom_call.1} parent=11 // pred_check
          %p378 = pneg %p158
        $region30: #{tpu_custom_call.1} parent=11 // pred_check_branch
          %380 = sbr.rel (%p378) target = $region32
        $region31: #{tpu_custom_call.1} parent=11 // pred_region
          %s382 = ssub.s32 2048, 2048
          %383 = vsyncadd [#allocation9], %s382
          %s384 = sshll.u32 [#allocation8], 4
          %s385 = int_to_ptr.vmem [resolvable:$true] %s384
          %390 = dma.hbm_to_vmem [thread:$0]  %s5, 2048, %s385, [#allocation9], 128, 128, 8
        $region32: #{tpu_custom_call.1} parent=11 // pred_fallthru
          _
        // Predicated region
        $region33: #{tpu_custom_call.1} parent=11 // pred_check
          %p391 = pneg %p179
        $region34: #{tpu_custom_call.1} parent=11 // pred_check_branch
          %393 = sbr.rel (%p391) target = $region36
        $region35: #{tpu_custom_call.1} parent=11 // pred_region
          _
        $region36: #{tpu_custom_call.1} parent=11 // pred_fallthru
          _
        // Predicated region
        $region37: #{tpu_custom_call.1} parent=11 // pred_check
          %p394 = pneg %p200
        $region38: #{tpu_custom_call.1} parent=11 // pred_check_branch
          %396 = sbr.rel (%p394) target = $region40
        $region39: #{tpu_custom_call.1} parent=11 // pred_region
          %s398 = ssub.s32 2048, 2048
          %399 = vsyncadd [#allocation9], %s398
          %s400 = sshll.u32 [#allocation10], 4
          %s401 = int_to_ptr.vmem [resolvable:$true] %s400
          %406 = dma.hbm_to_vmem [thread:$0]  %s7, 2048, %s401, [#allocation9], 64, 64, 4
        $region40: #{tpu_custom_call.1} parent=11 // pred_fallthru
          _
        // Predicated region
        $region41: #{tpu_custom_call.1} parent=11 // pred_check
          %p407 = pneg %p221
        $region42: #{tpu_custom_call.1} parent=11 // pred_check_branch
          %409 = sbr.rel (%p407) target = $region44
        $region43: #{tpu_custom_call.1} parent=11 // pred_region
          _
        $region44: #{tpu_custom_call.1} parent=11 // pred_fallthru
          _
        // Predicated region
        $region45: #{tpu_custom_call.1} parent=11 // pred_check
          %p410 = pneg %p242
        $region46: #{tpu_custom_call.1} parent=11 // pred_check_branch
          %412 = sbr.rel (%p410) target = $region48
        $region47: #{tpu_custom_call.1} parent=11 // pred_region
          _
        $region48: #{tpu_custom_call.1} parent=11 // pred_fallthru
          _
        // Predicated region
        $region49: #{tpu_custom_call.1} parent=11 // pred_check
          %p413 = pneg %p263
        $region50: #{tpu_custom_call.1} parent=11 // pred_check_branch
          %415 = sbr.rel (%p413) target = $region52
        $region51: #{tpu_custom_call.1} parent=11 // pred_region
          _
        $region52: #{tpu_custom_call.1} parent=11 // pred_fallthru
          _
        // Predicated region
        $region53: #{tpu_custom_call.1} parent=11 // pred_check
          %p416 = pneg %p284
        $region54: #{tpu_custom_call.1} parent=11 // pred_check_branch
          %418 = sbr.rel (%p416) target = $region56
        $region55: #{tpu_custom_call.1} parent=11 // pred_region
          _
        $region56: #{tpu_custom_call.1} parent=11 // pred_fallthru
          _
        // Predicated region
        $region57: #{tpu_custom_call.1} parent=11 // pred_check
          %p419 = pneg %p305
        $region58: #{tpu_custom_call.1} parent=11 // pred_check_branch
          %421 = sbr.rel (%p419) target = $region60
        $region59: #{tpu_custom_call.1} parent=11 // pred_region
          _
        $region60: #{tpu_custom_call.1} parent=11 // pred_fallthru
          _
      $region12: #{tpu_custom_call.1} parent=5 // pred_fallthru
        _
      %p422 = scmp.lt.s32.totalorder %s27, 2
      // Predicated region
      $region61: #{tpu_custom_call.1} parent=5 // pred_check
        %p423 = pneg %p422
      $region62: #{tpu_custom_call.1} parent=5 // pred_check_branch
        %425 = sbr.rel (%p423) target = $region64
      $region63: #{tpu_custom_call.1} parent=5 // pred_region
        // Predicated region
        $region65: #{tpu_custom_call.1} parent=63 // pred_check
          %p426 = pneg %p47
        $region66: #{tpu_custom_call.1} parent=63 // pred_check_branch
          %428 = sbr.rel (%p426) target = $region68
        $region67: #{tpu_custom_call.1} parent=63 // pred_region
          %s429 = sand.u32 %s37, 1
          %s430 = scalar_lea.sflag [#allocation3], %s429
          %s431 = sand.u32 %s37, 1
          %s432 = smul.addr %s431, 16
          %s433 = scalar_lea.vmem [#allocation2], %s432
          %s435 = ssub.s32 256, 256
          %436 = vsyncadd %s430, %s435
          %s437 = smul.addr %s27, 2
          %s438 = smul.addr %s437, 128
          %s439 = scalar_lea.hbm %s0, %s438
          %s440 = sshll.u32 %s433, 4
          %s441 = int_to_ptr.vmem [resolvable:$true] %s440
          %446 = dma.hbm_to_vmem [thread:$0]  %s439, 256, %s441, %s430, 128, 128, 8
        $region68: #{tpu_custom_call.1} parent=63 // pred_fallthru
          _
      $region64: #{tpu_custom_call.1} parent=5 // pred_fallthru
        _
      %p447 = scmp.le.s32.totalorder 1, %s27
      %p448 = scmp.lt.s32.totalorder %s27, 3
      %p449 = pnand %p447, %p448
      %p450 = pneg %p449
      // Predicated region
      $region69: #{tpu_custom_call.1} parent=5 // pred_check
        _
      $region70: #{tpu_custom_call.1} parent=5 // pred_check_branch
        %452 = sbr.rel (%p449) target = $region72
      $region71: #{tpu_custom_call.1} parent=5 // pred_region
        %s453 = ssub.s32 %s27, 1
        %s454 = sand.u32 %s40, 1
        %s455 = scalar_lea.sflag [#allocation3], %s454
        %s456 = sand.u32 %s40, 1
        %s457 = smul.addr %s456, 16
        %s458 = scalar_lea.vmem [#allocation2], %s457
        // Predicated region
        $region73: #{tpu_custom_call.1} parent=71 // pred_check
          %p459 = pneg %p53
        $region74: #{tpu_custom_call.1} parent=71 // pred_check_branch
          %461 = sbr.rel (%p459) target = $region76
        $region75: #{tpu_custom_call.1} parent=71 // pred_region
          %462 = dma.done %s455, 256
        $region76: #{tpu_custom_call.1} parent=71 // pred_fallthru
          _
        // Predicated region
        $region77: #{tpu_custom_call.1} parent=71 // pred_check
          %p463 = pneg %p74
        $region78: #{tpu_custom_call.1} parent=71 // pred_check_branch
          %465 = sbr.rel (%p463) target = $region80
        $region79: #{tpu_custom_call.1} parent=71 // pred_region
          %466 = dma.done [#allocation6], 3072
        $region80: #{tpu_custom_call.1} parent=71 // pred_fallthru
          _
        // Predicated region
        $region81: #{tpu_custom_call.1} parent=71 // pred_check
          %p467 = pneg %p116
        $region82: #{tpu_custom_call.1} parent=71 // pred_check_branch
          %469 = sbr.rel (%p467) target = $region84
        $region83: #{tpu_custom_call.1} parent=71 // pred_region
          %470 = dma.done [#allocation6], 1024
        $region84: #{tpu_custom_call.1} parent=71 // pred_fallthru
          _
        // Predicated region
        $region85: #{tpu_custom_call.1} parent=71 // pred_check
          %p471 = pneg %p158
        $region86: #{tpu_custom_call.1} parent=71 // pred_check_branch
          %473 = sbr.rel (%p471) target = $region88
        $region87: #{tpu_custom_call.1} parent=71 // pred_region
          %474 = dma.done [#allocation9], 2048
        $region88: #{tpu_custom_call.1} parent=71 // pred_fallthru
          _
        // Predicated region
        $region89: #{tpu_custom_call.1} parent=71 // pred_check
          %p475 = pneg %p200
        $region90: #{tpu_custom_call.1} parent=71 // pred_check_branch
          %477 = sbr.rel (%p475) target = $region92
        $region91: #{tpu_custom_call.1} parent=71 // pred_region
          %478 = dma.done [#allocation9], 2048
        $region92: #{tpu_custom_call.1} parent=71 // pred_fallthru
          _
        %s479 = sand.u32 %s40, 1
        %s480 = scalar_lea.sflag [#allocation3], %s479
        %s481 = sand.u32 %s40, 1
        %s482 = smul.addr %s481, 16
        %s483 = scalar_lea.vmem [#allocation2], %s482
        %p484 = pneg %p53
        %p485 = pneg %p50
        %p486 = pneg %p74
        %p487 = pneg %p71
        %p488 = pneg %p95
        %p489 = pneg %p92
        %p490 = pneg %p116
        %p491 = pneg %p113
        %p492 = pneg %p137
        %p493 = pneg %p134
        %p494 = pneg %p158
        %p495 = pneg %p155
        %p496 = pneg %p179
        %p497 = pneg %p176
        %p498 = pneg %p200
        %p499 = pneg %p197
        %p500 = pneg %p221
        %p501 = pneg %p218
        %p502 = pneg %p242
        %p503 = pneg %p239
        %p504 = pneg %p263
        %p505 = pneg %p260
        %p506 = pneg %p284
        %p507 = pneg %p281
        %p508 = pneg %p305
        %p509 = pneg %p302
        %p510 = pneg %p331
        %p511 = pneg %p328
        %s512 = sand.u32 %s318, 1
        %s513 = scalar_lea.sflag [#allocation4], %s512
        %s514 = sand.u32 %s318, 1
        %s515 = smul.addr %s514, 16
        %s516 = scalar_lea.vmem [#allocation11], %s515
        %v518 = vld [vmem:[%s458] sm:$0xff]
        %v519 = vld [vmem:[%s458 + $0x8] sm:$0xff]
        %v520 = vpack.c.bf16 %v519, %v518
        %v521 = vld [vmem:[#allocation5] sm:$0xff]
        %v522 = vld [vmem:[#allocation5 + $0x8] sm:$0xf]
        %v523 = vld [vmem:[#allocation5 + $0xc] sm:$0xff]
        %v524 = vld [vmem:[#allocation5 + $0x14] sm:$0xf]
        %v525 = vld [vmem:[#allocation5 + $0x18] sm:$0xff]
        %v526 = vld [vmem:[#allocation5 + $0x20] sm:$0xf]
        %v527 = vld [vmem:[#allocation5 + $0x24] sm:$0xff]
        %v528 = vld [vmem:[#allocation5 + $0x2c] sm:$0xf]
        %v529 = vld [vmem:[#allocation5 + $0x30] sm:$0xff]
        %v530 = vld [vmem:[#allocation5 + $0x38] sm:$0xf]
        %v531 = vld [vmem:[#allocation5 + $0x3c] sm:$0xff]
        %v532 = vld [vmem:[#allocation5 + $0x44] sm:$0xf]
        %v533 = vld [vmem:[#allocation5 + $0x48] sm:$0xff]
        %v534 = vld [vmem:[#allocation5 + $0x50] sm:$0xf]
        %v535 = vld [vmem:[#allocation5 + $0x54] sm:$0xff]
        %v536 = vld [vmem:[#allocation5 + $0x5c] sm:$0xf]
        %v537 = vld [vmem:[#allocation5 + $0x60] sm:$0xff]
        %v538 = vld [vmem:[#allocation5 + $0x68] sm:$0xf]
        %v539 = vld [vmem:[#allocation5 + $0x6c] sm:$0xff]
        %v540 = vld [vmem:[#allocation5 + $0x74] sm:$0xf]
        %v541 = vld [vmem:[#allocation5 + $0x78] sm:$0xff]
        %v542 = vld [vmem:[#allocation5 + $0x80] sm:$0xf]
        %v543 = vld [vmem:[#allocation5 + $0x84] sm:$0xff]
        %v544 = vld [vmem:[#allocation5 + $0x8c] sm:$0xf]
        %v545 = vld [vmem:[#allocation5 + $0x90] sm:$0xff]
        %v546 = vld [vmem:[#allocation5 + $0x98] sm:$0xf]
        %v547 = vld [vmem:[#allocation5 + $0x9c] sm:$0xff]
        %v548 = vld [vmem:[#allocation5 + $0xa4] sm:$0xf]
        %v549 = vld [vmem:[#allocation5 + $0xa8] sm:$0xff]
        %v550 = vld [vmem:[#allocation5 + $0xb0] sm:$0xf]
        %v551 = vld [vmem:[#allocation5 + $0xb4] sm:$0xff]
        %v552 = vld [vmem:[#allocation5 + $0xbc] sm:$0xf]
        %v553 = vld [vmem:[%s2] sm:$0x7]
        %v555 = vlaneseq
        %v556 = vshrl.u32 %v555, 7
        %v557 = vsub.s32 0, %v556
        %v558 = vrot.slane %v553, %v557
        %v559 = vlaneseq
        %v560 = vshrl.u32 %v559, 7
        %v561 = vsub.s32 1, %v560
        %v562 = vrot.slane %v553, %v561
        %v563 = vlaneseq
        %v564 = vshrl.u32 %v563, 7
        %v565 = vsub.s32 2, %v564
        %v566 = vrot.slane %v553, %v565
        %v602 = vunpack.c.l.b16 %v521
        %v603 = vunpack.c.h.b16 %v521
        %v604 = vunpack.c.l.b16 %v522
        %v605 = vunpack.c.l.b16 %v523
        %v606 = vunpack.c.h.b16 %v523
        %v607 = vunpack.c.l.b16 %v524
        %v608 = vunpack.c.l.b16 %v525
        %v609 = vunpack.c.h.b16 %v525
        %v610 = vunpack.c.l.b16 %v526
        %v611 = vunpack.c.l.b16 %v527
        %v612 = vunpack.c.h.b16 %v527
        %v613 = vunpack.c.l.b16 %v528
        %v614 = vunpack.c.l.b16 %v529
        %v615 = vunpack.c.h.b16 %v529
        %v616 = vunpack.c.l.b16 %v530
        %v617 = vunpack.c.l.b16 %v531
        %v618 = vunpack.c.h.b16 %v531
        %v619 = vunpack.c.l.b16 %v532
        %v620 = vunpack.c.l.b16 %v533
        %v621 = vunpack.c.h.b16 %v533
        %v622 = vunpack.c.l.b16 %v534
        %v623 = vunpack.c.l.b16 %v535
        %v624 = vunpack.c.h.b16 %v535
        %v625 = vunpack.c.l.b16 %v536
        %v626 = vunpack.c.l.b16 %v537
        %v627 = vunpack.c.h.b16 %v537
        %v628 = vunpack.c.l.b16 %v538
        %v629 = vunpack.c.l.b16 %v539
        %v630 = vunpack.c.h.b16 %v539
        %v631 = vunpack.c.l.b16 %v540
        %v632 = vunpack.c.l.b16 %v541
        %v633 = vunpack.c.h.b16 %v541
        %v634 = vunpack.c.l.b16 %v542
        %v635 = vunpack.c.l.b16 %v543
        %v636 = vunpack.c.h.b16 %v543
        %v637 = vunpack.c.l.b16 %v544
        %v638 = vunpack.c.l.b16 %v545
        %v639 = vunpack.c.h.b16 %v545
        %v640 = vunpack.c.l.b16 %v546
        %v641 = vunpack.c.l.b16 %v547
        %v642 = vunpack.c.h.b16 %v547
        %v643 = vunpack.c.l.b16 %v548
        %v644 = vunpack.c.l.b16 %v549
        %v645 = vunpack.c.h.b16 %v549
        %v646 = vunpack.c.l.b16 %v550
        %v647 = vunpack.c.l.b16 %v551
        %v648 = vunpack.c.h.b16 %v551
        %v649 = vunpack.c.l.b16 %v552
        %v650 = vpack.c.b16 %v605, %v602
        %v651 = vpack.c.b16 %v606, %v603
        %v652 = vpack.c.b16 %v607, %v604
        %v653 = vpack.c.b16 %v611, %v608
        %v654 = vpack.c.b16 %v612, %v609
        %v655 = vpack.c.b16 %v613, %v610
        %v656 = vpack.c.b16 %v617, %v614
        %v657 = vpack.c.b16 %v618, %v615
        %v658 = vpack.c.b16 %v619, %v616
        %v659 = vpack.c.b16 %v623, %v620
        %v660 = vpack.c.b16 %v624, %v621
        %v661 = vpack.c.b16 %v625, %v622
        %v662 = vpack.c.b16 %v629, %v626
        %v663 = vpack.c.b16 %v630, %v627
        %v664 = vpack.c.b16 %v631, %v628
        %v665 = vpack.c.b16 %v635, %v632
        %v666 = vpack.c.b16 %v636, %v633
        %v667 = vpack.c.b16 %v637, %v634
        %v668 = vpack.c.b16 %v641, %v638
        %v669 = vpack.c.b16 %v642, %v639
        %v670 = vpack.c.b16 %v643, %v640
        %v671 = vpack.c.b16 %v647, %v644
        %v672 = vpack.c.b16 %v648, %v645
        %v673 = vpack.c.b16 %v649, %v646
        %698 = vmatprep.subr.bf16.mxu0 %v651
        %699 = vmatpush1.bf16.msra.mxu0 %v650
        %700 = vmatprep.subr.bf16.mxu0 %v654
        %701 = vmatpush1.bf16.msra.mxu0 %v653
        %702 = vmatprep.subr.bf16.mxu0 %v657
        %703 = vmatpush1.bf16.msra.mxu0 %v656
        %704 = vmatprep.subr.bf16.mxu0 %v660
        %705 = vmatpush1.bf16.msra.mxu0 %v659
        %706 = vmatprep.subr.bf16.mxu0 %v663
        %707 = vmatpush1.bf16.msra.mxu0 %v662
        %708 = vmatprep.subr.bf16.mxu0 %v666
        %709 = vmatpush1.bf16.msra.mxu0 %v665
        %710 = vmatprep.subr.bf16.mxu0 %v669
        %711 = vmatpush1.bf16.msra.mxu0 %v668
        %712 = vmatprep.subr.bf16.mxu0 %v672
        %713 = vmatpush1.bf16.msra.mxu0 %v671
        %714 = vmatprep.subr.bf16.mxu0 0
        %715 = vmatpush1.bf16.msra.mxu0 0
        %716 = vmatprep.subr.bf16.mxu0 0
        %717 = vmatpush1.bf16.msra.mxu0 0
        %718 = vmatprep.subr.bf16.mxu0 0
        %719 = vmatpush1.bf16.msra.mxu0 0
        %720 = vmatprep.subr.bf16.mxu0 0
        %721 = vmatpush1.bf16.msra.mxu0 0
        %722 = vmatprep.subr.bf16.mxu0 0
        %723 = vmatpush1.bf16.msra.mxu0 0
        %724 = vmatprep.subr.bf16.mxu0 0
        %725 = vmatpush1.bf16.msra.mxu0 0
        %726 = vmatprep.subr.bf16.mxu0 0
        %727 = vmatpush1.bf16.msra.mxu0 0
        %728 = vmatprep.subr.bf16.mxu0 0
        %729 = vmatpush1.bf16.msra.mxu0 0
        %730 = vmatprep.mubr.bf16.mxu0 0
        %731 = vmatmul.mubr.bf16.gmra.mrb[0].mxu0 %v520
        %v732 = vpop.f32.mrb[0].mxu0
        %v733 = vadd.f32 %v558, %v732
        %v734 = vpop.f32.mrb[0].mxu0
        %v735 = vadd.f32 %v562, %v734
        %v736 = vpop.f32.mrb[0].mxu0
        %v737 = vadd.f32 %v558, %v736
        %v738 = vpop.f32.mrb[0].mxu0
        %v739 = vadd.f32 %v562, %v738
        %740 = vdwg.mxu0
        %741 = vmatprep.subr.bf16.mxu0 0
        %742 = vmatpush1.bf16.msra.mxu0 %v652
        %743 = vmatprep.subr.bf16.mxu0 0
        %744 = vmatpush1.bf16.msra.mxu0 %v655
        %745 = vmatprep.subr.bf16.mxu0 0
        %746 = vmatpush1.bf16.msra.mxu0 %v658
        %747 = vmatprep.subr.bf16.mxu0 0
        %748 = vmatpush1.bf16.msra.mxu0 %v661
        %749 = vmatprep.subr.bf16.mxu0 0
        %750 = vmatpush1.bf16.msra.mxu0 %v664
        %751 = vmatprep.subr.bf16.mxu0 0
        %752 = vmatpush1.bf16.msra.mxu0 %v667
        %753 = vmatprep.subr.bf16.mxu0 0
        %754 = vmatpush1.bf16.msra.mxu0 %v670
        %755 = vmatprep.subr.bf16.mxu0 0
        %756 = vmatpush1.bf16.msra.mxu0 %v673
        %757 = vmatprep.subr.bf16.mxu0 0
        %758 = vmatpush1.bf16.msra.mxu0 0
        %759 = vmatprep.subr.bf16.mxu0 0
        %760 = vmatpush1.bf16.msra.mxu0 0
        %761 = vmatprep.subr.bf16.mxu0 0
        %762 = vmatpush1.bf16.msra.mxu0 0
        %763 = vmatprep.subr.bf16.mxu0 0
        %764 = vmatpush1.bf16.msra.mxu0 0
        %765 = vmatprep.subr.bf16.mxu0 0
        %766 = vmatpush1.bf16.msra.mxu0 0
        %767 = vmatprep.subr.bf16.mxu0 0
        %768 = vmatpush1.bf16.msra.mxu0 0
        %769 = vmatprep.subr.bf16.mxu0 0
        %770 = vmatpush1.bf16.msra.mxu0 0
        %771 = vmatprep.subr.bf16.mxu0 0
        %772 = vmatpush1.bf16.msra.mxu0 0
        %773 = vmatprep.mubr.bf16.mxu0 0
        %774 = vmatmul.mubr.bf16.gmra.mrb[0].mxu0 %v520
        %v775 = vpop.f32.mrb[0].mxu0
        %v776 = vadd.f32 %v566, %v775
        %v777 = vpop.f32.mrb[0].mxu0
        %v778 = vpop.f32.mrb[0].mxu0
        %v779 = vadd.f32 %v566, %v778
        %v780 = vpop.f32.mrb[0].mxu0
        %781 = vdwg.mxu0
        %v782 = vmul.f32 %v733, 0.17677669
        %v783 = vmul.f32 %v737, 0.17677669
        %v784 = vpack.c.bf16 %v783, %v782
        %v785 = vpack.c.bf16 %v739, %v735
        %v786 = vpack.c.bf16 %v779, %v776
        %vm787 = vcmask 261120
        %v789 = vsel %vm787, %v784, 0
        %v792 = vsel %vm787, %v785, 0
        %794 = vmatprep.subr.bf16.mxu0 0
        %795 = vmatpush1.bf16.xpose.msra.mxu0 %v792
        %796 = vmatprep.subr.bf16.mxu0 0
        %797 = vmatpush1.bf16.xpose.msra.mxu0 0
        %798 = vmatprep.subr.bf16.mxu0 0
        %799 = vmatpush1.bf16.xpose.msra.mxu0 0
        %800 = vmatprep.subr.bf16.mxu0 0
        %801 = vmatpush1.bf16.xpose.msra.mxu0 0
        %802 = vmatprep.subr.bf16.mxu0 0
        %803 = vmatpush1.bf16.xpose.msra.mxu0 0
        %804 = vmatprep.subr.bf16.mxu0 0
        %805 = vmatpush1.bf16.xpose.msra.mxu0 0
        %806 = vmatprep.subr.bf16.mxu0 0
        %807 = vmatpush1.bf16.xpose.msra.mxu0 0
        %808 = vmatprep.subr.bf16.mxu0 0
        %809 = vmatpush1.bf16.xpose.msra.mxu0 0
        %810 = vmatprep.subr.bf16.mxu0 0
        %811 = vmatpush1.bf16.xpose.msra.mxu0 0
        %812 = vmatprep.subr.bf16.mxu0 0
        %813 = vmatpush1.bf16.xpose.msra.mxu0 0
        %814 = vmatprep.subr.bf16.mxu0 0
        %815 = vmatpush1.bf16.xpose.msra.mxu0 0
        %816 = vmatprep.subr.bf16.mxu0 0
        %817 = vmatpush1.bf16.xpose.msra.mxu0 0
        %818 = vmatprep.subr.bf16.mxu0 0
        %819 = vmatpush1.bf16.xpose.msra.mxu0 0
        %820 = vmatprep.subr.bf16.mxu0 0
        %821 = vmatpush1.bf16.xpose.msra.mxu0 0
        %822 = vmatprep.subr.bf16.mxu0 0
        %823 = vmatpush1.bf16.xpose.msra.mxu0 0
        %824 = vmatprep.subr.bf16.mxu0 0
        %825 = vmatpush1.bf16.xpose.msra.mxu0 0
        %826 = vmatprep.mubr.bf16.mxu0 0
        %827 = vmatmul.mubr.bf16.gmra.mrb[0].mxu0 %v789
        %v828 = vpop.f32.mrb[0].mxu0
        %v829 = vadd.f32 0.0, %v828
        %v830 = vpop.f32.mrb[0].mxu0
        %v831 = vpop.f32.mrb[0].mxu0
        %v832 = vadd.f32 0.0, %v831
        %v833 = vpop.f32.mrb[0].mxu0
        %834 = vdwg.mxu0
        %vm835 = vcmask 130048
        %v836 = vsel %vm835, %v829, -inf
        %837 = vmax.xlane.f32.xlu0 %v836
        %v838 = vpop.xlane.xlu0 %837
        %v839 = vsel %vm835, %v832, -inf
        %840 = vmax.xlane.f32.xlu0 %v839
        %v841 = vpop.xlane.xlu0 %840
        %v842 = vsub.f32 %v829, %v838
        %v843 = vsub.f32 %v832, %v841
        %v844 = vmul.f32 %v842, 1.442695
        %v845 = vpow.pop %v844
        %v846 = vmul.f32 %v843, 1.442695
        %v847 = vpow.pop %v846
        %v848 = vsel %vm835, %v845, 0.0
        %849 = vadd.xlane.f32.xlu0 %v848
        %v850 = vpop.xlane.xlu0 %849
        %v851 = vsel %vm835, %v847, 0.0
        %852 = vadd.xlane.f32.xlu0 %v851
        %v853 = vpop.xlane.xlu0 %852
        %v854 = vrcp.pop %v850
        %v855 = vrcp.pop %v853
        %v856 = vmul.f32 %v845, %v854
        %v857 = vmul.f32 %v847, %v855
        %v858 = vpack.c.bf16 %v857, %v856
        %v860 = vsel %vm835, %v858, 0
        %862 = vmatprep.subr.bf16.mxu0 0
        %863 = vmatpush1.bf16.msra.mxu0 %v786
        %864 = vmatprep.subr.bf16.mxu0 0
        %865 = vmatpush1.bf16.msra.mxu0 0
        %866 = vmatprep.subr.bf16.mxu0 0
        %867 = vmatpush1.bf16.msra.mxu0 0
        %868 = vmatprep.subr.bf16.mxu0 0
        %869 = vmatpush1.bf16.msra.mxu0 0
        %870 = vmatprep.subr.bf16.mxu0 0
        %871 = vmatpush1.bf16.msra.mxu0 0
        %872 = vmatprep.subr.bf16.mxu0 0
        %873 = vmatpush1.bf16.msra.mxu0 0
        %874 = vmatprep.subr.bf16.mxu0 0
        %875 = vmatpush1.bf16.msra.mxu0 0
        %876 = vmatprep.subr.bf16.mxu0 0
        %877 = vmatpush1.bf16.msra.mxu0 0
        %878 = vmatprep.subr.bf16.mxu0 0
        %879 = vmatpush1.bf16.msra.mxu0 0
        %880 = vmatprep.subr.bf16.mxu0 0
        %881 = vmatpush1.bf16.msra.mxu0 0
        %882 = vmatprep.subr.bf16.mxu0 0
        %883 = vmatpush1.bf16.msra.mxu0 0
        %884 = vmatprep.subr.bf16.mxu0 0
        %885 = vmatpush1.bf16.msra.mxu0 0
        %886 = vmatprep.subr.bf16.mxu0 0
        %887 = vmatpush1.bf16.msra.mxu0 0
        %888 = vmatprep.subr.bf16.mxu0 0
        %889 = vmatpush1.bf16.msra.mxu0 0
        %890 = vmatprep.subr.bf16.mxu0 0
        %891 = vmatpush1.bf16.msra.mxu0 0
        %892 = vmatprep.subr.bf16.mxu0 0
        %893 = vmatpush1.bf16.msra.mxu0 0
        %894 = vmatprep.mubr.bf16.mxu0 0
        %895 = vmatmul.mubr.bf16.gmra.mrb[0].mxu0 %v860
        %v896 = vpop.f32.mrb[0].mxu0
        %v897 = vadd.f32 0.0, %v896
        %v898 = vpop.f32.mrb[0].mxu0
        %v899 = vpop.f32.mrb[0].mxu0
        %v900 = vadd.f32 0.0, %v899
        %v901 = vpop.f32.mrb[0].mxu0
        %902 = vdwg.mxu0
        %v903 = vpack.c.bf16 %v900, %v897
        %v904 = vld [vmem:[#allocation7] sm:$0xf]
        %v905 = vld [vmem:[#allocation7 + $0x4] sm:$0xf]
        %v906 = vld [vmem:[#allocation7 + $0x8] sm:$0xf]
        %v907 = vld [vmem:[#allocation7 + $0xc] sm:$0xf]
        %909 = vrot.lane.b32.xlu0 %v784, 96
        %v910 = vpop.permute.xlu0 %909
        %912 = vrot.lane.b32.xlu0 %v785, 96
        %v913 = vpop.permute.xlu0 %912
        %v915 = vsel %vm787, %v910, 0
        %v918 = vsel %vm787, %v913, 0
        %920 = vmatprep.subr.bf16.mxu0 0
        %921 = vmatpush1.bf16.xpose.msra.mxu0 %v918
        %922 = vmatprep.subr.bf16.mxu0 0
        %923 = vmatpush1.bf16.xpose.msra.mxu0 0
        %924 = vmatprep.subr.bf16.mxu0 0
        %925 = vmatpush1.bf16.xpose.msra.mxu0 0
        %926 = vmatprep.subr.bf16.mxu0 0
        %927 = vmatpush1.bf16.xpose.msra.mxu0 0
        %928 = vmatprep.subr.bf16.mxu0 0
        %929 = vmatpush1.bf16.xpose.msra.mxu0 0
        %930 = vmatprep.subr.bf16.mxu0 0
        %931 = vmatpush1.bf16.xpose.msra.mxu0 0
        %932 = vmatprep.subr.bf16.mxu0 0
        %933 = vmatpush1.bf16.xpose.msra.mxu0 0
        %934 = vmatprep.subr.bf16.mxu0 0
        %935 = vmatpush1.bf16.xpose.msra.mxu0 0
        %936 = vmatprep.subr.bf16.mxu0 0
        %937 = vmatpush1.bf16.xpose.msra.mxu0 0
        %938 = vmatprep.subr.bf16.mxu0 0
        %939 = vmatpush1.bf16.xpose.msra.mxu0 0
        %940 = vmatprep.subr.bf16.mxu0 0
        %941 = vmatpush1.bf16.xpose.msra.mxu0 0
        %942 = vmatprep.subr.bf16.mxu0 0
        %943 = vmatpush1.bf16.xpose.msra.mxu0 0
        %944 = vmatprep.subr.bf16.mxu0 0
        %945 = vmatpush1.bf16.xpose.msra.mxu0 0
        %946 = vmatprep.subr.bf16.mxu0 0
        %947 = vmatpush1.bf16.xpose.msra.mxu0 0
        %948 = vmatprep.subr.bf16.mxu0 0
        %949 = vmatpush1.bf16.xpose.msra.mxu0 0
        %950 = vmatprep.subr.bf16.mxu0 0
        %951 = vmatpush1.bf16.xpose.msra.mxu0 0
        %952 = vmatprep.mubr.bf16.mxu0 0
        %953 = vmatmul.mubr.bf16.gmra.mrb[0].mxu0 %v915
        %v954 = vpop.f32.mrb[0].mxu0
        %v955 = vadd.f32 0.0, %v954
        %v956 = vpop.f32.mrb[0].mxu0
        %v957 = vpop.f32.mrb[0].mxu0
        %v958 = vadd.f32 0.0, %v957
        %v959 = vpop.f32.mrb[0].mxu0
        %960 = vdwg.mxu0
        %v961 = vsel %vm835, %v955, -inf
        %962 = vmax.xlane.f32.xlu0 %v961
        %v963 = vpop.xlane.xlu0 %962
        %v964 = vsel %vm835, %v958, -inf
        %965 = vmax.xlane.f32.xlu0 %v964
        %v966 = vpop.xlane.xlu0 %965
        %v967 = vsub.f32 %v955, %v963
        %v968 = vsub.f32 %v958, %v966
        %v969 = vmul.f32 %v967, 1.442695
        %v970 = vpow.pop %v969
        %v971 = vmul.f32 %v968, 1.442695
        %v972 = vpow.pop %v971
        %v973 = vsel %vm835, %v970, 0.0
        %974 = vadd.xlane.f32.xlu0 %v973
        %v975 = vpop.xlane.xlu0 %974
        %v976 = vsel %vm835, %v972, 0.0
        %977 = vadd.xlane.f32.xlu0 %v976
        %v978 = vpop.xlane.xlu0 %977
        %v979 = vrcp.pop %v975
        %v980 = vrcp.pop %v978
        %v981 = vmul.f32 %v970, %v979
        %v982 = vmul.f32 %v972, %v980
        %v983 = vpack.c.bf16 %v982, %v981
        %985 = vrot.lane.b32.xlu0 %v786, 96
        %v986 = vpop.permute.xlu0 %985
        %v989 = vsel %vm835, %v983, 0
        %991 = vmatprep.subr.bf16.mxu0 0
        %992 = vmatpush1.bf16.msra.mxu0 %v986
        %993 = vmatprep.subr.bf16.mxu0 0
        %994 = vmatpush1.bf16.msra.mxu0 0
        %995 = vmatprep.subr.bf16.mxu0 0
        %996 = vmatpush1.bf16.msra.mxu0 0
        %997 = vmatprep.subr.bf16.mxu0 0
        %998 = vmatpush1.bf16.msra.mxu0 0
        %999 = vmatprep.subr.bf16.mxu0 0
        %1000 = vmatpush1.bf16.msra.mxu0 0
        %1001 = vmatprep.subr.bf16.mxu0 0
        %1002 = vmatpush1.bf16.msra.mxu0 0
        %1003 = vmatprep.subr.bf16.mxu0 0
        %1004 = vmatpush1.bf16.msra.mxu0 0
        %1005 = vmatprep.subr.bf16.mxu0 0
        %1006 = vmatpush1.bf16.msra.mxu0 0
        %1007 = vmatprep.subr.bf16.mxu0 0
        %1008 = vmatpush1.bf16.msra.mxu0 0
        %1009 = vmatprep.subr.bf16.mxu0 0
        %1010 = vmatpush1.bf16.msra.mxu0 0
        %1011 = vmatprep.subr.bf16.mxu0 0
        %1012 = vmatpush1.bf16.msra.mxu0 0
        %1013 = vmatprep.subr.bf16.mxu0 0
        %1014 = vmatpush1.bf16.msra.mxu0 0
        %1015 = vmatprep.subr.bf16.mxu0 0
        %1016 = vmatpush1.bf16.msra.mxu0 0
        %1017 = vmatprep.subr.bf16.mxu0 0
        %1018 = vmatpush1.bf16.msra.mxu0 0
        %1019 = vmatprep.subr.bf16.mxu0 0
        %1020 = vmatpush1.bf16.msra.mxu0 0
        %1021 = vmatprep.subr.bf16.mxu0 0
        %1022 = vmatpush1.bf16.msra.mxu0 0
        %1023 = vmatprep.mubr.bf16.mxu0 0
        %1024 = vmatmul.mubr.bf16.gmra.mrb[0].mxu0 %v989
        %v1025 = vpop.f32.mrb[0].mxu0
        %v1026 = vadd.f32 0.0, %v1025
        %v1027 = vpop.f32.mrb[0].mxu0
        %v1028 = vpop.f32.mrb[0].mxu0
        %v1029 = vadd.f32 0.0, %v1028
        %v1030 = vpop.f32.mrb[0].mxu0
        %1031 = vdwg.mxu0
        %v1032 = vpack.c.bf16 %v1029, %v1026
        %v1033 = vld [vmem:[#allocation7 + $0x10] sm:$0xf]
        %v1034 = vld [vmem:[#allocation7 + $0x14] sm:$0xf]
        %v1035 = vld [vmem:[#allocation7 + $0x18] sm:$0xf]
        %v1036 = vld [vmem:[#allocation7 + $0x1c] sm:$0xf]
        %v1041 = vunpack.c.l.b16 %v1033
        %v1042 = vunpack.c.l.b16 %v1034
        %v1043 = vunpack.c.l.b16 %v1035
        %v1044 = vunpack.c.l.b16 %v1036
        %v1045 = vpack.c.b16 %v1042, %v1041
        %v1046 = vpack.c.b16 %v1044, %v1043
        %v1050 = vsel %vm787, %v1032, 0
        %1052 = vmatprep.subr.bf16.mxu0 0
        %1053 = vmatpush1.bf16.msra.mxu0 %v1045
        %1054 = vmatprep.subr.bf16.mxu0 0
        %1055 = vmatpush1.bf16.msra.mxu0 %v1046
        %1056 = vmatprep.subr.bf16.mxu0 0
        %1057 = vmatpush1.bf16.msra.mxu0 0
        %1058 = vmatprep.subr.bf16.mxu0 0
        %1059 = vmatpush1.bf16.msra.mxu0 0
        %1060 = vmatprep.subr.bf16.mxu0 0
        %1061 = vmatpush1.bf16.msra.mxu0 0
        %1062 = vmatprep.subr.bf16.mxu0 0
        %1063 = vmatpush1.bf16.msra.mxu0 0
        %1064 = vmatprep.subr.bf16.mxu0 0
        %1065 = vmatpush1.bf16.msra.mxu0 0
        %1066 = vmatprep.subr.bf16.mxu0 0
        %1067 = vmatpush1.bf16.msra.mxu0 0
        %1068 = vmatprep.subr.bf16.mxu0 0
        %1069 = vmatpush1.bf16.msra.mxu0 0
        %1070 = vmatprep.subr.bf16.mxu0 0
        %1071 = vmatpush1.bf16.msra.mxu0 0
        %1072 = vmatprep.subr.bf16.mxu0 0
        %1073 = vmatpush1.bf16.msra.mxu0 0
        %1074 = vmatprep.subr.bf16.mxu0 0
        %1075 = vmatpush1.bf16.msra.mxu0 0
        %1076 = vmatprep.subr.bf16.mxu0 0
        %1077 = vmatpush1.bf16.msra.mxu0 0
        %1078 = vmatprep.subr.bf16.mxu0 0
        %1079 = vmatpush1.bf16.msra.mxu0 0
        %1080 = vmatprep.subr.bf16.mxu0 0
        %1081 = vmatpush1.bf16.msra.mxu0 0
        %1082 = vmatprep.subr.bf16.mxu0 0
        %1083 = vmatpush1.bf16.msra.mxu0 0
        %1084 = vmatprep.mubr.bf16.mxu0 0
        %1085 = vmatmul.mubr.bf16.gmra.mrb[0].mxu0 %v1050
        %v1086 = vpop.f32.mrb[0].mxu0
        %v1087 = vadd.f32 0.0, %v1086
        %v1088 = vpop.f32.mrb[0].mxu0
        %v1089 = vpop.f32.mrb[0].mxu0
        %v1090 = vadd.f32 0.0, %v1089
        %v1091 = vpop.f32.mrb[0].mxu0
        %1092 = vdwg.mxu0
        %v1097 = vunpack.c.l.b16 %v904
        %v1098 = vunpack.c.l.b16 %v905
        %v1099 = vunpack.c.l.b16 %v906
        %v1100 = vunpack.c.l.b16 %v907
        %v1101 = vpack.c.b16 %v1098, %v1097
        %v1102 = vpack.c.b16 %v1100, %v1099
        %v1106 = vsel %vm787, %v903, 0
        %1108 = vmatprep.subr.bf16.mxu0 0
        %1109 = vmatpush1.bf16.msra.mxu0 %v1101
        %1110 = vmatprep.subr.bf16.mxu0 0
        %1111 = vmatpush1.bf16.msra.mxu0 %v1102
        %1112 = vmatprep.subr.bf16.mxu0 0
        %1113 = vmatpush1.bf16.msra.mxu0 0
        %1114 = vmatprep.subr.bf16.mxu0 0
        %1115 = vmatpush1.bf16.msra.mxu0 0
        %1116 = vmatprep.subr.bf16.mxu0 0
        %1117 = vmatpush1.bf16.msra.mxu0 0
        %1118 = vmatprep.subr.bf16.mxu0 0
        %1119 = vmatpush1.bf16.msra.mxu0 0
        %1120 = vmatprep.subr.bf16.mxu0 0
        %1121 = vmatpush1.bf16.msra.mxu0 0
        %1122 = vmatprep.subr.bf16.mxu0 0
        %1123 = vmatpush1.bf16.msra.mxu0 0
        %1124 = vmatprep.subr.bf16.mxu0 0
        %1125 = vmatpush1.bf16.msra.mxu0 0
        %1126 = vmatprep.subr.bf16.mxu0 0
        %1127 = vmatpush1.bf16.msra.mxu0 0
        %1128 = vmatprep.subr.bf16.mxu0 0
        %1129 = vmatpush1.bf16.msra.mxu0 0
        %1130 = vmatprep.subr.bf16.mxu0 0
        %1131 = vmatpush1.bf16.msra.mxu0 0
        %1132 = vmatprep.subr.bf16.mxu0 0
        %1133 = vmatpush1.bf16.msra.mxu0 0
        %1134 = vmatprep.subr.bf16.mxu0 0
        %1135 = vmatpush1.bf16.msra.mxu0 0
        %1136 = vmatprep.subr.bf16.mxu0 0
        %1137 = vmatpush1.bf16.msra.mxu0 0
        %1138 = vmatprep.subr.bf16.mxu0 0
        %1139 = vmatpush1.bf16.msra.mxu0 0
        %1140 = vmatprep.mubr.bf16.mxu0 0
        %1141 = vmatmul.mubr.bf16.gmra.mrb[0].mxu0 %v1106
        %v1142 = vpop.f32.mrb[0].mxu0
        %v1143 = vadd.f32 %v1087, %v1142
        %v1144 = vpop.f32.mrb[0].mxu0
        %v1145 = vpop.f32.mrb[0].mxu0
        %v1146 = vadd.f32 %v1090, %v1145
        %v1147 = vpop.f32.mrb[0].mxu0
        %1148 = vdwg.mxu0
        %1149 = vrot.lane.b32.xlu0 %v784, 64
        %v1150 = vpop.permute.xlu0 %1149
        %1151 = vrot.lane.b32.xlu0 %v785, 64
        %v1152 = vpop.permute.xlu0 %1151
        %v1154 = vsel %vm787, %v1150, 0
        %v1157 = vsel %vm787, %v1152, 0
        %1159 = vmatprep.subr.bf16.mxu0 0
        %1160 = vmatpush1.bf16.xpose.msra.mxu0 %v1157
        %1161 = vmatprep.subr.bf16.mxu0 0
        %1162 = vmatpush1.bf16.xpose.msra.mxu0 0
        %1163 = vmatprep.subr.bf16.mxu0 0
        %1164 = vmatpush1.bf16.xpose.msra.mxu0 0
        %1165 = vmatprep.subr.bf16.mxu0 0
        %1166 = vmatpush1.bf16.xpose.msra.mxu0 0
        %1167 = vmatprep.subr.bf16.mxu0 0
        %1168 = vmatpush1.bf16.xpose.msra.mxu0 0
        %1169 = vmatprep.subr.bf16.mxu0 0
        %1170 = vmatpush1.bf16.xpose.msra.mxu0 0
        %1171 = vmatprep.subr.bf16.mxu0 0
        %1172 = vmatpush1.bf16.xpose.msra.mxu0 0
        %1173 = vmatprep.subr.bf16.mxu0 0
        %1174 = vmatpush1.bf16.xpose.msra.mxu0 0
        %1175 = vmatprep.subr.bf16.mxu0 0
        %1176 = vmatpush1.bf16.xpose.msra.mxu0 0
        %1177 = vmatprep.subr.bf16.mxu0 0
        %1178 = vmatpush1.bf16.xpose.msra.mxu0 0
        %1179 = vmatprep.subr.bf16.mxu0 0
        %1180 = vmatpush1.bf16.xpose.msra.mxu0 0
        %1181 = vmatprep.subr.bf16.mxu0 0
        %1182 = vmatpush1.bf16.xpose.msra.mxu0 0
        %1183 = vmatprep.subr.bf16.mxu0 0
        %1184 = vmatpush1.bf16.xpose.msra.mxu0 0
        %1185 = vmatprep.subr.bf16.mxu0 0
        %1186 = vmatpush1.bf16.xpose.msra.mxu0 0
        %1187 = vmatprep.subr.bf16.mxu0 0
        %1188 = vmatpush1.bf16.xpose.msra.mxu0 0
        %1189 = vmatprep.subr.bf16.mxu0 0
        %1190 = vmatpush1.bf16.xpose.msra.mxu0 0
        %1191 = vmatprep.mubr.bf16.mxu0 0
        %1192 = vmatmul.mubr.bf16.gmra.mrb[0].mxu0 %v1154
        %v1193 = vpop.f32.mrb[0].mxu0
        %v1194 = vadd.f32 0.0, %v1193
        %v1195 = vpop.f32.mrb[0].mxu0
        %v1196 = vpop.f32.mrb[0].mxu0
        %v1197 = vadd.f32 0.0, %v1196
        %v1198 = vpop.f32.mrb[0].mxu0
        %1199 = vdwg.mxu0
        %v1200 = vsel %vm835, %v1194, -inf
        %1201 = vmax.xlane.f32.xlu0 %v1200
        %v1202 = vpop.xlane.xlu0 %1201
        %v1203 = vsel %vm835, %v1197, -inf
        %1204 = vmax.xlane.f32.xlu0 %v1203
        %v1205 = vpop.xlane.xlu0 %1204
        %v1206 = vsub.f32 %v1194, %v1202
        %v1207 = vsub.f32 %v1197, %v1205
        %v1208 = vmul.f32 %v1206, 1.442695
        %v1209 = vpow.pop %v1208
        %v1210 = vmul.f32 %v1207, 1.442695
        %v1211 = vpow.pop %v1210
        %v1212 = vsel %vm835, %v1209, 0.0
        %1213 = vadd.xlane.f32.xlu0 %v1212
        %v1214 = vpop.xlane.xlu0 %1213
        %v1215 = vsel %vm835, %v1211, 0.0
        %1216 = vadd.xlane.f32.xlu0 %v1215
        %v1217 = vpop.xlane.xlu0 %1216
        %v1218 = vrcp.pop %v1214
        %v1219 = vrcp.pop %v1217
        %v1220 = vmul.f32 %v1209, %v1218
        %v1221 = vmul.f32 %v1211, %v1219
        %v1222 = vpack.c.bf16 %v1221, %v1220
        %1223 = vrot.lane.b32.xlu0 %v786, 64
        %v1224 = vpop.permute.xlu0 %1223
        %v1227 = vsel %vm835, %v1222, 0
        %1229 = vmatprep.subr.bf16.mxu0 0
        %1230 = vmatpush1.bf16.msra.mxu0 %v1224
        %1231 = vmatprep.subr.bf16.mxu0 0
        %1232 = vmatpush1.bf16.msra.mxu0 0
        %1233 = vmatprep.subr.bf16.mxu0 0
        %1234 = vmatpush1.bf16.msra.mxu0 0
        %1235 = vmatprep.subr.bf16.mxu0 0
        %1236 = vmatpush1.bf16.msra.mxu0 0
        %1237 = vmatprep.subr.bf16.mxu0 0
        %1238 = vmatpush1.bf16.msra.mxu0 0
        %1239 = vmatprep.subr.bf16.mxu0 0
        %1240 = vmatpush1.bf16.msra.mxu0 0
        %1241 = vmatprep.subr.bf16.mxu0 0
        %1242 = vmatpush1.bf16.msra.mxu0 0
        %1243 = vmatprep.subr.bf16.mxu0 0
        %1244 = vmatpush1.bf16.msra.mxu0 0
        %1245 = vmatprep.subr.bf16.mxu0 0
        %1246 = vmatpush1.bf16.msra.mxu0 0
        %1247 = vmatprep.subr.bf16.mxu0 0
        %1248 = vmatpush1.bf16.msra.mxu0 0
        %1249 = vmatprep.subr.bf16.mxu0 0
        %1250 = vmatpush1.bf16.msra.mxu0 0
        %1251 = vmatprep.subr.bf16.mxu0 0
        %1252 = vmatpush1.bf16.msra.mxu0 0
        %1253 = vmatprep.subr.bf16.mxu0 0
        %1254 = vmatpush1.bf16.msra.mxu0 0
        %1255 = vmatprep.subr.bf16.mxu0 0
        %1256 = vmatpush1.bf16.msra.mxu0 0
        %1257 = vmatprep.subr.bf16.mxu0 0
        %1258 = vmatpush1.bf16.msra.mxu0 0
        %1259 = vmatprep.subr.bf16.mxu0 0
        %1260 = vmatpush1.bf16.msra.mxu0 0
        %1261 = vmatprep.mubr.bf16.mxu0 0
        %1262 = vmatmul.mubr.bf16.gmra.mrb[0].mxu0 %v1227
        %v1263 = vpop.f32.mrb[0].mxu0
        %v1264 = vadd.f32 0.0, %v1263
        %v1265 = vpop.f32.mrb[0].mxu0
        %v1266 = vpop.f32.mrb[0].mxu0
        %v1267 = vadd.f32 0.0, %v1266
        %v1268 = vpop.f32.mrb[0].mxu0
        %1269 = vdwg.mxu0
        %v1270 = vpack.c.bf16 %v1267, %v1264
        %v1271 = vld [vmem:[#allocation7 + $0x20] sm:$0xf]
        %v1272 = vld [vmem:[#allocation7 + $0x24] sm:$0xf]
        %v1273 = vld [vmem:[#allocation7 + $0x28] sm:$0xf]
        %v1274 = vld [vmem:[#allocation7 + $0x2c] sm:$0xf]
        %v1279 = vunpack.c.l.b16 %v1271
        %v1280 = vunpack.c.l.b16 %v1272
        %v1281 = vunpack.c.l.b16 %v1273
        %v1282 = vunpack.c.l.b16 %v1274
        %v1283 = vpack.c.b16 %v1280, %v1279
        %v1284 = vpack.c.b16 %v1282, %v1281
        %v1288 = vsel %vm787, %v1270, 0
        %1290 = vmatprep.subr.bf16.mxu0 0
        %1291 = vmatpush1.bf16.msra.mxu0 %v1283
        %1292 = vmatprep.subr.bf16.mxu0 0
        %1293 = vmatpush1.bf16.msra.mxu0 %v1284
        %1294 = vmatprep.subr.bf16.mxu0 0
        %1295 = vmatpush1.bf16.msra.mxu0 0
        %1296 = vmatprep.subr.bf16.mxu0 0
        %1297 = vmatpush1.bf16.msra.mxu0 0
        %1298 = vmatprep.subr.bf16.mxu0 0
        %1299 = vmatpush1.bf16.msra.mxu0 0
        %1300 = vmatprep.subr.bf16.mxu0 0
        %1301 = vmatpush1.bf16.msra.mxu0 0
        %1302 = vmatprep.subr.bf16.mxu0 0
        %1303 = vmatpush1.bf16.msra.mxu0 0
        %1304 = vmatprep.subr.bf16.mxu0 0
        %1305 = vmatpush1.bf16.msra.mxu0 0
        %1306 = vmatprep.subr.bf16.mxu0 0
        %1307 = vmatpush1.bf16.msra.mxu0 0
        %1308 = vmatprep.subr.bf16.mxu0 0
        %1309 = vmatpush1.bf16.msra.mxu0 0
        %1310 = vmatprep.subr.bf16.mxu0 0
        %1311 = vmatpush1.bf16.msra.mxu0 0
        %1312 = vmatprep.subr.bf16.mxu0 0
        %1313 = vmatpush1.bf16.msra.mxu0 0
        %1314 = vmatprep.subr.bf16.mxu0 0
        %1315 = vmatpush1.bf16.msra.mxu0 0
        %1316 = vmatprep.subr.bf16.mxu0 0
        %1317 = vmatpush1.bf16.msra.mxu0 0
        %1318 = vmatprep.subr.bf16.mxu0 0
        %1319 = vmatpush1.bf16.msra.mxu0 0
        %1320 = vmatprep.subr.bf16.mxu0 0
        %1321 = vmatpush1.bf16.msra.mxu0 0
        %1322 = vmatprep.mubr.bf16.mxu0 0
        %1323 = vmatmul.mubr.bf16.gmra.mrb[0].mxu0 %v1288
        %v1324 = vpop.f32.mrb[0].mxu0
        %v1325 = vadd.f32 0.0, %v1324
        %v1326 = vpop.f32.mrb[0].mxu0
        %v1327 = vpop.f32.mrb[0].mxu0
        %v1328 = vadd.f32 0.0, %v1327
        %v1329 = vpop.f32.mrb[0].mxu0
        %1330 = vdwg.mxu0
        %v1331 = vadd.f32 %v1143, %v1325
        %v1332 = vadd.f32 %v1146, %v1328
        %1333 = vrot.lane.b32.xlu0 %v784, 32
        %v1334 = vpop.permute.xlu0 %1333
        %1335 = vrot.lane.b32.xlu0 %v785, 32
        %v1336 = vpop.permute.xlu0 %1335
        %v1338 = vsel %vm787, %v1334, 0
        %v1341 = vsel %vm787, %v1336, 0
        %1343 = vmatprep.subr.bf16.mxu0 0
        %1344 = vmatpush1.bf16.xpose.msra.mxu0 %v1341
        %1345 = vmatprep.subr.bf16.mxu0 0
        %1346 = vmatpush1.bf16.xpose.msra.mxu0 0
        %1347 = vmatprep.subr.bf16.mxu0 0
        %1348 = vmatpush1.bf16.xpose.msra.mxu0 0
        %1349 = vmatprep.subr.bf16.mxu0 0
        %1350 = vmatpush1.bf16.xpose.msra.mxu0 0
        %1351 = vmatprep.subr.bf16.mxu0 0
        %1352 = vmatpush1.bf16.xpose.msra.mxu0 0
        %1353 = vmatprep.subr.bf16.mxu0 0
        %1354 = vmatpush1.bf16.xpose.msra.mxu0 0
        %1355 = vmatprep.subr.bf16.mxu0 0
        %1356 = vmatpush1.bf16.xpose.msra.mxu0 0
        %1357 = vmatprep.subr.bf16.mxu0 0
        %1358 = vmatpush1.bf16.xpose.msra.mxu0 0
        %1359 = vmatprep.subr.bf16.mxu0 0
        %1360 = vmatpush1.bf16.xpose.msra.mxu0 0
        %1361 = vmatprep.subr.bf16.mxu0 0
        %1362 = vmatpush1.bf16.xpose.msra.mxu0 0
        %1363 = vmatprep.subr.bf16.mxu0 0
        %1364 = vmatpush1.bf16.xpose.msra.mxu0 0
        %1365 = vmatprep.subr.bf16.mxu0 0
        %1366 = vmatpush1.bf16.xpose.msra.mxu0 0
        %1367 = vmatprep.subr.bf16.mxu0 0
        %1368 = vmatpush1.bf16.xpose.msra.mxu0 0
        %1369 = vmatprep.subr.bf16.mxu0 0
        %1370 = vmatpush1.bf16.xpose.msra.mxu0 0
        %1371 = vmatprep.subr.bf16.mxu0 0
        %1372 = vmatpush1.bf16.xpose.msra.mxu0 0
        %1373 = vmatprep.subr.bf16.mxu0 0
        %1374 = vmatpush1.bf16.xpose.msra.mxu0 0
        %1375 = vmatprep.mubr.bf16.mxu0 0
        %1376 = vmatmul.mubr.bf16.gmra.mrb[0].mxu0 %v1338
        %v1377 = vpop.f32.mrb[0].mxu0
        %v1378 = vadd.f32 0.0, %v1377
        %v1379 = vpop.f32.mrb[0].mxu0
        %v1380 = vpop.f32.mrb[0].mxu0
        %v1381 = vadd.f32 0.0, %v1380
        %v1382 = vpop.f32.mrb[0].mxu0
        %1383 = vdwg.mxu0
        %v1384 = vsel %vm835, %v1378, -inf
        %1385 = vmax.xlane.f32.xlu0 %v1384
        %v1386 = vpop.xlane.xlu0 %1385
        %v1387 = vsel %vm835, %v1381, -inf
        %1388 = vmax.xlane.f32.xlu0 %v1387
        %v1389 = vpop.xlane.xlu0 %1388
        %v1390 = vsub.f32 %v1378, %v1386
        %v1391 = vsub.f32 %v1381, %v1389
        %v1392 = vmul.f32 %v1390, 1.442695
        %v1393 = vpow.pop %v1392
        %v1394 = vmul.f32 %v1391, 1.442695
        %v1395 = vpow.pop %v1394
        %v1396 = vsel %vm835, %v1393, 0.0
        %1397 = vadd.xlane.f32.xlu0 %v1396
        %v1398 = vpop.xlane.xlu0 %1397
        %v1399 = vsel %vm835, %v1395, 0.0
        %1400 = vadd.xlane.f32.xlu0 %v1399
        %v1401 = vpop.xlane.xlu0 %1400
        %v1402 = vrcp.pop %v1398
        %v1403 = vrcp.pop %v1401
        %v1404 = vmul.f32 %v1393, %v1402
        %v1405 = vmul.f32 %v1395, %v1403
        %v1406 = vpack.c.bf16 %v1405, %v1404
        %1407 = vrot.lane.b32.xlu0 %v786, 32
        %v1408 = vpop.permute.xlu0 %1407
        %v1411 = vsel %vm835, %v1406, 0
        %1413 = vmatprep.subr.bf16.mxu0 0
        %1414 = vmatpush1.bf16.msra.mxu0 %v1408
        %1415 = vmatprep.subr.bf16.mxu0 0
        %1416 = vmatpush1.bf16.msra.mxu0 0
        %1417 = vmatprep.subr.bf16.mxu0 0
        %1418 = vmatpush1.bf16.msra.mxu0 0
        %1419 = vmatprep.subr.bf16.mxu0 0
        %1420 = vmatpush1.bf16.msra.mxu0 0
        %1421 = vmatprep.subr.bf16.mxu0 0
        %1422 = vmatpush1.bf16.msra.mxu0 0
        %1423 = vmatprep.subr.bf16.mxu0 0
        %1424 = vmatpush1.bf16.msra.mxu0 0
        %1425 = vmatprep.subr.bf16.mxu0 0
        %1426 = vmatpush1.bf16.msra.mxu0 0
        %1427 = vmatprep.subr.bf16.mxu0 0
        %1428 = vmatpush1.bf16.msra.mxu0 0
        %1429 = vmatprep.subr.bf16.mxu0 0
        %1430 = vmatpush1.bf16.msra.mxu0 0
        %1431 = vmatprep.subr.bf16.mxu0 0
        %1432 = vmatpush1.bf16.msra.mxu0 0
        %1433 = vmatprep.subr.bf16.mxu0 0
        %1434 = vmatpush1.bf16.msra.mxu0 0
        %1435 = vmatprep.subr.bf16.mxu0 0
        %1436 = vmatpush1.bf16.msra.mxu0 0
        %1437 = vmatprep.subr.bf16.mxu0 0
        %1438 = vmatpush1.bf16.msra.mxu0 0
        %1439 = vmatprep.subr.bf16.mxu0 0
        %1440 = vmatpush1.bf16.msra.mxu0 0
        %1441 = vmatprep.subr.bf16.mxu0 0
        %1442 = vmatpush1.bf16.msra.mxu0 0
        %1443 = vmatprep.subr.bf16.mxu0 0
        %1444 = vmatpush1.bf16.msra.mxu0 0
        %1445 = vmatprep.mubr.bf16.mxu0 0
        %1446 = vmatmul.mubr.bf16.gmra.mrb[0].mxu0 %v1411
        %v1447 = vpop.f32.mrb[0].mxu0
        %v1448 = vadd.f32 0.0, %v1447
        %v1449 = vpop.f32.mrb[0].mxu0
        %v1450 = vpop.f32.mrb[0].mxu0
        %v1451 = vadd.f32 0.0, %v1450
        %v1452 = vpop.f32.mrb[0].mxu0
        %1453 = vdwg.mxu0
        %v1454 = vpack.c.bf16 %v1451, %v1448
        %v1455 = vld [vmem:[#allocation7 + $0x30] sm:$0xf]
        %v1456 = vld [vmem:[#allocation7 + $0x34] sm:$0xf]
        %v1457 = vld [vmem:[#allocation7 + $0x38] sm:$0xf]
        %v1458 = vld [vmem:[#allocation7 + $0x3c] sm:$0xf]
        %v1463 = vunpack.c.l.b16 %v1455
        %v1464 = vunpack.c.l.b16 %v1456
        %v1465 = vunpack.c.l.b16 %v1457
        %v1466 = vunpack.c.l.b16 %v1458
        %v1467 = vpack.c.b16 %v1464, %v1463
        %v1468 = vpack.c.b16 %v1466, %v1465
        %v1472 = vsel %vm787, %v1454, 0
        %1474 = vmatprep.subr.bf16.mxu0 0
        %1475 = vmatpush1.bf16.msra.mxu0 %v1467
        %1476 = vmatprep.subr.bf16.mxu0 0
        %1477 = vmatpush1.bf16.msra.mxu0 %v1468
        %1478 = vmatprep.subr.bf16.mxu0 0
        %1479 = vmatpush1.bf16.msra.mxu0 0
        %1480 = vmatprep.subr.bf16.mxu0 0
        %1481 = vmatpush1.bf16.msra.mxu0 0
        %1482 = vmatprep.subr.bf16.mxu0 0
        %1483 = vmatpush1.bf16.msra.mxu0 0
        %1484 = vmatprep.subr.bf16.mxu0 0
        %1485 = vmatpush1.bf16.msra.mxu0 0
        %1486 = vmatprep.subr.bf16.mxu0 0
        %1487 = vmatpush1.bf16.msra.mxu0 0
        %1488 = vmatprep.subr.bf16.mxu0 0
        %1489 = vmatpush1.bf16.msra.mxu0 0
        %1490 = vmatprep.subr.bf16.mxu0 0
        %1491 = vmatpush1.bf16.msra.mxu0 0
        %1492 = vmatprep.subr.bf16.mxu0 0
        %1493 = vmatpush1.bf16.msra.mxu0 0
        %1494 = vmatprep.subr.bf16.mxu0 0
        %1495 = vmatpush1.bf16.msra.mxu0 0
        %1496 = vmatprep.subr.bf16.mxu0 0
        %1497 = vmatpush1.bf16.msra.mxu0 0
        %1498 = vmatprep.subr.bf16.mxu0 0
        %1499 = vmatpush1.bf16.msra.mxu0 0
        %1500 = vmatprep.subr.bf16.mxu0 0
        %1501 = vmatpush1.bf16.msra.mxu0 0
        %1502 = vmatprep.subr.bf16.mxu0 0
        %1503 = vmatpush1.bf16.msra.mxu0 0
        %1504 = vmatprep.subr.bf16.mxu0 0
        %1505 = vmatpush1.bf16.msra.mxu0 0
        %1506 = vmatprep.mubr.bf16.mxu0 0
        %1507 = vmatmul.mubr.bf16.gmra.mrb[0].mxu0 %v1472
        %v1508 = vpop.f32.mrb[0].mxu0
        %v1509 = vadd.f32 0.0, %v1508
        %v1510 = vpop.f32.mrb[0].mxu0
        %v1511 = vpop.f32.mrb[0].mxu0
        %v1512 = vadd.f32 0.0, %v1511
        %v1513 = vpop.f32.mrb[0].mxu0
        %1514 = vdwg.mxu0
        %v1515 = vadd.f32 %v1331, %v1509
        %v1516 = vadd.f32 %v1332, %v1512
        %v1517 = vld [vmem:[%s4] sm:$0x1]
        %v1519 = vlaneseq
        %v1520 = vshrl.u32 %v1519, 7
        %v1521 = vsub.s32 0, %v1520
        %v1522 = vrot.slane %v1517, %v1521
        %v1524 = vadd.f32 %v1515, %v1522
        %v1525 = vadd.f32 %v1516, %v1522
        %v1526 = vadd.f32 %v518, %v1524
        %v1527 = vadd.f32 %v519, %v1525
        %v1528 = vld [vmem:[%s9] sm:$0x1]
        %v1529 = vld [vmem:[%s10] sm:$0x1]
        %1530 = vadd.xlane.f32.xlu0 %v1526
        %v1531 = vpop.xlane.xlu0 %1530
        %1532 = vadd.xlane.f32.xlu0 %v1527
        %v1533 = vpop.xlane.xlu0 %1532
        %v1534 = vrcp.pop 128.0
        %v1535 = vmul.f32 %v1531, %v1534
        %v1536 = vmul.f32 %v1533, %v1534
        %v1537 = vsub.f32 %v1526, %v1535
        %v1538 = vsub.f32 %v1527, %v1536
        %v1539 = vmul.f32 %v1537, %v1537
        %v1540 = vmul.f32 %v1538, %v1538
        %1541 = vadd.xlane.f32.xlu0 %v1539
        %v1542 = vpop.xlane.xlu0 %1541
        %1543 = vadd.xlane.f32.xlu0 %v1540
        %v1544 = vpop.xlane.xlu0 %1543
        %v1545 = vmul.f32 %v1542, %v1534
        %v1546 = vmul.f32 %v1544, %v1534
        %v1547 = vadd.f32 %v1545, 1e-05
        %v1548 = vadd.f32 %v1546, 1e-05
        %v1549 = vrsqrt.pop %v1547
        %v1550 = vrsqrt.pop %v1548
        %v1551 = vmul.f32 %v1537, %v1549
        %v1552 = vmul.f32 %v1538, %v1550
        %v1554 = vlaneseq
        %v1555 = vshrl.u32 %v1554, 7
        %v1556 = vsub.s32 0, %v1555
        %v1557 = vrot.slane %v1528, %v1556
        %v1559 = vmul.f32 %v1551, %v1557
        %v1560 = vmul.f32 %v1552, %v1557
        %v1562 = vlaneseq
        %v1563 = vshrl.u32 %v1562, 7
        %v1564 = vsub.s32 0, %v1563
        %v1565 = vrot.slane %v1529, %v1564
        %v1567 = vadd.f32 %v1559, %v1565
        %v1568 = vadd.f32 %v1560, %v1565
        %v1569 = vpack.c.bf16 %v1568, %v1567
        %v1570 = vld [vmem:[#allocation8] sm:$0xff]
        %v1571 = vld [vmem:[#allocation8 + $0x8] sm:$0xff]
        %v1572 = vld [vmem:[#allocation8 + $0x10] sm:$0xff]
        %v1573 = vld [vmem:[#allocation8 + $0x18] sm:$0xff]
        %v1574 = vld [vmem:[#allocation8 + $0x20] sm:$0xff]
        %v1575 = vld [vmem:[#allocation8 + $0x28] sm:$0xff]
        %v1576 = vld [vmem:[#allocation8 + $0x30] sm:$0xff]
        %v1577 = vld [vmem:[#allocation8 + $0x38] sm:$0xff]
        %v1578 = vld [vmem:[#allocation8 + $0x40] sm:$0xff]
        %v1579 = vld [vmem:[#allocation8 + $0x48] sm:$0xff]
        %v1580 = vld [vmem:[#allocation8 + $0x50] sm:$0xff]
        %v1581 = vld [vmem:[#allocation8 + $0x58] sm:$0xff]
        %v1582 = vld [vmem:[#allocation8 + $0x60] sm:$0xff]
        %v1583 = vld [vmem:[#allocation8 + $0x68] sm:$0xff]
        %v1584 = vld [vmem:[#allocation8 + $0x70] sm:$0xff]
        %v1585 = vld [vmem:[#allocation8 + $0x78] sm:$0xff]
        %v1586 = vld [vmem:[%s6] sm:$0x3]
        %v1588 = vlaneseq
        %v1589 = vshrl.u32 %v1588, 7
        %v1590 = vsub.s32 0, %v1589
        %v1591 = vrot.slane %v1586, %v1590
        %v1592 = vlaneseq
        %v1593 = vshrl.u32 %v1592, 7
        %v1594 = vsub.s32 1, %v1593
        %v1595 = vrot.slane %v1586, %v1594
        %v1614 = vunpack.c.l.b16 %v1570
        %v1615 = vunpack.c.h.b16 %v1570
        %v1616 = vunpack.c.l.b16 %v1571
        %v1617 = vunpack.c.h.b16 %v1571
        %v1618 = vunpack.c.l.b16 %v1572
        %v1619 = vunpack.c.h.b16 %v1572
        %v1620 = vunpack.c.l.b16 %v1573
        %v1621 = vunpack.c.h.b16 %v1573
        %v1622 = vunpack.c.l.b16 %v1574
        %v1623 = vunpack.c.h.b16 %v1574
        %v1624 = vunpack.c.l.b16 %v1575
        %v1625 = vunpack.c.h.b16 %v1575
        %v1626 = vunpack.c.l.b16 %v1576
        %v1627 = vunpack.c.h.b16 %v1576
        %v1628 = vunpack.c.l.b16 %v1577
        %v1629 = vunpack.c.h.b16 %v1577
        %v1630 = vunpack.c.l.b16 %v1578
        %v1631 = vunpack.c.h.b16 %v1578
        %v1632 = vunpack.c.l.b16 %v1579
        %v1633 = vunpack.c.h.b16 %v1579
        %v1634 = vunpack.c.l.b16 %v1580
        %v1635 = vunpack.c.h.b16 %v1580
        %v1636 = vunpack.c.l.b16 %v1581
        %v1637 = vunpack.c.h.b16 %v1581
        %v1638 = vunpack.c.l.b16 %v1582
        %v1639 = vunpack.c.h.b16 %v1582
        %v1640 = vunpack.c.l.b16 %v1583
        %v1641 = vunpack.c.h.b16 %v1583
        %v1642 = vunpack.c.l.b16 %v1584
        %v1643 = vunpack.c.h.b16 %v1584
        %v1644 = vunpack.c.l.b16 %v1585
        %v1645 = vunpack.c.h.b16 %v1585
        %v1646 = vpack.c.b16 %v1616, %v1614
        %v1647 = vpack.c.b16 %v1617, %v1615
        %v1648 = vpack.c.b16 %v1620, %v1618
        %v1649 = vpack.c.b16 %v1621, %v1619
        %v1650 = vpack.c.b16 %v1624, %v1622
        %v1651 = vpack.c.b16 %v1625, %v1623
        %v1652 = vpack.c.b16 %v1628, %v1626
        %v1653 = vpack.c.b16 %v1629, %v1627
        %v1654 = vpack.c.b16 %v1632, %v1630
        %v1655 = vpack.c.b16 %v1633, %v1631
        %v1656 = vpack.c.b16 %v1636, %v1634
        %v1657 = vpack.c.b16 %v1637, %v1635
        %v1658 = vpack.c.b16 %v1640, %v1638
        %v1659 = vpack.c.b16 %v1641, %v1639
        %v1660 = vpack.c.b16 %v1644, %v1642
        %v1661 = vpack.c.b16 %v1645, %v1643
        %1678 = vmatprep.subr.bf16.mxu0 %v1647
        %1679 = vmatpush1.bf16.msra.mxu0 %v1646
        %1680 = vmatprep.subr.bf16.mxu0 %v1649
        %1681 = vmatpush1.bf16.msra.mxu0 %v1648
        %1682 = vmatprep.subr.bf16.mxu0 %v1651
        %1683 = vmatpush1.bf16.msra.mxu0 %v1650
        %1684 = vmatprep.subr.bf16.mxu0 %v1653
        %1685 = vmatpush1.bf16.msra.mxu0 %v1652
        %1686 = vmatprep.subr.bf16.mxu0 %v1655
        %1687 = vmatpush1.bf16.msra.mxu0 %v1654
        %1688 = vmatprep.subr.bf16.mxu0 %v1657
        %1689 = vmatpush1.bf16.msra.mxu0 %v1656
        %1690 = vmatprep.subr.bf16.mxu0 %v1659
        %1691 = vmatpush1.bf16.msra.mxu0 %v1658
        %1692 = vmatprep.subr.bf16.mxu0 %v1661
        %1693 = vmatpush1.bf16.msra.mxu0 %v1660
        %1694 = vmatprep.subr.bf16.mxu0 0
        %1695 = vmatpush1.bf16.msra.mxu0 0
        %1696 = vmatprep.subr.bf16.mxu0 0
        %1697 = vmatpush1.bf16.msra.mxu0 0
        %1698 = vmatprep.subr.bf16.mxu0 0
        %1699 = vmatpush1.bf16.msra.mxu0 0
        %1700 = vmatprep.subr.bf16.mxu0 0
        %1701 = vmatpush1.bf16.msra.mxu0 0
        %1702 = vmatprep.subr.bf16.mxu0 0
        %1703 = vmatpush1.bf16.msra.mxu0 0
        %1704 = vmatprep.subr.bf16.mxu0 0
        %1705 = vmatpush1.bf16.msra.mxu0 0
        %1706 = vmatprep.subr.bf16.mxu0 0
        %1707 = vmatpush1.bf16.msra.mxu0 0
        %1708 = vmatprep.subr.bf16.mxu0 0
        %1709 = vmatpush1.bf16.msra.mxu0 0
        %1710 = vmatprep.mubr.bf16.mxu0 0
        %1711 = vmatmul.mubr.bf16.gmra.mrb[0].mxu0 %v1569
        %v1712 = vpop.f32.mrb[0].mxu0
        %v1713 = vadd.f32 %v1591, %v1712
        %v1714 = vpop.f32.mrb[0].mxu0
        %v1715 = vadd.f32 %v1595, %v1714
        %v1716 = vpop.f32.mrb[0].mxu0
        %v1717 = vadd.f32 %v1591, %v1716
        %v1718 = vpop.f32.mrb[0].mxu0
        %v1719 = vadd.f32 %v1595, %v1718
        %1720 = vdwg.mxu0
        %v1721 = vmax.f32 %v1713, 0.0
        %v1722 = vmax.f32 %v1715, 0.0
        %v1723 = vmax.f32 %v1717, 0.0
        %v1724 = vmax.f32 %v1719, 0.0
        %v1725 = vpack.c.bf16 %v1723, %v1721
        %v1726 = vpack.c.bf16 %v1724, %v1722
        %v1727 = vld [vmem:[#allocation10] sm:$0xf]
        %v1728 = vld [vmem:[#allocation10 + $0x4] sm:$0xf]
        %v1729 = vld [vmem:[#allocation10 + $0x8] sm:$0xf]
        %v1730 = vld [vmem:[#allocation10 + $0xc] sm:$0xf]
        %v1731 = vld [vmem:[#allocation10 + $0x10] sm:$0xf]
        %v1732 = vld [vmem:[#allocation10 + $0x14] sm:$0xf]
        %v1733 = vld [vmem:[#allocation10 + $0x18] sm:$0xf]
        %v1734 = vld [vmem:[#allocation10 + $0x1c] sm:$0xf]
        %v1735 = vld [vmem:[#allocation10 + $0x20] sm:$0xf]
        %v1736 = vld [vmem:[#allocation10 + $0x24] sm:$0xf]
        %v1737 = vld [vmem:[#allocation10 + $0x28] sm:$0xf]
        %v1738 = vld [vmem:[#allocation10 + $0x2c] sm:$0xf]
        %v1739 = vld [vmem:[#allocation10 + $0x30] sm:$0xf]
        %v1740 = vld [vmem:[#allocation10 + $0x34] sm:$0xf]
        %v1741 = vld [vmem:[#allocation10 + $0x38] sm:$0xf]
        %v1742 = vld [vmem:[#allocation10 + $0x3c] sm:$0xf]
        %v1743 = vld [vmem:[#allocation10 + $0x40] sm:$0xf]
        %v1744 = vld [vmem:[#allocation10 + $0x44] sm:$0xf]
        %v1745 = vld [vmem:[#allocation10 + $0x48] sm:$0xf]
        %v1746 = vld [vmem:[#allocation10 + $0x4c] sm:$0xf]
        %v1747 = vld [vmem:[#allocation10 + $0x50] sm:$0xf]
        %v1748 = vld [vmem:[#allocation10 + $0x54] sm:$0xf]
        %v1749 = vld [vmem:[#allocation10 + $0x58] sm:$0xf]
        %v1750 = vld [vmem:[#allocation10 + $0x5c] sm:$0xf]
        %v1751 = vld [vmem:[#allocation10 + $0x60] sm:$0xf]
        %v1752 = vld [vmem:[#allocation10 + $0x64] sm:$0xf]
        %v1753 = vld [vmem:[#allocation10 + $0x68] sm:$0xf]
        %v1754 = vld [vmem:[#allocation10 + $0x6c] sm:$0xf]
        %v1755 = vld [vmem:[#allocation10 + $0x70] sm:$0xf]
        %v1756 = vld [vmem:[#allocation10 + $0x74] sm:$0xf]
        %v1757 = vld [vmem:[#allocation10 + $0x78] sm:$0xf]
        %v1758 = vld [vmem:[#allocation10 + $0x7c] sm:$0xf]
        %v1759 = vld [vmem:[%s8] sm:$0x1]
        %v1761 = vlaneseq
        %v1762 = vshrl.u32 %v1761, 7
        %v1763 = vsub.s32 0, %v1762
        %v1764 = vrot.slane %v1759, %v1763
        %v1798 = vunpack.c.l.b16 %v1727
        %v1799 = vunpack.c.l.b16 %v1728
        %v1800 = vunpack.c.l.b16 %v1729
        %v1801 = vunpack.c.l.b16 %v1730
        %v1802 = vunpack.c.l.b16 %v1731
        %v1803 = vunpack.c.l.b16 %v1732
        %v1804 = vunpack.c.l.b16 %v1733
        %v1805 = vunpack.c.l.b16 %v1734
        %v1806 = vunpack.c.l.b16 %v1735
        %v1807 = vunpack.c.l.b16 %v1736
        %v1808 = vunpack.c.l.b16 %v1737
        %v1809 = vunpack.c.l.b16 %v1738
        %v1810 = vunpack.c.l.b16 %v1739
        %v1811 = vunpack.c.l.b16 %v1740
        %v1812 = vunpack.c.l.b16 %v1741
        %v1813 = vunpack.c.l.b16 %v1742
        %v1814 = vunpack.c.l.b16 %v1743
        %v1815 = vunpack.c.l.b16 %v1744
        %v1816 = vunpack.c.l.b16 %v1745
        %v1817 = vunpack.c.l.b16 %v1746
        %v1818 = vunpack.c.l.b16 %v1747
        %v1819 = vunpack.c.l.b16 %v1748
        %v1820 = vunpack.c.l.b16 %v1749
        %v1821 = vunpack.c.l.b16 %v1750
        %v1822 = vunpack.c.l.b16 %v1751
        %v1823 = vunpack.c.l.b16 %v1752
        %v1824 = vunpack.c.l.b16 %v1753
        %v1825 = vunpack.c.l.b16 %v1754
        %v1826 = vunpack.c.l.b16 %v1755
        %v1827 = vunpack.c.l.b16 %v1756
        %v1828 = vunpack.c.l.b16 %v1757
        %v1829 = vunpack.c.l.b16 %v1758
        %v1830 = vpack.c.b16 %v1799, %v1798
        %v1831 = vpack.c.b16 %v1801, %v1800
        %v1832 = vpack.c.b16 %v1803, %v1802
        %v1833 = vpack.c.b16 %v1805, %v1804
        %v1834 = vpack.c.b16 %v1807, %v1806
        %v1835 = vpack.c.b16 %v1809, %v1808
        %v1836 = vpack.c.b16 %v1811, %v1810
        %v1837 = vpack.c.b16 %v1813, %v1812
        %v1838 = vpack.c.b16 %v1815, %v1814
        %v1839 = vpack.c.b16 %v1817, %v1816
        %v1840 = vpack.c.b16 %v1819, %v1818
        %v1841 = vpack.c.b16 %v1821, %v1820
        %v1842 = vpack.c.b16 %v1823, %v1822
        %v1843 = vpack.c.b16 %v1825, %v1824
        %v1844 = vpack.c.b16 %v1827, %v1826
        %v1845 = vpack.c.b16 %v1829, %v1828
        %1862 = vmatprep.subr.bf16.mxu0 0
        %1863 = vmatpush1.bf16.msra.mxu0 %v1830
        %1864 = vmatprep.subr.bf16.mxu0 0
        %1865 = vmatpush1.bf16.msra.mxu0 %v1831
        %1866 = vmatprep.subr.bf16.mxu0 0
        %1867 = vmatpush1.bf16.msra.mxu0 %v1832
        %1868 = vmatprep.subr.bf16.mxu0 0
        %1869 = vmatpush1.bf16.msra.mxu0 %v1833
        %1870 = vmatprep.subr.bf16.mxu0 0
        %1871 = vmatpush1.bf16.msra.mxu0 %v1834
        %1872 = vmatprep.subr.bf16.mxu0 0
        %1873 = vmatpush1.bf16.msra.mxu0 %v1835
        %1874 = vmatprep.subr.bf16.mxu0 0
        %1875 = vmatpush1.bf16.msra.mxu0 %v1836
        %1876 = vmatprep.subr.bf16.mxu0 0
        %1877 = vmatpush1.bf16.msra.mxu0 %v1837
        %1878 = vmatprep.subr.bf16.mxu0 0
        %1879 = vmatpush1.bf16.msra.mxu0 %v1838
        %1880 = vmatprep.subr.bf16.mxu0 0
        %1881 = vmatpush1.bf16.msra.mxu0 %v1839
        %1882 = vmatprep.subr.bf16.mxu0 0
        %1883 = vmatpush1.bf16.msra.mxu0 %v1840
        %1884 = vmatprep.subr.bf16.mxu0 0
        %1885 = vmatpush1.bf16.msra.mxu0 %v1841
        %1886 = vmatprep.subr.bf16.mxu0 0
        %1887 = vmatpush1.bf16.msra.mxu0 %v1842
        %1888 = vmatprep.subr.bf16.mxu0 0
        %1889 = vmatpush1.bf16.msra.mxu0 %v1843
        %1890 = vmatprep.subr.bf16.mxu0 0
        %1891 = vmatpush1.bf16.msra.mxu0 %v1844
        %1892 = vmatprep.subr.bf16.mxu0 0
        %1893 = vmatpush1.bf16.msra.mxu0 %v1845
        %1894 = vmatprep.mubr.bf16.mxu0 %v1726
        %1895 = vmatmul.mubr.bf16.gmra.mrb[0].mxu0 %v1725
        %v1896 = vpop.f32.mrb[0].mxu0
        %v1897 = vadd.f32 %v1764, %v1896
        %v1898 = vpop.f32.mrb[0].mxu0
        %v1899 = vpop.f32.mrb[0].mxu0
        %v1900 = vadd.f32 %v1764, %v1899
        %v1901 = vpop.f32.mrb[0].mxu0
        %1902 = vdwg.mxu0
        %v1903 = vadd.f32 %v1567, %v1897
        %v1904 = vadd.f32 %v1568, %v1900
        %v1905 = vld [vmem:[%s11] sm:$0x1]
        %v1906 = vld [vmem:[%s12] sm:$0x1]
        %1907 = vadd.xlane.f32.xlu0 %v1903
        %v1908 = vpop.xlane.xlu0 %1907
        %1909 = vadd.xlane.f32.xlu0 %v1904
        %v1910 = vpop.xlane.xlu0 %1909
        %v1911 = vmul.f32 %v1908, %v1534
        %v1912 = vmul.f32 %v1910, %v1534
        %v1913 = vsub.f32 %v1903, %v1911
        %v1914 = vsub.f32 %v1904, %v1912
        %v1915 = vmul.f32 %v1913, %v1913
        %v1916 = vmul.f32 %v1914, %v1914
        %1917 = vadd.xlane.f32.xlu0 %v1915
        %v1918 = vpop.xlane.xlu0 %1917
        %1919 = vadd.xlane.f32.xlu0 %v1916
        %v1920 = vpop.xlane.xlu0 %1919
        %v1921 = vmul.f32 %v1918, %v1534
        %v1922 = vmul.f32 %v1920, %v1534
        %v1923 = vadd.f32 %v1921, 1e-05
        %v1924 = vadd.f32 %v1922, 1e-05
        %v1925 = vrsqrt.pop %v1923
        %v1926 = vrsqrt.pop %v1924
        %v1927 = vmul.f32 %v1913, %v1925
        %v1928 = vmul.f32 %v1914, %v1926
        %v1930 = vlaneseq
        %v1931 = vshrl.u32 %v1930, 7
        %v1932 = vsub.s32 0, %v1931
        %v1933 = vrot.slane %v1905, %v1932
        %v1935 = vmul.f32 %v1927, %v1933
        %v1936 = vmul.f32 %v1928, %v1933
        %v1938 = vlaneseq
        %v1939 = vshrl.u32 %v1938, 7
        %v1940 = vsub.s32 0, %v1939
        %v1941 = vrot.slane %v1906, %v1940
        %v1943 = vadd.f32 %v1935, %v1941
        %v1944 = vadd.f32 %v1936, %v1941
        %1945 = vst [vmem:[%s516] sm:$0xff] %v1943
        %1946 = vst [vmem:[%s516 + $0x8] sm:$0xff] %v1944
        %s1947 = sand.u32 %s318, 1
        %s1948 = scalar_lea.sflag [#allocation4], %s1947
        %s1949 = sand.u32 %s318, 1
        %s1950 = smul.addr %s1949, 16
        %s1951 = scalar_lea.vmem [#allocation11], %s1950
        // Predicated region
        $region93: #{tpu_custom_call.1} parent=71 // pred_check
          %p1952 = pneg %p328
        $region94: #{tpu_custom_call.1} parent=71 // pred_check_branch
          %1954 = sbr.rel (%p1952) target = $region96
        $region95: #{tpu_custom_call.1} parent=71 // pred_region
          %s1956 = ssub.s32 256, 256
          %1957 = vsyncadd %s1948, %s1956
          %s1958 = smul.addr %s32, 2
          %s1959 = smul.addr %s1958, 128
          %s1960 = scalar_lea.hbm %s13, %s1959
          %s1961 = sshll.u32 %s1951, 4
          %s1962 = int_to_ptr.vmem [resolvable:$true] %s1961
          %1967 = dma.vmem_to_hbm [thread:$0]  %s1962, 256, %s1960, %s1948, 128, 128, 8
        $region96: #{tpu_custom_call.1} parent=71 // pred_fallthru
          _
      $region72: #{tpu_custom_call.1} parent=5 // pred_fallthru
        _
      %p1968 = scmp.le.s32.totalorder 2, %s27
      // Predicated region
      $region97: #{tpu_custom_call.1} parent=5 // pred_check
        %p1969 = pneg %p1968
      $region98: #{tpu_custom_call.1} parent=5 // pred_check_branch
        %1971 = sbr.rel (%p1969) target = $region100
      $region99: #{tpu_custom_call.1} parent=5 // pred_region
        %s1972 = ssub.s32 %s27, 2
        // Predicated region
        $region101: #{tpu_custom_call.1} parent=99 // pred_check
          %p1973 = pneg %p334
        $region102: #{tpu_custom_call.1} parent=99 // pred_check_branch
          %1975 = sbr.rel (%p1973) target = $region104
        $region103: #{tpu_custom_call.1} parent=99 // pred_region
          %s1976 = sand.u32 %s319, 1
          %s1977 = scalar_lea.sflag [#allocation4], %s1976
          %s1978 = sand.u32 %s319, 1
          %s1979 = smul.addr %s1978, 16
          %s1980 = scalar_lea.vmem [#allocation11], %s1979
          %1981 = dma.done %s1977, 256
        $region104: #{tpu_custom_call.1} parent=99 // pred_fallthru
          _
      $region100: #{tpu_custom_call.1} parent=5 // pred_fallthru
        _
    $region6: #{tpu_custom_call.1} parent=1 // loop_footer
      %s31 = sadd.s32 1, %s27
    $region7: #{tpu_custom_call.1} parent=1 // loop_footer_branch
      %26 = sbr.rel target = $region3
    $region8: #{tpu_custom_call.1} parent=1 // loop_exit
      _
    %1982 = vsyncpa [#allocation3], 1
    %s1983 = scalar_lea.sflag [#allocation3], 1
    %1984 = vsyncpa %s1983, 1
    %1985 = vsyncpa [#allocation6], 1
    %1986 = vsyncpa [#allocation9], 1
    %1987 = vsyncpa [#allocation4], 1
    %s1988 = scalar_lea.sflag [#allocation4], 1
    %1989 = vsyncpa %s1988, 1

// kernel: tpu_custom_call.1
$region0: #{tpu_custom_call.1}
  #allocation0 [shape = 'u32[]', space=smem, size = 0x4, offset = 0x4, fixed_abs, tag = 'smem constant byte address 0x4 - core index']
  #allocation1 [shape = 'u32[144,128]{1,0:T(1,128)}', space=vmem, size = 0x12000, scoped, tag = 'internal scratch']
  %s0 = inlined_call_operand.hbm [shape: f32[2,16,128], index: 0, kind: input, shape index: {}]
  %s1 = inlined_call_operand.hbm [shape: bf16[128,384], index: 1, kind: input, shape index: {}]
  %s2 = inlined_call_operand.vmem [shape: f32[1,384], index: 2, kind: input, shape index: {}]
  %s3 = inlined_call_operand.hbm [shape: bf16[128,128], index: 3, kind: input, shape index: {}]
  %s4 = inlined_call_operand.vmem [shape: f32[1,128], index: 4, kind: input, shape index: {}]
  %s5 = inlined_call_operand.hbm [shape: bf16[128,256], index: 5, kind: input, shape index: {}]
  %s6 = inlined_call_operand.vmem [shape: f32[1,256], index: 6, kind: input, shape index: {}]
  %s7 = inlined_call_operand.hbm [shape: bf16[256,128], index: 7, kind: input, shape index: {}]
  %s8 = inlined_call_operand.vmem [shape: f32[1,128], index: 8, kind: input, shape index: {}]
  %s9 = inlined_call_operand.vmem [shape: f32[1,128], index: 9, kind: input, shape index: {}]
  %s10 = inlined_call_operand.vmem [shape: f32[1,128], index: 10, kind: input, shape index: {}]
  %s11 = inlined_call_operand.vmem [shape: f32[1,128], index: 11, kind: input, shape index: {}]
  %s12 = inlined_call_operand.vmem [shape: f32[1,128], index: 12, kind: input, shape index: {}]
  %s13 = inlined_call_operand.hbm [shape: f32[2,16,128], index: 13, kind: output, shape index: {}]
  %s14 = sld [smem:[#allocation0]]
  $region105: #{tpu_custom_call.1} parent=0
    _
  %s16 = ssub.s32 1, %s14
  %s17 = scalar_select 0, %s16, %s14
  $region1: #{tpu_custom_call.1} parent=0
    #allocation2 [shape = 'u8[16384]{0}', space=vmem, size = 0x4000, scoped, tag = 'input window, operand 0']
    #allocation3 [shape = 's32[2]{0}', space=sflag, size = 0x8, scoped, tag = 'scoped memory for tpu_custom_call.1']
    #allocation4 [shape = 's32[2]{0}', space=sflag, size = 0x8, scoped, tag = 'scoped memory for tpu_custom_call.1']
    #allocation5 [shape = 'u8[98304]{0}', space=vmem, size = 0x18000, scoped, tag = 'input window, operand 1, single buffered']
    #allocation6 [shape = 's32[1]{0}', space=sflag, size = 0x4, scoped, tag = 'scoped memory for tpu_custom_call.1']
    #allocation7 [shape = 'u8[32768]{0}', space=vmem, size = 0x8000, scoped, tag = 'input window, operand 3, single buffered']
    #allocation8 [shape = 'u8[65536]{0}', space=vmem, size = 0x10000, scoped, tag = 'input window, operand 5, single buffered']
    #allocation9 [shape = 's32[1]{0}', space=sflag, size = 0x4, scoped, tag = 'scoped memory for tpu_custom_call.1']
    #allocation10 [shape = 'u8[65536]{0}', space=vmem, size = 0x10000, scoped, tag = 'input window, operand 7, single buffered']
    #allocation11 [shape = 'u8[16384]{0}', space=vmem, size = 0x4000, scoped, tag = 'output window, operand 0']
    %18 = vsyncpa [#allocation3], 0
    %s19 = scalar_lea.sflag [#allocation3], 1
    %20 = vsyncpa %s19, 0
    %21 = vsyncpa [#allocation6], 0
    %22 = vsyncpa [#allocation9], 0
    %23 = vsyncpa [#allocation4], 0
    %s24 = scalar_lea.sflag [#allocation4], 1
    %25 = vsyncpa %s24, 0
    loop: start=0, step=1, limit=4
    $region2: #{tpu_custom_call.1} parent=1 // loop_pre_header
      _
    $region3: #{tpu_custom_call.1} parent=1 // loop_header
      %s27 = sphi 0, %s31
      %p28 = scmp.ge.s32.totalorder %s27, 4
      %s37 = sphi 0, %s39
      %s40 = sphi 0, %s37
      %s41 = sphi 0, %s40
      %s57 = sphi 0, %s41
      %s61 = sphi 0, %s61
      %s63 = sphi 0, %s61
      %s64 = sphi 0, %s63
      %s78 = sphi 0, %s64
      %s82 = sphi 0, %s82
      %s84 = sphi 0, %s82
      %s85 = sphi 0, %s84
      %s99 = sphi 0, %s85
      %s103 = sphi 0, %s103
      %s105 = sphi 0, %s103
      %s106 = sphi 0, %s105
      %s120 = sphi 0, %s106
      %s124 = sphi 0, %s124
      %s126 = sphi 0, %s124
      %s127 = sphi 0, %s126
      %s141 = sphi 0, %s127
      %s145 = sphi 0, %s145
      %s147 = sphi 0, %s145
      %s148 = sphi 0, %s147
      %s162 = sphi 0, %s148
      %s166 = sphi 0, %s166
      %s168 = sphi 0, %s166
      %s169 = sphi 0, %s168
      %s183 = sphi 0, %s169
      %s187 = sphi 0, %s187
      %s189 = sphi 0, %s187
      %s190 = sphi 0, %s189
      %s204 = sphi 0, %s190
      %s208 = sphi 0, %s208
      %s210 = sphi 0, %s208
      %s211 = sphi 0, %s210
      %s225 = sphi 0, %s211
      %s229 = sphi 0, %s229
      %s231 = sphi 0, %s229
      %s232 = sphi 0, %s231
      %s246 = sphi 0, %s232
      %s250 = sphi 0, %s250
      %s252 = sphi 0, %s250
      %s253 = sphi 0, %s252
      %s267 = sphi 0, %s253
      %s271 = sphi 0, %s271
      %s273 = sphi 0, %s271
      %s274 = sphi 0, %s273
      %s288 = sphi 0, %s274
      %s292 = sphi 0, %s292
      %s294 = sphi 0, %s292
      %s295 = sphi 0, %s294
      %s309 = sphi 0, %s295
      %s315 = sphi 0, %s317
      %s318 = sphi 0, %s315
      %s319 = sphi 0, %s318
      %s335 = sphi 0, %s319
    $region4: #{tpu_custom_call.1} parent=1 // loop_header_branch
      %30 = sbr.rel (%p28) target = $region8
    $region5: #{tpu_custom_call.1} parent=1 // loop_body
      %s32 = ssub.s32 %s27, 1
      %s33 = ssub.s32 %s27, 2
      %s34 = sadd.s32 %s27, 1
      %s35 = ssub.s32 %s27, %s34
      %p36 = scmp.eq.s32.totalorder %s35, 0
      %s38 = sadd.s32 %s37, 1
      %s39 = scalar_select %p36, %s37, %s38
      %p42 = pneg %p36
      %p43 = scmp.eq.s32.totalorder %s27, 1
      %p44 = por %p42, %p43
      %p45 = scmp.ne.s32.totalorder %s37, %s40
      %p46 = scmp.eq.s32.totalorder %s27, 0
      %p47 = por %p45, %p46
      %p48 = scmp.ne.s32.totalorder %s37, %s40
      %p49 = scmp.eq.s32.totalorder %s32, 1
      %p50 = por %p48, %p49
      %p51 = scmp.ne.s32.totalorder %s40, %s41
      %p52 = scmp.eq.s32.totalorder %s32, 0
      %p53 = por %p51, %p52
      %p54 = scmp.ne.s32.totalorder %s40, %s41
      %p55 = scmp.eq.s32.totalorder %s33, 1
      %p56 = por %p54, %p55
      %p58 = scmp.ne.s32.totalorder %s41, %s57
      %p59 = scmp.eq.s32.totalorder %s33, 0
      %p60 = por %p58, %p59
      %s62 = sadd.s32 %s61, 1
      %p65 = scmp.eq.s32.totalorder %s27, 1
      %p66 = scmp.ne.s32.totalorder %s61, %s63
      %p67 = scmp.eq.s32.totalorder %s27, 0
      %p68 = por %p66, %p67
      %p69 = scmp.ne.s32.totalorder %s61, %s63
      %p70 = scmp.eq.s32.totalorder %s32, 1
      %p71 = por %p69, %p70
      %p72 = scmp.ne.s32.totalorder %s63, %s64
      %p73 = scmp.eq.s32.totalorder %s32, 0
      %p74 = por %p72, %p73
      %p75 = scmp.ne.s32.totalorder %s63, %s64
      %p76 = scmp.eq.s32.totalorder %s33, 1
      %p77 = por %p75, %p76
      %p79 = scmp.ne.s32.totalorder %s64, %s78
      %p80 = scmp.eq.s32.totalorder %s33, 0
      %p81 = por %p79, %p80
      %s83 = sadd.s32 %s82, 1
      %p86 = scmp.eq.s32.totalorder %s27, 1
      %p87 = scmp.ne.s32.totalorder %s82, %s84
      %p88 = scmp.eq.s32.totalorder %s27, 0
      %p89 = por %p87, %p88
      %p90 = scmp.ne.s32.totalorder %s82, %s84
      %p91 = scmp.eq.s32.totalorder %s32, 1
      %p92 = por %p90, %p91
      %p93 = scmp.ne.s32.totalorder %s84, %s85
      %p94 = scmp.eq.s32.totalorder %s32, 0
      %p95 = por %p93, %p94
      %p96 = scmp.ne.s32.totalorder %s84, %s85
      %p97 = scmp.eq.s32.totalorder %s33, 1
      %p98 = por %p96, %p97
      %p100 = scmp.ne.s32.totalorder %s85, %s99
      %p101 = scmp.eq.s32.totalorder %s33, 0
      %p102 = por %p100, %p101
      %s104 = sadd.s32 %s103, 1
      %p107 = scmp.eq.s32.totalorder %s27, 1
      %p108 = scmp.ne.s32.totalorder %s103, %s105
      %p109 = scmp.eq.s32.totalorder %s27, 0
      %p110 = por %p108, %p109
      %p111 = scmp.ne.s32.totalorder %s103, %s105
      %p112 = scmp.eq.s32.totalorder %s32, 1
      %p113 = por %p111, %p112
      %p114 = scmp.ne.s32.totalorder %s105, %s106
      %p115 = scmp.eq.s32.totalorder %s32, 0
      %p116 = por %p114, %p115
      %p117 = scmp.ne.s32.totalorder %s105, %s106
      %p118 = scmp.eq.s32.totalorder %s33, 1
      %p119 = por %p117, %p118
      %p121 = scmp.ne.s32.totalorder %s106, %s120
      %p122 = scmp.eq.s32.totalorder %s33, 0
      %p123 = por %p121, %p122
      %s125 = sadd.s32 %s124, 1
      %p128 = scmp.eq.s32.totalorder %s27, 1
      %p129 = scmp.ne.s32.totalorder %s124, %s126
      %p130 = scmp.eq.s32.totalorder %s27, 0
      %p131 = por %p129, %p130
      %p132 = scmp.ne.s32.totalorder %s124, %s126
      %p133 = scmp.eq.s32.totalorder %s32, 1
      %p134 = por %p132, %p133
      %p135 = scmp.ne.s32.totalorder %s126, %s127
      %p136 = scmp.eq.s32.totalorder %s32, 0
      %p137 = por %p135, %p136
      %p138 = scmp.ne.s32.totalorder %s126, %s127
      %p139 = scmp.eq.s32.totalorder %s33, 1
      %p140 = por %p138, %p139
      %p142 = scmp.ne.s32.totalorder %s127, %s141
      %p143 = scmp.eq.s32.totalorder %s33, 0
      %p144 = por %p142, %p143
      %s146 = sadd.s32 %s145, 1
      %p149 = scmp.eq.s32.totalorder %s27, 1
      %p150 = scmp.ne.s32.totalorder %s145, %s147
      %p151 = scmp.eq.s32.totalorder %s27, 0
      %p152 = por %p150, %p151
      %p153 = scmp.ne.s32.totalorder %s145, %s147
      %p154 = scmp.eq.s32.totalorder %s32, 1
      %p155 = por %p153, %p154
      %p156 = scmp.ne.s32.totalorder %s147, %s148
      %p157 = scmp.eq.s32.totalorder %s32, 0
      %p158 = por %p156, %p157
      %p159 = scmp.ne.s32.totalorder %s147, %s148
      %p160 = scmp.eq.s32.totalorder %s33, 1
      %p161 = por %p159, %p160
      %p163 = scmp.ne.s32.totalorder %s148, %s162
      %p164 = scmp.eq.s32.totalorder %s33, 0
      %p165 = por %p163, %p164
      %s167 = sadd.s32 %s166, 1
      %p170 = scmp.eq.s32.totalorder %s27, 1
      %p171 = scmp.ne.s32.totalorder %s166, %s168
      %p172 = scmp.eq.s32.totalorder %s27, 0
      %p173 = por %p171, %p172
      %p174 = scmp.ne.s32.totalorder %s166, %s168
      %p175 = scmp.eq.s32.totalorder %s32, 1
      %p176 = por %p174, %p175
      %p177 = scmp.ne.s32.totalorder %s168, %s169
      %p178 = scmp.eq.s32.totalorder %s32, 0
      %p179 = por %p177, %p178
      %p180 = scmp.ne.s32.totalorder %s168, %s169
      %p181 = scmp.eq.s32.totalorder %s33, 1
      %p182 = por %p180, %p181
      %p184 = scmp.ne.s32.totalorder %s169, %s183
      %p185 = scmp.eq.s32.totalorder %s33, 0
      %p186 = por %p184, %p185
      %s188 = sadd.s32 %s187, 1
      %p191 = scmp.eq.s32.totalorder %s27, 1
      %p192 = scmp.ne.s32.totalorder %s187, %s189
      %p193 = scmp.eq.s32.totalorder %s27, 0
      %p194 = por %p192, %p193
      %p195 = scmp.ne.s32.totalorder %s187, %s189
      %p196 = scmp.eq.s32.totalorder %s32, 1
      %p197 = por %p195, %p196
      %p198 = scmp.ne.s32.totalorder %s189, %s190
      %p199 = scmp.eq.s32.totalorder %s32, 0
      %p200 = por %p198, %p199
      %p201 = scmp.ne.s32.totalorder %s189, %s190
      %p202 = scmp.eq.s32.totalorder %s33, 1
      %p203 = por %p201, %p202
      %p205 = scmp.ne.s32.totalorder %s190, %s204
      %p206 = scmp.eq.s32.totalorder %s33, 0
      %p207 = por %p205, %p206
      %s209 = sadd.s32 %s208, 1
      %p212 = scmp.eq.s32.totalorder %s27, 1
      %p213 = scmp.ne.s32.totalorder %s208, %s210
      %p214 = scmp.eq.s32.totalorder %s27, 0
      %p215 = por %p213, %p214
      %p216 = scmp.ne.s32.totalorder %s208, %s210
      %p217 = scmp.eq.s32.totalorder %s32, 1
      %p218 = por %p216, %p217
      %p219 = scmp.ne.s32.totalorder %s210, %s211
      %p220 = scmp.eq.s32.totalorder %s32, 0
      %p221 = por %p219, %p220
      %p222 = scmp.ne.s32.totalorder %s210, %s211
      %p223 = scmp.eq.s32.totalorder %s33, 1
      %p224 = por %p222, %p223
      %p226 = scmp.ne.s32.totalorder %s211, %s225
      %p227 = scmp.eq.s32.totalorder %s33, 0
      %p228 = por %p226, %p227
      %s230 = sadd.s32 %s229, 1
      %p233 = scmp.eq.s32.totalorder %s27, 1
      %p234 = scmp.ne.s32.totalorder %s229, %s231
      %p235 = scmp.eq.s32.totalorder %s27, 0
      %p236 = por %p234, %p235
      %p237 = scmp.ne.s32.totalorder %s229, %s231
      %p238 = scmp.eq.s32.totalorder %s32, 1
      %p239 = por %p237, %p238
      %p240 = scmp.ne.s32.totalorder %s231, %s232
      %p241 = scmp.eq.s32.totalorder %s32, 0
      %p242 = por %p240, %p241
      %p243 = scmp.ne.s32.totalorder %s231, %s232
      %p244 = scmp.eq.s32.totalorder %s33, 1
      %p245 = por %p243, %p244
      %p247 = scmp.ne.s32.totalorder %s232, %s246
      %p248 = scmp.eq.s32.totalorder %s33, 0
      %p249 = por %p247, %p248
      %s251 = sadd.s32 %s250, 1
      %p254 = scmp.eq.s32.totalorder %s27, 1
      %p255 = scmp.ne.s32.totalorder %s250, %s252
      %p256 = scmp.eq.s32.totalorder %s27, 0
      %p257 = por %p255, %p256
      %p258 = scmp.ne.s32.totalorder %s250, %s252
      %p259 = scmp.eq.s32.totalorder %s32, 1
      %p260 = por %p258, %p259
      %p261 = scmp.ne.s32.totalorder %s252, %s253
      %p262 = scmp.eq.s32.totalorder %s32, 0
      %p263 = por %p261, %p262
      %p264 = scmp.ne.s32.totalorder %s252, %s253
      %p265 = scmp.eq.s32.totalorder %s33, 1
      %p266 = por %p264, %p265
      %p268 = scmp.ne.s32.totalorder %s253, %s267
      %p269 = scmp.eq.s32.totalorder %s33, 0
      %p270 = por %p268, %p269
      %s272 = sadd.s32 %s271, 1
      %p275 = scmp.eq.s32.totalorder %s27, 1
      %p276 = scmp.ne.s32.totalorder %s271, %s273
      %p277 = scmp.eq.s32.totalorder %s27, 0
      %p278 = por %p276, %p277
      %p279 = scmp.ne.s32.totalorder %s271, %s273
      %p280 = scmp.eq.s32.totalorder %s32, 1
      %p281 = por %p279, %p280
      %p282 = scmp.ne.s32.totalorder %s273, %s274
      %p283 = scmp.eq.s32.totalorder %s32, 0
      %p284 = por %p282, %p283
      %p285 = scmp.ne.s32.totalorder %s273, %s274
      %p286 = scmp.eq.s32.totalorder %s33, 1
      %p287 = por %p285, %p286
      %p289 = scmp.ne.s32.totalorder %s274, %s288
      %p290 = scmp.eq.s32.totalorder %s33, 0
      %p291 = por %p289, %p290
      %s293 = sadd.s32 %s292, 1
      %p296 = scmp.eq.s32.totalorder %s27, 1
      %p297 = scmp.ne.s32.totalorder %s292, %s294
      %p298 = scmp.eq.s32.totalorder %s27, 0
      %p299 = por %p297, %p298
      %p300 = scmp.ne.s32.totalorder %s292, %s294
      %p301 = scmp.eq.s32.totalorder %s32, 1
      %p302 = por %p300, %p301
      %p303 = scmp.ne.s32.totalorder %s294, %s295
      %p304 = scmp.eq.s32.totalorder %s32, 0
      %p305 = por %p303, %p304
      %p306 = scmp.ne.s32.totalorder %s294, %s295
      %p307 = scmp.eq.s32.totalorder %s33, 1
      %p308 = por %p306, %p307
      %p310 = scmp.ne.s32.totalorder %s295, %s309
      %p311 = scmp.eq.s32.totalorder %s33, 0
      %p312 = por %p310, %p311
      %s313 = ssub.s32 %s27, %s34
      %p314 = scmp.eq.s32.totalorder %s313, 0
      %s316 = sadd.s32 %s315, 1
      %s317 = scalar_select %p314, %s315, %s316
      %p320 = pneg %p314
      %p321 = scmp.eq.s32.totalorder %s27, 1
      %p322 = por %p320, %p321
      %p323 = scmp.ne.s32.totalorder %s315, %s318
      %p324 = scmp.eq.s32.totalorder %s27, 0
      %p325 = por %p323, %p324
      %p326 = scmp.ne.s32.totalorder %s315, %s318
      %p327 = scmp.eq.s32.totalorder %s32, 1
      %p328 = por %p326, %p327
      %p329 = scmp.ne.s32.totalorder %s318, %s319
      %p330 = scmp.eq.s32.totalorder %s32, 0
      %p331 = por %p329, %p330
      %p332 = scmp.ne.s32.totalorder %s318, %s319
      %p333 = scmp.eq.s32.totalorder %s33, 1
      %p334 = por %p332, %p333
      %p336 = scmp.ne.s32.totalorder %s319, %s335
      %p337 = scmp.eq.s32.totalorder %s33, 0
      %p338 = por %p336, %p337
      %p339 = scmp.le.s32.totalorder 1, %s27
      %p340 = scmp.lt.s32.totalorder %s27, 3
      %p341 = pnand %p339, %p340
      %p342 = pneg %p341
      // Predicated region
      $region9: #{tpu_custom_call.1} parent=5 // pred_check
        _
      $region10: #{tpu_custom_call.1} parent=5 // pred_check_branch
        %344 = sbr.rel (%p341) target = $region12
      $region11: #{tpu_custom_call.1} parent=5 // pred_region
        %s345 = ssub.s32 %s27, 1
        // Predicated region
        $region13: #{tpu_custom_call.1} parent=11 // pred_check
          %p346 = pneg %p74
        $region14: #{tpu_custom_call.1} parent=11 // pred_check_branch
          %348 = sbr.rel (%p346) target = $region16
        $region15: #{tpu_custom_call.1} parent=11 // pred_region
          %s350 = ssub.s32 3072, 3072
          %351 = vsyncadd [#allocation6], %s350
          %s352 = sshll.u32 [#allocation5], 4
          %s353 = int_to_ptr.vmem [resolvable:$true] %s352
          %358 = dma.hbm_to_vmem [thread:$0]  %s1, 3072, %s353, [#allocation6], 192, 192, 12
        $region16: #{tpu_custom_call.1} parent=11 // pred_fallthru
          _
        // Predicated region
        $region17: #{tpu_custom_call.1} parent=11 // pred_check
          %p359 = pneg %p95
        $region18: #{tpu_custom_call.1} parent=11 // pred_check_branch
          %361 = sbr.rel (%p359) target = $region20
        $region19: #{tpu_custom_call.1} parent=11 // pred_region
          _
        $region20: #{tpu_custom_call.1} parent=11 // pred_fallthru
          _
        // Predicated region
        $region21: #{tpu_custom_call.1} parent=11 // pred_check
          %p362 = pneg %p116
        $region22: #{tpu_custom_call.1} parent=11 // pred_check_branch
          %364 = sbr.rel (%p362) target = $region24
        $region23: #{tpu_custom_call.1} parent=11 // pred_region
          %s366 = ssub.s32 1024, 1024
          %367 = vsyncadd [#allocation6], %s366
          %s368 = sshll.u32 [#allocation7], 4
          %s369 = int_to_ptr.vmem [resolvable:$true] %s368
          %374 = dma.hbm_to_vmem [thread:$0]  %s3, 1024, %s369, [#allocation6], 64, 64, 4
        $region24: #{tpu_custom_call.1} parent=11 // pred_fallthru
          _
        // Predicated region
        $region25: #{tpu_custom_call.1} parent=11 // pred_check
          %p375 = pneg %p137
        $region26: #{tpu_custom_call.1} parent=11 // pred_check_branch
          %377 = sbr.rel (%p375) target = $region28
        $region27: #{tpu_custom_call.1} parent=11 // pred_region
          _
        $region28: #{tpu_custom_call.1} parent=11 // pred_fallthru
          _
        // Predicated region
        $region29: #{tpu_custom_call.1} parent=11 // pred_check
          %p378 = pneg %p158
        $region30: #{tpu_custom_call.1} parent=11 // pred_check_branch
          %380 = sbr.rel (%p378) target = $region32
        $region31: #{tpu_custom_call.1} parent=11 // pred_region
          %s382 = ssub.s32 2048, 2048
          %383 = vsyncadd [#allocation9], %s382
          %s384 = sshll.u32 [#allocation8], 4
          %s385 = int_to_ptr.vmem [resolvable:$true] %s384
          %390 = dma.hbm_to_vmem [thread:$0]  %s5, 2048, %s385, [#allocation9], 128, 128, 8
        $region32: #{tpu_custom_call.1} parent=11 // pred_fallthru
          _
        // Predicated region
        $region33: #{tpu_custom_call.1} parent=11 // pred_check
          %p391 = pneg %p179
        $region34: #{tpu_custom_call.1} parent=11 // pred_check_branch
          %393 = sbr.rel (%p391) target = $region36
        $region35: #{tpu_custom_call.1} parent=11 // pred_region
          _
        $region36: #{tpu_custom_call.1} parent=11 // pred_fallthru
          _
        // Predicated region
        $region37: #{tpu_custom_call.1} parent=11 // pred_check
          %p394 = pneg %p200
        $region38: #{tpu_custom_call.1} parent=11 // pred_check_branch
          %396 = sbr.rel (%p394) target = $region40
        $region39: #{tpu_custom_call.1} parent=11 // pred_region
          %s398 = ssub.s32 2048, 2048
          %399 = vsyncadd [#allocation9], %s398
          %s400 = sshll.u32 [#allocation10], 4
          %s401 = int_to_ptr.vmem [resolvable:$true] %s400
          %406 = dma.hbm_to_vmem [thread:$0]  %s7, 2048, %s401, [#allocation9], 64, 64, 4
        $region40: #{tpu_custom_call.1} parent=11 // pred_fallthru
          _
        // Predicated region
        $region41: #{tpu_custom_call.1} parent=11 // pred_check
          %p407 = pneg %p221
        $region42: #{tpu_custom_call.1} parent=11 // pred_check_branch
          %409 = sbr.rel (%p407) target = $region44
        $region43: #{tpu_custom_call.1} parent=11 // pred_region
          _
        $region44: #{tpu_custom_call.1} parent=11 // pred_fallthru
          _
        // Predicated region
        $region45: #{tpu_custom_call.1} parent=11 // pred_check
          %p410 = pneg %p242
        $region46: #{tpu_custom_call.1} parent=11 // pred_check_branch
          %412 = sbr.rel (%p410) target = $region48
        $region47: #{tpu_custom_call.1} parent=11 // pred_region
          _
        $region48: #{tpu_custom_call.1} parent=11 // pred_fallthru
          _
        // Predicated region
        $region49: #{tpu_custom_call.1} parent=11 // pred_check
          %p413 = pneg %p263
        $region50: #{tpu_custom_call.1} parent=11 // pred_check_branch
          %415 = sbr.rel (%p413) target = $region52
        $region51: #{tpu_custom_call.1} parent=11 // pred_region
          _
        $region52: #{tpu_custom_call.1} parent=11 // pred_fallthru
          _
        // Predicated region
        $region53: #{tpu_custom_call.1} parent=11 // pred_check
          %p416 = pneg %p284
        $region54: #{tpu_custom_call.1} parent=11 // pred_check_branch
          %418 = sbr.rel (%p416) target = $region56
        $region55: #{tpu_custom_call.1} parent=11 // pred_region
          _
        $region56: #{tpu_custom_call.1} parent=11 // pred_fallthru
          _
        // Predicated region
        $region57: #{tpu_custom_call.1} parent=11 // pred_check
          %p419 = pneg %p305
        $region58: #{tpu_custom_call.1} parent=11 // pred_check_branch
          %421 = sbr.rel (%p419) target = $region60
        $region59: #{tpu_custom_call.1} parent=11 // pred_region
          _
        $region60: #{tpu_custom_call.1} parent=11 // pred_fallthru
          _
      $region12: #{tpu_custom_call.1} parent=5 // pred_fallthru
        _
      %p422 = scmp.lt.s32.totalorder %s27, 2
      // Predicated region
      $region61: #{tpu_custom_call.1} parent=5 // pred_check
        %p423 = pneg %p422
      $region62: #{tpu_custom_call.1} parent=5 // pred_check_branch
        %425 = sbr.rel (%p423) target = $region64
      $region63: #{tpu_custom_call.1} parent=5 // pred_region
        // Predicated region
        $region65: #{tpu_custom_call.1} parent=63 // pred_check
          %p426 = pneg %p47
        $region66: #{tpu_custom_call.1} parent=63 // pred_check_branch
          %428 = sbr.rel (%p426) target = $region68
        $region67: #{tpu_custom_call.1} parent=63 // pred_region
          %s429 = sand.u32 %s37, 1
          %s430 = scalar_lea.sflag [#allocation3], %s429
          %s431 = sand.u32 %s37, 1
          %s432 = smul.addr %s431, 16
          %s433 = scalar_lea.vmem [#allocation2], %s432
          %s435 = ssub.s32 256, 256
          %436 = vsyncadd %s430, %s435
          %s437 = smul.addr %s27, 2
          %s438 = smul.addr %s437, 128
          %s439 = scalar_lea.hbm %s0, %s438
          %s440 = sshll.u32 %s433, 4
          %s441 = int_to_ptr.vmem [resolvable:$true] %s440
          %446 = dma.hbm_to_vmem [thread:$0]  %s439, 256, %s441, %s430, 128, 128, 8
        $region68: #{tpu_custom_call.1} parent=63 // pred_fallthru
          _
      $region64: #{tpu_custom_call.1} parent=5 // pred_fallthru
        _
      %p447 = scmp.le.s32.totalorder 1, %s27
      %p448 = scmp.lt.s32.totalorder %s27, 3
      %p449 = pnand %p447, %p448
      %p450 = pneg %p449
      // Predicated region
      $region69: #{tpu_custom_call.1} parent=5 // pred_check
        _
      $region70: #{tpu_custom_call.1} parent=5 // pred_check_branch
        %452 = sbr.rel (%p449) target = $region72
      $region71: #{tpu_custom_call.1} parent=5 // pred_region
        %s453 = ssub.s32 %s27, 1
        %s454 = sand.u32 %s40, 1
        %s455 = scalar_lea.sflag [#allocation3], %s454
        %s456 = sand.u32 %s40, 1
        %s457 = smul.addr %s456, 16
        %s458 = scalar_lea.vmem [#allocation2], %s457
        // Predicated region
        $region73: #{tpu_custom_call.1} parent=71 // pred_check
          %p459 = pneg %p53
        $region74: #{tpu_custom_call.1} parent=71 // pred_check_branch
          %461 = sbr.rel (%p459) target = $region76
        $region75: #{tpu_custom_call.1} parent=71 // pred_region
          %462 = dma.done %s455, 256
        $region76: #{tpu_custom_call.1} parent=71 // pred_fallthru
          _
        // Predicated region
        $region77: #{tpu_custom_call.1} parent=71 // pred_check
          %p463 = pneg %p74
        $region78: #{tpu_custom_call.1} parent=71 // pred_check_branch
          %465 = sbr.rel (%p463) target = $region80
        $region79: #{tpu_custom_call.1} parent=71 // pred_region
          %466 = dma.done [#allocation6], 3072
        $region80: #{tpu_custom_call.1} parent=71 // pred_fallthru
          _
        // Predicated region
        $region81: #{tpu_custom_call.1} parent=71 // pred_check
          %p467 = pneg %p116
        $region82: #{tpu_custom_call.1} parent=71 // pred_check_branch
          %469 = sbr.rel (%p467) target = $region84
        $region83: #{tpu_custom_call.1} parent=71 // pred_region
          %470 = dma.done [#allocation6], 1024
        $region84: #{tpu_custom_call.1} parent=71 // pred_fallthru
          _
        // Predicated region
        $region85: #{tpu_custom_call.1} parent=71 // pred_check
          %p471 = pneg %p158
        $region86: #{tpu_custom_call.1} parent=71 // pred_check_branch
          %473 = sbr.rel (%p471) target = $region88
        $region87: #{tpu_custom_call.1} parent=71 // pred_region
          %474 = dma.done [#allocation9], 2048
        $region88: #{tpu_custom_call.1} parent=71 // pred_fallthru
          _
        // Predicated region
        $region89: #{tpu_custom_call.1} parent=71 // pred_check
          %p475 = pneg %p200
        $region90: #{tpu_custom_call.1} parent=71 // pred_check_branch
          %477 = sbr.rel (%p475) target = $region92
        $region91: #{tpu_custom_call.1} parent=71 // pred_region
          %478 = dma.done [#allocation9], 2048
        $region92: #{tpu_custom_call.1} parent=71 // pred_fallthru
          _
        %s479 = sand.u32 %s40, 1
        %s480 = scalar_lea.sflag [#allocation3], %s479
        %s481 = sand.u32 %s40, 1
        %s482 = smul.addr %s481, 16
        %s483 = scalar_lea.vmem [#allocation2], %s482
        %p484 = pneg %p53
        %p485 = pneg %p50
        %p486 = pneg %p74
        %p487 = pneg %p71
        %p488 = pneg %p95
        %p489 = pneg %p92
        %p490 = pneg %p116
        %p491 = pneg %p113
        %p492 = pneg %p137
        %p493 = pneg %p134
        %p494 = pneg %p158
        %p495 = pneg %p155
        %p496 = pneg %p179
        %p497 = pneg %p176
        %p498 = pneg %p200
        %p499 = pneg %p197
        %p500 = pneg %p221
        %p501 = pneg %p218
        %p502 = pneg %p242
        %p503 = pneg %p239
        %p504 = pneg %p263
        %p505 = pneg %p260
        %p506 = pneg %p284
        %p507 = pneg %p281
        %p508 = pneg %p305
        %p509 = pneg %p302
        %p510 = pneg %p331
        %p511 = pneg %p328
        %s512 = sand.u32 %s318, 1
        %s513 = scalar_lea.sflag [#allocation4], %s512
        %s514 = sand.u32 %s318, 1
        %s515 = smul.addr %s514, 16
        %s516 = scalar_lea.vmem [#allocation11], %s515
        %v518 = vld [vmem:[%s458] sm:$0xff]
        %v519 = vld [vmem:[%s458 + $0x8] sm:$0xff]
        %v520 = vpack.c.bf16 %v519, %v518
        %v521 = vld [vmem:[#allocation5] sm:$0xff]
        %v522 = vld [vmem:[#allocation5 + $0x8] sm:$0xf]
        %v523 = vld [vmem:[#allocation5 + $0xc] sm:$0xff]
        %v524 = vld [vmem:[#allocation5 + $0x14] sm:$0xf]
        %v525 = vld [vmem:[#allocation5 + $0x18] sm:$0xff]
        %v526 = vld [vmem:[#allocation5 + $0x20] sm:$0xf]
        %v527 = vld [vmem:[#allocation5 + $0x24] sm:$0xff]
        %v528 = vld [vmem:[#allocation5 + $0x2c] sm:$0xf]
        %v529 = vld [vmem:[#allocation5 + $0x30] sm:$0xff]
        %v530 = vld [vmem:[#allocation5 + $0x38] sm:$0xf]
        %v531 = vld [vmem:[#allocation5 + $0x3c] sm:$0xff]
        %v532 = vld [vmem:[#allocation5 + $0x44] sm:$0xf]
        %v533 = vld [vmem:[#allocation5 + $0x48] sm:$0xff]
        %v534 = vld [vmem:[#allocation5 + $0x50] sm:$0xf]
        %v535 = vld [vmem:[#allocation5 + $0x54] sm:$0xff]
        %v536 = vld [vmem:[#allocation5 + $0x5c] sm:$0xf]
        %v537 = vld [vmem:[#allocation5 + $0x60] sm:$0xff]
        %v538 = vld [vmem:[#allocation5 + $0x68] sm:$0xf]
        %v539 = vld [vmem:[#allocation5 + $0x6c] sm:$0xff]
        %v540 = vld [vmem:[#allocation5 + $0x74] sm:$0xf]
        %v541 = vld [vmem:[#allocation5 + $0x78] sm:$0xff]
        %v542 = vld [vmem:[#allocation5 + $0x80] sm:$0xf]
        %v543 = vld [vmem:[#allocation5 + $0x84] sm:$0xff]
        %v544 = vld [vmem:[#allocation5 + $0x8c] sm:$0xf]
        %v545 = vld [vmem:[#allocation5 + $0x90] sm:$0xff]
        %v546 = vld [vmem:[#allocation5 + $0x98] sm:$0xf]
        %v547 = vld [vmem:[#allocation5 + $0x9c] sm:$0xff]
        %v548 = vld [vmem:[#allocation5 + $0xa4] sm:$0xf]
        %v549 = vld [vmem:[#allocation5 + $0xa8] sm:$0xff]
        %v550 = vld [vmem:[#allocation5 + $0xb0] sm:$0xf]
        %v551 = vld [vmem:[#allocation5 + $0xb4] sm:$0xff]
        %v552 = vld [vmem:[#allocation5 + $0xbc] sm:$0xf]
        %v553 = vld [vmem:[%s2] sm:$0x7]
        %v555 = vlaneseq
        %v556 = vshrl.u32 %v555, 7
        %v557 = vsub.s32 0, %v556
        %v558 = vrot.slane %v553, %v557
        %v559 = vlaneseq
        %v560 = vshrl.u32 %v559, 7
        %v561 = vsub.s32 1, %v560
        %v562 = vrot.slane %v553, %v561
        %v563 = vlaneseq
        %v564 = vshrl.u32 %v563, 7
        %v565 = vsub.s32 2, %v564
        %v566 = vrot.slane %v553, %v565
        %v602 = vunpack.c.l.b16 %v521
        %v603 = vunpack.c.h.b16 %v521
        %v604 = vunpack.c.l.b16 %v522
        %v605 = vunpack.c.l.b16 %v523
        %v606 = vunpack.c.h.b16 %v523
        %v607 = vunpack.c.l.b16 %v524
        %v608 = vunpack.c.l.b16 %v525
        %v609 = vunpack.c.h.b16 %v525
        %v610 = vunpack.c.l.b16 %v526
        %v611 = vunpack.c.l.b16 %v527
        %v612 = vunpack.c.h.b16 %v527
        %v613 = vunpack.c.l.b16 %v528
        %v614 = vunpack.c.l.b16 %v529
        %v615 = vunpack.c.h.b16 %v529
        %v616 = vunpack.c.l.b16 %v530
        %v617 = vunpack.c.l.b16 %v531
        %v618 = vunpack.c.h.b16 %v531
        %v619 = vunpack.c.l.b16 %v532
        %v620 = vunpack.c.l.b16 %v533
        %v621 = vunpack.c.h.b16 %v533
        %v622 = vunpack.c.l.b16 %v534
        %v623 = vunpack.c.l.b16 %v535
        %v624 = vunpack.c.h.b16 %v535
        %v625 = vunpack.c.l.b16 %v536
        %v626 = vunpack.c.l.b16 %v537
        %v627 = vunpack.c.h.b16 %v537
        %v628 = vunpack.c.l.b16 %v538
        %v629 = vunpack.c.l.b16 %v539
        %v630 = vunpack.c.h.b16 %v539
        %v631 = vunpack.c.l.b16 %v540
        %v632 = vunpack.c.l.b16 %v541
        %v633 = vunpack.c.h.b16 %v541
        %v634 = vunpack.c.l.b16 %v542
        %v635 = vunpack.c.l.b16 %v543
        %v636 = vunpack.c.h.b16 %v543
        %v637 = vunpack.c.l.b16 %v544
        %v638 = vunpack.c.l.b16 %v545
        %v639 = vunpack.c.h.b16 %v545
        %v640 = vunpack.c.l.b16 %v546
        %v641 = vunpack.c.l.b16 %v547
        %v642 = vunpack.c.h.b16 %v547
        %v643 = vunpack.c.l.b16 %v548
        %v644 = vunpack.c.l.b16 %v549
        %v645 = vunpack.c.h.b16 %v549
        %v646 = vunpack.c.l.b16 %v550
        %v647 = vunpack.c.l.b16 %v551
        %v648 = vunpack.c.h.b16 %v551
        %v649 = vunpack.c.l.b16 %v552
        %v650 = vpack.c.b16 %v605, %v602
        %v651 = vpack.c.b16 %v606, %v603
        %v652 = vpack.c.b16 %v607, %v604
        %v653 = vpack.c.b16 %v611, %v608
        %v654 = vpack.c.b16 %v612, %v609
        %v655 = vpack.c.b16 %v613, %v610
        %v656 = vpack.c.b16 %v617, %v614
        %v657 = vpack.c.b16 %v618, %v615
        %v658 = vpack.c.b16 %v619, %v616
        %v659 = vpack.c.b16 %v623, %v620
        %v660 = vpack.c.b16 %v624, %v621
        %v661 = vpack.c.b16 %v625, %v622
        %v662 = vpack.c.b16 %v629, %v626
        %v663 = vpack.c.b16 %v630, %v627
        %v664 = vpack.c.b16 %v631, %v628
        %v665 = vpack.c.b16 %v635, %v632
        %v666 = vpack.c.b16 %v636, %v633
        %v667 = vpack.c.b16 %v637, %v634
        %v668 = vpack.c.b16 %v641, %v638
        %v669 = vpack.c.b16 %v642, %v639
        %v670 = vpack.c.b16 %v643, %v640
        %v671 = vpack.c.b16 %v647, %v644
        %v672 = vpack.c.b16 %v648, %v645
        %v673 = vpack.c.b16 %v649, %v646
        %698 = vmatprep.subr.bf16.mxu0 %v651
        %699 = vmatpush1.bf16.msra.mxu0 %v650
        %700 = vmatprep.subr.bf16.mxu0 %v654
        %701 = vmatpush1.bf16.msra.mxu0 %v653
        %702 = vmatprep.subr.bf16.mxu0 %v657
        %703 = vmatpush1.bf16.msra.mxu0 %v656
        %704 = vmatprep.subr.bf16.mxu0 %v660
        %705 = vmatpush1.bf16.msra.mxu0 %v659
        %706 = vmatprep.subr.bf16.mxu0 %v663
        %707 = vmatpush1.bf16.msra.mxu0 %v662
        %708 = vmatprep.subr.bf16.mxu0 %v666
        %709 = vmatpush1.bf16.msra.mxu0 %v665
        %710 = vmatprep.subr.bf16.mxu0 %v669
        %711 = vmatpush1.bf16.msra.mxu0 %v668
        %712 = vmatprep.subr.bf16.mxu0 %v672
        %713 = vmatpush1.bf16.msra.mxu0 %v671
        %714 = vmatprep.subr.bf16.mxu0 0
        %715 = vmatpush1.bf16.msra.mxu0 0
        %716 = vmatprep.subr.bf16.mxu0 0
        %717 = vmatpush1.bf16.msra.mxu0 0
        %718 = vmatprep.subr.bf16.mxu0 0
        %719 = vmatpush1.bf16.msra.mxu0 0
        %720 = vmatprep.subr.bf16.mxu0 0
        %721 = vmatpush1.bf16.msra.mxu0 0
        %722 = vmatprep.subr.bf16.mxu0 0
        %723 = vmatpush1.bf16.msra.mxu0 0
        %724 = vmatprep.subr.bf16.mxu0 0
        %725 = vmatpush1.bf16.msra.mxu0 0
        %726 = vmatprep.subr.bf16.mxu0 0
        %727 = vmatpush1.bf16.msra.mxu0 0
        %728 = vmatprep.subr.bf16.mxu0 0
        %729 = vmatpush1.bf16.msra.mxu0 0
        %730 = vmatprep.mubr.bf16.mxu0 0
        %731 = vmatmul.mubr.bf16.gmra.mrb[0].mxu0 %v520
        %v732 = vpop.f32.mrb[0].mxu0
        %v733 = vadd.f32 %v558, %v732
        %v734 = vpop.f32.mrb[0].mxu0
        %v735 = vadd.f32 %v562, %v734
        %v736 = vpop.f32.mrb[0].mxu0
        %v737 = vadd.f32 %v558, %v736
        %v738 = vpop.f32.mrb[0].mxu0
        %v739 = vadd.f32 %v562, %v738
        %740 = vdwg.mxu0
        %741 = vmatprep.subr.bf16.mxu0 0
        %742 = vmatpush1.bf16.msra.mxu0 %v652
        %743 = vmatprep.subr.bf16.mxu0 0
        %744 = vmatpush1.bf16.msra.mxu0 %v655
        %745 = vmatprep.subr.bf16.mxu0 0
        %746 = vmatpush1.bf16.msra.mxu0 %v658
        %747 = vmatprep.subr.bf16.mxu0 0
        %748 = vmatpush1.bf16.msra.mxu0 %v661
        %749 = vmatprep.subr.bf16.mxu0 0
        %750 = vmatpush1.bf16.msra.mxu0 %v664
        %751 = vmatprep.subr.bf16.mxu0 0
        %752 = vmatpush1.bf16.msra.mxu0 %v667
        %753 = vmatprep.subr.bf16.mxu0 0
        %754 = vmatpush1.bf16.msra.mxu0 %v670
        %755 = vmatprep.subr.bf16.mxu0 0
        %756 = vmatpush1.bf16.msra.mxu0 %v673
        %757 = vmatprep.subr.bf16.mxu0 0
        %758 = vmatpush1.bf16.msra.mxu0 0
        %759 = vmatprep.subr.bf16.mxu0 0
        %760 = vmatpush1.bf16.msra.mxu0 0
        %761 = vmatprep.subr.bf16.mxu0 0
        %762 = vmatpush1.bf16.msra.mxu0 0
        %763 = vmatprep.subr.bf16.mxu0 0
        %764 = vmatpush1.bf16.msra.mxu0 0
        %765 = vmatprep.subr.bf16.mxu0 0
        %766 = vmatpush1.bf16.msra.mxu0 0
        %767 = vmatprep.subr.bf16.mxu0 0
        %768 = vmatpush1.bf16.msra.mxu0 0
        %769 = vmatprep.subr.bf16.mxu0 0
        %770 = vmatpush1.bf16.msra.mxu0 0
        %771 = vmatprep.subr.bf16.mxu0 0
        %772 = vmatpush1.bf16.msra.mxu0 0
        %773 = vmatprep.mubr.bf16.mxu0 0
        %774 = vmatmul.mubr.bf16.gmra.mrb[0].mxu0 %v520
        %v775 = vpop.f32.mrb[0].mxu0
        %v776 = vadd.f32 %v566, %v775
        %v777 = vpop.f32.mrb[0].mxu0
        %v778 = vpop.f32.mrb[0].mxu0
        %v779 = vadd.f32 %v566, %v778
        %v780 = vpop.f32.mrb[0].mxu0
        %781 = vdwg.mxu0
        %v782 = vmul.f32 %v733, 0.17677669
        %v783 = vmul.f32 %v737, 0.17677669
        %v784 = vpack.c.bf16 %v783, %v782
        %v785 = vpack.c.bf16 %v739, %v735
        %v786 = vpack.c.bf16 %v779, %v776
        %vm787 = vcmask 261120
        %v789 = vsel %vm787, %v784, 0
        %v792 = vsel %vm787, %v785, 0
        %794 = vmatprep.subr.bf16.mxu0 0
        %795 = vmatpush1.bf16.xpose.msra.mxu0 %v792
        %796 = vmatprep.subr.bf16.mxu0 0
        %797 = vmatpush1.bf16.xpose.msra.mxu0 0
        %798 = vmatprep.subr.bf16.mxu0 0
        %799 = vmatpush1.bf16.xpose.msra.mxu0 0
        %800 = vmatprep.subr.bf16.mxu0 0
        %801 = vmatpush1.bf16.xpose.msra.mxu0 0
        %802 = vmatprep.subr.bf16.mxu0 0
        %803 = vmatpush1.bf16.xpose.msra.mxu0 0
        %804 = vmatprep.subr.bf16.mxu0 0
        %805 = vmatpush1.bf16.xpose.msra.mxu0 0
        %806 = vmatprep.subr.bf16.mxu0 0
        %807 = vmatpush1.bf16.xpose.msra.mxu0 0
        %808 = vmatprep.subr.bf16.mxu0 0
        %809 = vmatpush1.bf16.xpose.msra.mxu0 0
        %810 = vmatprep.subr.bf16.mxu0 0
        %811 = vmatpush1.bf16.xpose.msra.mxu0 0
        %812 = vmatprep.subr.bf16.mxu0 0
        %813 = vmatpush1.bf16.xpose.msra.mxu0 0
        %814 = vmatprep.subr.bf16.mxu0 0
        %815 = vmatpush1.bf16.xpose.msra.mxu0 0
        %816 = vmatprep.subr.bf16.mxu0 0
        %817 = vmatpush1.bf16.xpose.msra.mxu0 0
        %818 = vmatprep.subr.bf16.mxu0 0
        %819 = vmatpush1.bf16.xpose.msra.mxu0 0
        %820 = vmatprep.subr.bf16.mxu0 0
        %821 = vmatpush1.bf16.xpose.msra.mxu0 0
        %822 = vmatprep.subr.bf16.mxu0 0
        %823 = vmatpush1.bf16.xpose.msra.mxu0 0
        %824 = vmatprep.subr.bf16.mxu0 0
        %825 = vmatpush1.bf16.xpose.msra.mxu0 0
        %826 = vmatprep.mubr.bf16.mxu0 0
        %827 = vmatmul.mubr.bf16.gmra.mrb[0].mxu0 %v789
        %v828 = vpop.f32.mrb[0].mxu0
        %v829 = vadd.f32 0.0, %v828
        %v830 = vpop.f32.mrb[0].mxu0
        %v831 = vpop.f32.mrb[0].mxu0
        %v832 = vadd.f32 0.0, %v831
        %v833 = vpop.f32.mrb[0].mxu0
        %834 = vdwg.mxu0
        %vm835 = vcmask 130048
        %v836 = vsel %vm835, %v829, -inf
        %837 = vmax.xlane.f32.xlu0 %v836
        %v838 = vpop.xlane.xlu0 %837
        %v839 = vsel %vm835, %v832, -inf
        %840 = vmax.xlane.f32.xlu0 %v839
        %v841 = vpop.xlane.xlu0 %840
        %v842 = vsub.f32 %v829, %v838
        %v843 = vsub.f32 %v832, %v841
        %v844 = vmul.f32 %v842, 1.442695
        %v845 = vpow.pop %v844
        %v846 = vmul.f32 %v843, 1.442695
        %v847 = vpow.pop %v846
        %v848 = vsel %vm835, %v845, 0.0
        %849 = vadd.xlane.f32.xlu0 %v848
        %v850 = vpop.xlane.xlu0 %849
        %v851 = vsel %vm835, %v847, 0.0
        %852 = vadd.xlane.f32.xlu0 %v851
        %v853 = vpop.xlane.xlu0 %852
        %v854 = vrcp.pop %v850
        %v855 = vrcp.pop %v853
        %v856 = vmul.f32 %v845, %v854
        %v857 = vmul.f32 %v847, %v855
        %v858 = vpack.c.bf16 %v857, %v856
        %v860 = vsel %vm835, %v858, 0
        %862 = vmatprep.subr.bf16.mxu0 0
        %863 = vmatpush1.bf16.msra.mxu0 %v786
        %864 = vmatprep.subr.bf16.mxu0 0
        %865 = vmatpush1.bf16.msra.mxu0 0
        %866 = vmatprep.subr.bf16.mxu0 0
        %867 = vmatpush1.bf16.msra.mxu0 0
        %868 = vmatprep.subr.bf16.mxu0 0
        %869 = vmatpush1.bf16.msra.mxu0 0
        %870 = vmatprep.subr.bf16.mxu0 0
        %871 = vmatpush1.bf16.msra.mxu0 0
        %872 = vmatprep.subr.bf16.mxu0 0
        %873 = vmatpush1.bf16.msra.mxu0 0
        %874 = vmatprep.subr.bf16.mxu0 0
        %875 = vmatpush1.bf16.msra.mxu0 0
        %876 = vmatprep.subr.bf16.mxu0 0
        %877 = vmatpush1.bf16.msra.mxu0 0
        %878 = vmatprep.subr.bf16.mxu0 0
        %879 = vmatpush1.bf16.msra.mxu0 0
        %880 = vmatprep.subr.bf16.mxu0 0
        %881 = vmatpush1.bf16.msra.mxu0 0
        %882 = vmatprep.subr.bf16.mxu0 0
        %883 = vmatpush1.bf16.msra.mxu0 0
        %884 = vmatprep.subr.bf16.mxu0 0
        %885 = vmatpush1.bf16.msra.mxu0 0
        %886 = vmatprep.subr.bf16.mxu0 0
        %887 = vmatpush1.bf16.msra.mxu0 0
        %888 = vmatprep.subr.bf16.mxu0 0
        %889 = vmatpush1.bf16.msra.mxu0 0
        %890 = vmatprep.subr.bf16.mxu0 0
        %891 = vmatpush1.bf16.msra.mxu0 0
        %892 = vmatprep.subr.bf16.mxu0 0
        %893 = vmatpush1.bf16.msra.mxu0 0
        %894 = vmatprep.mubr.bf16.mxu0 0
        %895 = vmatmul.mubr.bf16.gmra.mrb[0].mxu0 %v860
        %v896 = vpop.f32.mrb[0].mxu0
        %v897 = vadd.f32 0.0, %v896
        %v898 = vpop.f32.mrb[0].mxu0
        %v899 = vpop.f32.mrb[0].mxu0
        %v900 = vadd.f32 0.0, %v899
        %v901 = vpop.f32.mrb[0].mxu0
        %902 = vdwg.mxu0
        %v903 = vpack.c.bf16 %v900, %v897
        %v904 = vld [vmem:[#allocation7] sm:$0xf]
        %v905 = vld [vmem:[#allocation7 + $0x4] sm:$0xf]
        %v906 = vld [vmem:[#allocation7 + $0x8] sm:$0xf]
        %v907 = vld [vmem:[#allocation7 + $0xc] sm:$0xf]
        %909 = vrot.lane.b32.xlu0 %v784, 96
        %v910 = vpop.permute.xlu0 %909
        %912 = vrot.lane.b32.xlu0 %v785, 96
        %v913 = vpop.permute.xlu0 %912
        %v915 = vsel %vm787, %v910, 0
        %v918 = vsel %vm787, %v913, 0
        %920 = vmatprep.subr.bf16.mxu0 0
        %921 = vmatpush1.bf16.xpose.msra.mxu0 %v918
        %922 = vmatprep.subr.bf16.mxu0 0
        %923 = vmatpush1.bf16.xpose.msra.mxu0 0
        %924 = vmatprep.subr.bf16.mxu0 0
        %925 = vmatpush1.bf16.xpose.msra.mxu0 0
        %926 = vmatprep.subr.bf16.mxu0 0
        %927 = vmatpush1.bf16.xpose.msra.mxu0 0
        %928 = vmatprep.subr.bf16.mxu0 0
        %929 = vmatpush1.bf16.xpose.msra.mxu0 0
        %930 = vmatprep.subr.bf16.mxu0 0
        %931 = vmatpush1.bf16.xpose.msra.mxu0 0
        %932 = vmatprep.subr.bf16.mxu0 0
        %933 = vmatpush1.bf16.xpose.msra.mxu0 0
        %934 = vmatprep.subr.bf16.mxu0 0
        %935 = vmatpush1.bf16.xpose.msra.mxu0 0
        %936 = vmatprep.subr.bf16.mxu0 0
        %937 = vmatpush1.bf16.xpose.msra.mxu0 0
        %938 = vmatprep.subr.bf16.mxu0 0
        %939 = vmatpush1.bf16.xpose.msra.mxu0 0
        %940 = vmatprep.subr.bf16.mxu0 0
        %941 = vmatpush1.bf16.xpose.msra.mxu0 0
        %942 = vmatprep.subr.bf16.mxu0 0
        %943 = vmatpush1.bf16.xpose.msra.mxu0 0
        %944 = vmatprep.subr.bf16.mxu0 0
        %945 = vmatpush1.bf16.xpose.msra.mxu0 0
        %946 = vmatprep.subr.bf16.mxu0 0
        %947 = vmatpush1.bf16.xpose.msra.mxu0 0
        %948 = vmatprep.subr.bf16.mxu0 0
        %949 = vmatpush1.bf16.xpose.msra.mxu0 0
        %950 = vmatprep.subr.bf16.mxu0 0
        %951 = vmatpush1.bf16.xpose.msra.mxu0 0
        %952 = vmatprep.mubr.bf16.mxu0 0
        %953 = vmatmul.mubr.bf16.gmra.mrb[0].mxu0 %v915
        %v954 = vpop.f32.mrb[0].mxu0
        %v955 = vadd.f32 0.0, %v954
        %v956 = vpop.f32.mrb[0].mxu0
        %v957 = vpop.f32.mrb[0].mxu0
        %v958 = vadd.f32 0.0, %v957
        %v959 = vpop.f32.mrb[0].mxu0
        %960 = vdwg.mxu0
        %v961 = vsel %vm835, %v955, -inf
        %962 = vmax.xlane.f32.xlu0 %v961
        %v963 = vpop.xlane.xlu0 %962
        %v964 = vsel %vm835, %v958, -inf
        %965 = vmax.xlane.f32.xlu0 %v964
        %v966 = vpop.xlane.xlu0 %965
        %v967 = vsub.f32 %v955, %v963
        %v968 = vsub.f32 %v958, %v966
        %v969 = vmul.f32 %v967, 1.442695
        %v970 = vpow.pop %v969
        %v971 = vmul.f32 %v968, 1.442695
        %v972 = vpow.pop %v971
        %v973 = vsel %vm835, %v970, 0.0
        %974 = vadd.xlane.f32.xlu0 %v973
        %v975 = vpop.xlane.xlu0 %974
        %v976 = vsel %vm835, %v972, 0.0
        %977 = vadd.xlane.f32.xlu0 %v976
        %v978 = vpop.xlane.xlu0 %977
        %v979 = vrcp.pop %v975
        %v980 = vrcp.pop %v978
        %v981 = vmul.f32 %v970, %v979
        %v982 = vmul.f32 %v972, %v980
        %v983 = vpack.c.bf16 %v982, %v981
        %985 = vrot.lane.b32.xlu0 %v786, 96
        %v986 = vpop.permute.xlu0 %985
        %v989 = vsel %vm835, %v983, 0
        %991 = vmatprep.subr.bf16.mxu0 0
        %992 = vmatpush1.bf16.msra.mxu0 %v986
        %993 = vmatprep.subr.bf16.mxu0 0
        %994 = vmatpush1.bf16.msra.mxu0 0
        %995 = vmatprep.subr.bf16.mxu0 0
        %996 = vmatpush1.bf16.msra.mxu0 0
        %997 = vmatprep.subr.bf16.mxu0 0
        %998 = vmatpush1.bf16.msra.mxu0 0
        %999 = vmatprep.subr.bf16.mxu0 0
        %1000 = vmatpush1.bf16.msra.mxu0 0
        %1001 = vmatprep.subr.bf16.mxu0 0
        %1002 = vmatpush1.bf16.msra.mxu0 0
        %1003 = vmatprep.subr.bf16.mxu0 0
        %1004 = vmatpush1.bf16.msra.mxu0 0
        %1005 = vmatprep.subr.bf16.mxu0 0
        %1006 = vmatpush1.bf16.msra.mxu0 0
        %1007 = vmatprep.subr.bf16.mxu0 0
        %1008 = vmatpush1.bf16.msra.mxu0 0
        %1009 = vmatprep.subr.bf16.mxu0 0
        %1010 = vmatpush1.bf16.msra.mxu0 0
        %1011 = vmatprep.subr.bf16.mxu0 0
        %1012 = vmatpush1.bf16.msra.mxu0 0
        %1013 = vmatprep.subr.bf16.mxu0 0
        %1014 = vmatpush1.bf16.msra.mxu0 0
        %1015 = vmatprep.subr.bf16.mxu0 0
        %1016 = vmatpush1.bf16.msra.mxu0 0
        %1017 = vmatprep.subr.bf16.mxu0 0
        %1018 = vmatpush1.bf16.msra.mxu0 0
        %1019 = vmatprep.subr.bf16.mxu0 0
        %1020 = vmatpush1.bf16.msra.mxu0 0
        %1021 = vmatprep.subr.bf16.mxu0 0
        %1022 = vmatpush1.bf16.msra.mxu0 0
        %1023 = vmatprep.mubr.bf16.mxu0 0
        %1024 = vmatmul.mubr.bf16.gmra.mrb[0].mxu0 %v989
        %v1025 = vpop.f32.mrb[0].mxu0
        %v1026 = vadd.f32 0.0, %v1025
        %v1027 = vpop.f32.mrb[0].mxu0
        %v1028 = vpop.f32.mrb[0].mxu0
        %v1029 = vadd.f32 0.0, %v1028
        %v1030 = vpop.f32.mrb[0].mxu0
        %1031 = vdwg.mxu0
        %v1032 = vpack.c.bf16 %v1029, %v1026
        %v1033 = vld [vmem:[#allocation7 + $0x10] sm:$0xf]
        %v1034 = vld [vmem:[#allocation7 + $0x14] sm:$0xf]
        %v1035 = vld [vmem:[#allocation7 + $0x18] sm:$0xf]
        %v1036 = vld [vmem:[#allocation7 + $0x1c] sm:$0xf]
        %v1041 = vunpack.c.l.b16 %v1033
        %v1042 = vunpack.c.l.b16 %v1034
        %v1043 = vunpack.c.l.b16 %v1035
        %v1044 = vunpack.c.l.b16 %v1036
        %v1045 = vpack.c.b16 %v1042, %v1041
        %v1046 = vpack.c.b16 %v1044, %v1043
        %v1050 = vsel %vm787, %v1032, 0
        %1052 = vmatprep.subr.bf16.mxu0 0
        %1053 = vmatpush1.bf16.msra.mxu0 %v1045
        %1054 = vmatprep.subr.bf16.mxu0 0
        %1055 = vmatpush1.bf16.msra.mxu0 %v1046
        %1056 = vmatprep.subr.bf16.mxu0 0
        %1057 = vmatpush1.bf16.msra.mxu0 0
        %1058 = vmatprep.subr.bf16.mxu0 0
        %1059 = vmatpush1.bf16.msra.mxu0 0
        %1060 = vmatprep.subr.bf16.mxu0 0
        %1061 = vmatpush1.bf16.msra.mxu0 0
        %1062 = vmatprep.subr.bf16.mxu0 0
        %1063 = vmatpush1.bf16.msra.mxu0 0
        %1064 = vmatprep.subr.bf16.mxu0 0
        %1065 = vmatpush1.bf16.msra.mxu0 0
        %1066 = vmatprep.subr.bf16.mxu0 0
        %1067 = vmatpush1.bf16.msra.mxu0 0
        %1068 = vmatprep.subr.bf16.mxu0 0
        %1069 = vmatpush1.bf16.msra.mxu0 0
        %1070 = vmatprep.subr.bf16.mxu0 0
        %1071 = vmatpush1.bf16.msra.mxu0 0
        %1072 = vmatprep.subr.bf16.mxu0 0
        %1073 = vmatpush1.bf16.msra.mxu0 0
        %1074 = vmatprep.subr.bf16.mxu0 0
        %1075 = vmatpush1.bf16.msra.mxu0 0
        %1076 = vmatprep.subr.bf16.mxu0 0
        %1077 = vmatpush1.bf16.msra.mxu0 0
        %1078 = vmatprep.subr.bf16.mxu0 0
        %1079 = vmatpush1.bf16.msra.mxu0 0
        %1080 = vmatprep.subr.bf16.mxu0 0
        %1081 = vmatpush1.bf16.msra.mxu0 0
        %1082 = vmatprep.subr.bf16.mxu0 0
        %1083 = vmatpush1.bf16.msra.mxu0 0
        %1084 = vmatprep.mubr.bf16.mxu0 0
        %1085 = vmatmul.mubr.bf16.gmra.mrb[0].mxu0 %v1050
        %v1086 = vpop.f32.mrb[0].mxu0
        %v1087 = vadd.f32 0.0, %v1086
        %v1088 = vpop.f32.mrb[0].mxu0
        %v1089 = vpop.f32.mrb[0].mxu0
        %v1090 = vadd.f32 0.0, %v1089
        %v1091 = vpop.f32.mrb[0].mxu0
        %1092 = vdwg.mxu0
        %v1097 = vunpack.c.l.b16 %v904
        %v1098 = vunpack.c.l.b16 %v905
        %v1099 = vunpack.c.l.b16 %v906
        %v1100 = vunpack.c.l.b16 %v907
        %v1101 = vpack.c.b16 %v1098, %v1097
        %v1102 = vpack.c.b16 %v1100, %v1099
        %v1106 = vsel %vm787, %v903, 0
        %1108 = vmatprep.subr.bf16.mxu0 0
        %1109 = vmatpush1.bf16.msra.mxu0 %v1101
        %1110 = vmatprep.subr.bf16.mxu0 0
        %1111 = vmatpush1.bf16.msra.mxu0 %v1102
        %1112 = vmatprep.subr.bf16.mxu0 0
        %1113 = vmatpush1.bf16.msra.mxu0 0
        %1114 = vmatprep.subr.bf16.mxu0 0
        %1115 = vmatpush1.bf16.msra.mxu0 0
        %1116 = vmatprep.subr.bf16.mxu0 0
        %1117 = vmatpush1.bf16.msra.mxu0 0
        %1118 = vmatprep.subr.bf16.mxu0 0
        %1119 = vmatpush1.bf16.msra.mxu0 0
        %1120 = vmatprep.subr.bf16.mxu0 0
        %1121 = vmatpush1.bf16.msra.mxu0 0
        %1122 = vmatprep.subr.bf16.mxu0 0
        %1123 = vmatpush1.bf16.msra.mxu0 0
        %1124 = vmatprep.subr.bf16.mxu0 0
        %1125 = vmatpush1.bf16.msra.mxu0 0
        %1126 = vmatprep.subr.bf16.mxu0 0
        %1127 = vmatpush1.bf16.msra.mxu0 0
        %1128 = vmatprep.subr.bf16.mxu0 0
        %1129 = vmatpush1.bf16.msra.mxu0 0
        %1130 = vmatprep.subr.bf16.mxu0 0
        %1131 = vmatpush1.bf16.msra.mxu0 0
        %1132 = vmatprep.subr.bf16.mxu0 0
        %1133 = vmatpush1.bf16.msra.mxu0 0
        %1134 = vmatprep.subr.bf16.mxu0 0
        %1135 = vmatpush1.bf16.msra.mxu0 0
        %1136 = vmatprep.subr.bf16.mxu0 0
        %1137 = vmatpush1.bf16.msra.mxu0 0
        %1138 = vmatprep.subr.bf16.mxu0 0
        %1139 = vmatpush1.bf16.msra.mxu0 0
        %1140 = vmatprep.mubr.bf16.mxu0 0
        %1141 = vmatmul.mubr.bf16.gmra.mrb[0].mxu0 %v1106
        %v1142 = vpop.f32.mrb[0].mxu0
        %v1143 = vadd.f32 %v1087, %v1142
        %v1144 = vpop.f32.mrb[0].mxu0
        %v1145 = vpop.f32.mrb[0].mxu0
        %v1146 = vadd.f32 %v1090, %v1145
        %v1147 = vpop.f32.mrb[0].mxu0
        %1148 = vdwg.mxu0
        %1149 = vrot.lane.b32.xlu0 %v784, 64
        %v1150 = vpop.permute.xlu0 %1149
        %1151 = vrot.lane.b32.xlu0 %v785, 64
        %v1152 = vpop.permute.xlu0 %1151
        %v1154 = vsel %vm787, %v1150, 0
        %v1157 = vsel %vm787, %v1152, 0
        %1159 = vmatprep.subr.bf16.mxu0 0
        %1160 = vmatpush1.bf16.xpose.msra.mxu0 %v1157
        %1161 = vmatprep.subr.bf16.mxu0 0
        %1162 = vmatpush1.bf16.xpose.msra.mxu0 0
        %1163 = vmatprep.subr.bf16.mxu0 0
        %1164 = vmatpush1.bf16.xpose.msra.mxu0 0
        %1165 = vmatprep.subr.bf16.mxu0 0
        %1166 = vmatpush1.bf16.xpose.msra.mxu0 0
        %1167 = vmatprep.subr.bf16.mxu0 0
        %1168 = vmatpush1.bf16.xpose.msra.mxu0 0
        %1169 = vmatprep.subr.bf16.mxu0 0
        %1170 = vmatpush1.bf16.xpose.msra.mxu0 0
        %1171 = vmatprep.subr.bf16.mxu0 0
        %1172 = vmatpush1.bf16.xpose.msra.mxu0 0
        %1173 = vmatprep.subr.bf16.mxu0 0
        %1174 = vmatpush1.bf16.xpose.msra.mxu0 0
        %1175 = vmatprep.subr.bf16.mxu0 0
        %1176 = vmatpush1.bf16.xpose.msra.mxu0 0
        %1177 = vmatprep.subr.bf16.mxu0 0
        %1178 = vmatpush1.bf16.xpose.msra.mxu0 0
        %1179 = vmatprep.subr.bf16.mxu0 0
        %1180 = vmatpush1.bf16.xpose.msra.mxu0 0
        %1181 = vmatprep.subr.bf16.mxu0 0
        %1182 = vmatpush1.bf16.xpose.msra.mxu0 0
        %1183 = vmatprep.subr.bf16.mxu0 0
        %1184 = vmatpush1.bf16.xpose.msra.mxu0 0
        %1185 = vmatprep.subr.bf16.mxu0 0
        %1186 = vmatpush1.bf16.xpose.msra.mxu0 0
        %1187 = vmatprep.subr.bf16.mxu0 0
        %1188 = vmatpush1.bf16.xpose.msra.mxu0 0
        %1189 = vmatprep.subr.bf16.mxu0 0
        %1190 = vmatpush1.bf16.xpose.msra.mxu0 0
        %1191 = vmatprep.mubr.bf16.mxu0 0
        %1192 = vmatmul.mubr.bf16.gmra.mrb[0].mxu0 %v1154
        %v1193 = vpop.f32.mrb[0].mxu0
        %v1194 = vadd.f32 0.0, %v1193
        %v1195 = vpop.f32.mrb[0].mxu0
        %v1196 = vpop.f32.mrb[0].mxu0
        %v1197 = vadd.f32 0.0, %v1196
        %v1198 = vpop.f32.mrb[0].mxu0
        %1199 = vdwg.mxu0
        %v1200 = vsel %vm835, %v1194, -inf
        %1201 = vmax.xlane.f32.xlu0 %v1200
        %v1202 = vpop.xlane.xlu0 %1201
        %v1203 = vsel %vm835, %v1197, -inf
        %1204 = vmax.xlane.f32.xlu0 %v1203
        %v1205 = vpop.xlane.xlu0 %1204
        %v1206 = vsub.f32 %v1194, %v1202
        %v1207 = vsub.f32 %v1197, %v1205
        %v1208 = vmul.f32 %v1206, 1.442695
        %v1209 = vpow.pop %v1208
        %v1210 = vmul.f32 %v1207, 1.442695
        %v1211 = vpow.pop %v1210
        %v1212 = vsel %vm835, %v1209, 0.0
        %1213 = vadd.xlane.f32.xlu0 %v1212
        %v1214 = vpop.xlane.xlu0 %1213
        %v1215 = vsel %vm835, %v1211, 0.0
        %1216 = vadd.xlane.f32.xlu0 %v1215
        %v1217 = vpop.xlane.xlu0 %1216
        %v1218 = vrcp.pop %v1214
        %v1219 = vrcp.pop %v1217
        %v1220 = vmul.f32 %v1209, %v1218
        %v1221 = vmul.f32 %v1211, %v1219
        %v1222 = vpack.c.bf16 %v1221, %v1220
        %1223 = vrot.lane.b32.xlu0 %v786, 64
        %v1224 = vpop.permute.xlu0 %1223
        %v1227 = vsel %vm835, %v1222, 0
        %1229 = vmatprep.subr.bf16.mxu0 0
        %1230 = vmatpush1.bf16.msra.mxu0 %v1224
        %1231 = vmatprep.subr.bf16.mxu0 0
        %1232 = vmatpush1.bf16.msra.mxu0 0
        %1233 = vmatprep.subr.bf16.mxu0 0
        %1234 = vmatpush1.bf16.msra.mxu0 0
        %1235 = vmatprep.subr.bf16.mxu0 0
        %1236 = vmatpush1.bf16.msra.mxu0 0
        %1237 = vmatprep.subr.bf16.mxu0 0
        %1238 = vmatpush1.bf16.msra.mxu0 0
        %1239 = vmatprep.subr.bf16.mxu0 0
        %1240 = vmatpush1.bf16.msra.mxu0 0
        %1241 = vmatprep.subr.bf16.mxu0 0
        %1242 = vmatpush1.bf16.msra.mxu0 0
        %1243 = vmatprep.subr.bf16.mxu0 0
        %1244 = vmatpush1.bf16.msra.mxu0 0
        %1245 = vmatprep.subr.bf16.mxu0 0
        %1246 = vmatpush1.bf16.msra.mxu0 0
        %1247 = vmatprep.subr.bf16.mxu0 0
        %1248 = vmatpush1.bf16.msra.mxu0 0
        %1249 = vmatprep.subr.bf16.mxu0 0
        %1250 = vmatpush1.bf16.msra.mxu0 0
        %1251 = vmatprep.subr.bf16.mxu0 0
        %1252 = vmatpush1.bf16.msra.mxu0 0
        %1253 = vmatprep.subr.bf16.mxu0 0
        %1254 = vmatpush1.bf16.msra.mxu0 0
        %1255 = vmatprep.subr.bf16.mxu0 0
        %1256 = vmatpush1.bf16.msra.mxu0 0
        %1257 = vmatprep.subr.bf16.mxu0 0
        %1258 = vmatpush1.bf16.msra.mxu0 0
        %1259 = vmatprep.subr.bf16.mxu0 0
        %1260 = vmatpush1.bf16.msra.mxu0 0
        %1261 = vmatprep.mubr.bf16.mxu0 0
        %1262 = vmatmul.mubr.bf16.gmra.mrb[0].mxu0 %v1227
        %v1263 = vpop.f32.mrb[0].mxu0
        %v1264 = vadd.f32 0.0, %v1263
        %v1265 = vpop.f32.mrb[0].mxu0
        %v1266 = vpop.f32.mrb[0].mxu0
        %v1267 = vadd.f32 0.0, %v1266
        %v1268 = vpop.f32.mrb[0].mxu0
        %1269 = vdwg.mxu0
        %v1270 = vpack.c.bf16 %v1267, %v1264
        %v1271 = vld [vmem:[#allocation7 + $0x20] sm:$0xf]
        %v1272 = vld [vmem:[#allocation7 + $0x24] sm:$0xf]
        %v1273 = vld [vmem:[#allocation7 + $0x28] sm:$0xf]
        %v1274 = vld [vmem:[#allocation7 + $0x2c] sm:$0xf]
        %v1279 = vunpack.c.l.b16 %v1271
        %v1280 = vunpack.c.l.b16 %v1272
        %v1281 = vunpack.c.l.b16 %v1273
        %v1282 = vunpack.c.l.b16 %v1274
        %v1283 = vpack.c.b16 %v1280, %v1279
        %v1284 = vpack.c.b16 %v1282, %v1281
        %v1288 = vsel %vm787, %v1270, 0
        %1290 = vmatprep.subr.bf16.mxu0 0
        %1291 = vmatpush1.bf16.msra.mxu0 %v1283
        %1292 = vmatprep.subr.bf16.mxu0 0
        %1293 = vmatpush1.bf16.msra.mxu0 %v1284
        %1294 = vmatprep.subr.bf16.mxu0 0
        %1295 = vmatpush1.bf16.msra.mxu0 0
        %1296 = vmatprep.subr.bf16.mxu0 0
        %1297 = vmatpush1.bf16.msra.mxu0 0
        %1298 = vmatprep.subr.bf16.mxu0 0
        %1299 = vmatpush1.bf16.msra.mxu0 0
        %1300 = vmatprep.subr.bf16.mxu0 0
        %1301 = vmatpush1.bf16.msra.mxu0 0
        %1302 = vmatprep.subr.bf16.mxu0 0
        %1303 = vmatpush1.bf16.msra.mxu0 0
        %1304 = vmatprep.subr.bf16.mxu0 0
        %1305 = vmatpush1.bf16.msra.mxu0 0
        %1306 = vmatprep.subr.bf16.mxu0 0
        %1307 = vmatpush1.bf16.msra.mxu0 0
        %1308 = vmatprep.subr.bf16.mxu0 0
        %1309 = vmatpush1.bf16.msra.mxu0 0
        %1310 = vmatprep.subr.bf16.mxu0 0
        %1311 = vmatpush1.bf16.msra.mxu0 0
        %1312 = vmatprep.subr.bf16.mxu0 0
        %1313 = vmatpush1.bf16.msra.mxu0 0
        %1314 = vmatprep.subr.bf16.mxu0 0
        %1315 = vmatpush1.bf16.msra.mxu0 0
        %1316 = vmatprep.subr.bf16.mxu0 0
        %1317 = vmatpush1.bf16.msra.mxu0 0
        %1318 = vmatprep.subr.bf16.mxu0 0
        %1319 = vmatpush1.bf16.msra.mxu0 0
        %1320 = vmatprep.subr.bf16.mxu0 0
        %1321 = vmatpush1.bf16.msra.mxu0 0
        %1322 = vmatprep.mubr.bf16.mxu0 0
        %1323 = vmatmul.mubr.bf16.gmra.mrb[0].mxu0 %v1288
        %v1324 = vpop.f32.mrb[0].mxu0
        %v1325 = vadd.f32 0.0, %v1324
        %v1326 = vpop.f32.mrb[0].mxu0
        %v1327 = vpop.f32.mrb[0].mxu0
        %v1328 = vadd.f32 0.0, %v1327
        %v1329 = vpop.f32.mrb[0].mxu0
        %1330 = vdwg.mxu0
        %v1331 = vadd.f32 %v1143, %v1325
        %v1332 = vadd.f32 %v1146, %v1328
        %1333 = vrot.lane.b32.xlu0 %v784, 32
        %v1334 = vpop.permute.xlu0 %1333
        %1335 = vrot.lane.b32.xlu0 %v785, 32
        %v1336 = vpop.permute.xlu0 %1335
        %v1338 = vsel %vm787, %v1334, 0
        %v1341 = vsel %vm787, %v1336, 0
        %1343 = vmatprep.subr.bf16.mxu0 0
        %1344 = vmatpush1.bf16.xpose.msra.mxu0 %v1341
        %1345 = vmatprep.subr.bf16.mxu0 0
        %1346 = vmatpush1.bf16.xpose.msra.mxu0 0
        %1347 = vmatprep.subr.bf16.mxu0 0
        %1348 = vmatpush1.bf16.xpose.msra.mxu0 0
        %1349 = vmatprep.subr.bf16.mxu0 0
        %1350 = vmatpush1.bf16.xpose.msra.mxu0 0
        %1351 = vmatprep.subr.bf16.mxu0 0
        %1352 = vmatpush1.bf16.xpose.msra.mxu0 0
        %1353 = vmatprep.subr.bf16.mxu0 0
        %1354 = vmatpush1.bf16.xpose.msra.mxu0 0
        %1355 = vmatprep.subr.bf16.mxu0 0
        %1356 = vmatpush1.bf16.xpose.msra.mxu0 0
        %1357 = vmatprep.subr.bf16.mxu0 0
        %1358 = vmatpush1.bf16.xpose.msra.mxu0 0
        %1359 = vmatprep.subr.bf16.mxu0 0
        %1360 = vmatpush1.bf16.xpose.msra.mxu0 0
        %1361 = vmatprep.subr.bf16.mxu0 0
        %1362 = vmatpush1.bf16.xpose.msra.mxu0 0
        %1363 = vmatprep.subr.bf16.mxu0 0
        %1364 = vmatpush1.bf16.xpose.msra.mxu0 0
        %1365 = vmatprep.subr.bf16.mxu0 0
        %1366 = vmatpush1.bf16.xpose.msra.mxu0 0
        %1367 = vmatprep.subr.bf16.mxu0 0
        %1368 = vmatpush1.bf16.xpose.msra.mxu0 0
        %1369 = vmatprep.subr.bf16.mxu0 0
        %1370 = vmatpush1.bf16.xpose.msra.mxu0 0
        %1371 = vmatprep.subr.bf16.mxu0 0
        %1372 = vmatpush1.bf16.xpose.msra.mxu0 0
        %1373 = vmatprep.subr.bf16.mxu0 0
        %1374 = vmatpush1.bf16.xpose.msra.mxu0 0
        %1375 = vmatprep.mubr.bf16.mxu0 0
        %1376 = vmatmul.mubr.bf16.gmra.mrb[0].mxu0 %v1338
        %v1377 = vpop.f32.mrb[0].mxu0
        %v1378 = vadd.f32 0.0, %v1377
        %v1379 = vpop.f32.mrb[0].mxu0
        %v1380 = vpop.f32.mrb[0].mxu0
        %v1381 = vadd.f32 0.0, %v1380
        %v1382 = vpop.f32.mrb[0].mxu0
        %1383 = vdwg.mxu0
        %v1384 = vsel %vm835, %v1378, -inf
        %1385 = vmax.xlane.f32.xlu0 %v1384
        %v1386 = vpop.xlane.xlu0 %1385
        %v1387 = vsel %vm835, %v1381, -inf
        %1388 = vmax.xlane.f32.xlu0 %v1387
        %v1389 = vpop.xlane.xlu0 %1388
        %v1390 = vsub.f32 %v1378, %v1386
        %v1391 = vsub.f32 %v1381, %v1389
        %v1392 = vmul.f32 %v1390, 1.442695
        %v1393 = vpow.pop %v1392
        %v1394 = vmul.f32 %v1391, 1.442695
        %v1395 = vpow.pop %v1394
        %v1396 = vsel %vm835, %v1393, 0.0
        %1397 = vadd.xlane.f32.xlu0 %v1396
        %v1398 = vpop.xlane.xlu0 %1397
        %v1399 = vsel %vm835, %v1395, 0.0
        %1400 = vadd.xlane.f32.xlu0 %v1399
        %v1401 = vpop.xlane.xlu0 %1400
        %v1402 = vrcp.pop %v1398
        %v1403 = vrcp.pop %v1401
        %v1404 = vmul.f32 %v1393, %v1402
        %v1405 = vmul.f32 %v1395, %v1403
        %v1406 = vpack.c.bf16 %v1405, %v1404
        %1407 = vrot.lane.b32.xlu0 %v786, 32
        %v1408 = vpop.permute.xlu0 %1407
        %v1411 = vsel %vm835, %v1406, 0
        %1413 = vmatprep.subr.bf16.mxu0 0
        %1414 = vmatpush1.bf16.msra.mxu0 %v1408
        %1415 = vmatprep.subr.bf16.mxu0 0
        %1416 = vmatpush1.bf16.msra.mxu0 0
        %1417 = vmatprep.subr.bf16.mxu0 0
        %1418 = vmatpush1.bf16.msra.mxu0 0
        %1419 = vmatprep.subr.bf16.mxu0 0
        %1420 = vmatpush1.bf16.msra.mxu0 0
        %1421 = vmatprep.subr.bf16.mxu0 0
        %1422 = vmatpush1.bf16.msra.mxu0 0
        %1423 = vmatprep.subr.bf16.mxu0 0
        %1424 = vmatpush1.bf16.msra.mxu0 0
        %1425 = vmatprep.subr.bf16.mxu0 0
        %1426 = vmatpush1.bf16.msra.mxu0 0
        %1427 = vmatprep.subr.bf16.mxu0 0
        %1428 = vmatpush1.bf16.msra.mxu0 0
        %1429 = vmatprep.subr.bf16.mxu0 0
        %1430 = vmatpush1.bf16.msra.mxu0 0
        %1431 = vmatprep.subr.bf16.mxu0 0
        %1432 = vmatpush1.bf16.msra.mxu0 0
        %1433 = vmatprep.subr.bf16.mxu0 0
        %1434 = vmatpush1.bf16.msra.mxu0 0
        %1435 = vmatprep.subr.bf16.mxu0 0
        %1436 = vmatpush1.bf16.msra.mxu0 0
        %1437 = vmatprep.subr.bf16.mxu0 0
        %1438 = vmatpush1.bf16.msra.mxu0 0
        %1439 = vmatprep.subr.bf16.mxu0 0
        %1440 = vmatpush1.bf16.msra.mxu0 0
        %1441 = vmatprep.subr.bf16.mxu0 0
        %1442 = vmatpush1.bf16.msra.mxu0 0
        %1443 = vmatprep.subr.bf16.mxu0 0
        %1444 = vmatpush1.bf16.msra.mxu0 0
        %1445 = vmatprep.mubr.bf16.mxu0 0
        %1446 = vmatmul.mubr.bf16.gmra.mrb[0].mxu0 %v1411
        %v1447 = vpop.f32.mrb[0].mxu0
        %v1448 = vadd.f32 0.0, %v1447
        %v1449 = vpop.f32.mrb[0].mxu0
        %v1450 = vpop.f32.mrb[0].mxu0
        %v1451 = vadd.f32 0.0, %v1450
        %v1452 = vpop.f32.mrb[0].mxu0
        %1453 = vdwg.mxu0
        %v1454 = vpack.c.bf16 %v1451, %v1448
        %v1455 = vld [vmem:[#allocation7 + $0x30] sm:$0xf]
        %v1456 = vld [vmem:[#allocation7 + $0x34] sm:$0xf]
        %v1457 = vld [vmem:[#allocation7 + $0x38] sm:$0xf]
        %v1458 = vld [vmem:[#allocation7 + $0x3c] sm:$0xf]
        %v1463 = vunpack.c.l.b16 %v1455
        %v1464 = vunpack.c.l.b16 %v1456
        %v1465 = vunpack.c.l.b16 %v1457
        %v1466 = vunpack.c.l.b16 %v1458
        %v1467 = vpack.c.b16 %v1464, %v1463
        %v1468 = vpack.c.b16 %v1466, %v1465
        %v1472 = vsel %vm787, %v1454, 0
        %1474 = vmatprep.subr.bf16.mxu0 0
        %1475 = vmatpush1.bf16.msra.mxu0 %v1467
        %1476 = vmatprep.subr.bf16.mxu0 0
        %1477 = vmatpush1.bf16.msra.mxu0 %v1468
        %1478 = vmatprep.subr.bf16.mxu0 0
        %1479 = vmatpush1.bf16.msra.mxu0 0
        %1480 = vmatprep.subr.bf16.mxu0 0
        %1481 = vmatpush1.bf16.msra.mxu0 0
        %1482 = vmatprep.subr.bf16.mxu0 0
        %1483 = vmatpush1.bf16.msra.mxu0 0
        %1484 = vmatprep.subr.bf16.mxu0 0
        %1485 = vmatpush1.bf16.msra.mxu0 0
        %1486 = vmatprep.subr.bf16.mxu0 0
        %1487 = vmatpush1.bf16.msra.mxu0 0
        %1488 = vmatprep.subr.bf16.mxu0 0
        %1489 = vmatpush1.bf16.msra.mxu0 0
        %1490 = vmatprep.subr.bf16.mxu0 0
        %1491 = vmatpush1.bf16.msra.mxu0 0
        %1492 = vmatprep.subr.bf16.mxu0 0
        %1493 = vmatpush1.bf16.msra.mxu0 0
        %1494 = vmatprep.subr.bf16.mxu0 0
        %1495 = vmatpush1.bf16.msra.mxu0 0
        %1496 = vmatprep.subr.bf16.mxu0 0
        %1497 = vmatpush1.bf16.msra.mxu0 0
        %1498 = vmatprep.subr.bf16.mxu0 0
        %1499 = vmatpush1.bf16.msra.mxu0 0
        %1500 = vmatprep.subr.bf16.mxu0 0
        %1501 = vmatpush1.bf16.msra.mxu0 0
        %1502 = vmatprep.subr.bf16.mxu0 0
        %1503 = vmatpush1.bf16.msra.mxu0 0
        %1504 = vmatprep.subr.bf16.mxu0 0
        %1505 = vmatpush1.bf16.msra.mxu0 0
        %1506 = vmatprep.mubr.bf16.mxu0 0
        %1507 = vmatmul.mubr.bf16.gmra.mrb[0].mxu0 %v1472
        %v1508 = vpop.f32.mrb[0].mxu0
        %v1509 = vadd.f32 0.0, %v1508
        %v1510 = vpop.f32.mrb[0].mxu0
        %v1511 = vpop.f32.mrb[0].mxu0
        %v1512 = vadd.f32 0.0, %v1511
        %v1513 = vpop.f32.mrb[0].mxu0
        %1514 = vdwg.mxu0
        %v1515 = vadd.f32 %v1331, %v1509
        %v1516 = vadd.f32 %v1332, %v1512
        %v1517 = vld [vmem:[%s4] sm:$0x1]
        %v1519 = vlaneseq
        %v1520 = vshrl.u32 %v1519, 7
        %v1521 = vsub.s32 0, %v1520
        %v1522 = vrot.slane %v1517, %v1521
        %v1524 = vadd.f32 %v1515, %v1522
        %v1525 = vadd.f32 %v1516, %v1522
        %v1526 = vadd.f32 %v518, %v1524
        %v1527 = vadd.f32 %v519, %v1525
        %v1528 = vld [vmem:[%s9] sm:$0x1]
        %v1529 = vld [vmem:[%s10] sm:$0x1]
        %1530 = vadd.xlane.f32.xlu0 %v1526
        %v1531 = vpop.xlane.xlu0 %1530
        %1532 = vadd.xlane.f32.xlu0 %v1527
        %v1533 = vpop.xlane.xlu0 %1532
        %v1534 = vrcp.pop 128.0
        %v1535 = vmul.f32 %v1531, %v1534
        %v1536 = vmul.f32 %v1533, %v1534
        %v1537 = vsub.f32 %v1526, %v1535
        %v1538 = vsub.f32 %v1527, %v1536
        %v1539 = vmul.f32 %v1537, %v1537
        %v1540 = vmul.f32 %v1538, %v1538
        %1541 = vadd.xlane.f32.xlu0 %v1539
        %v1542 = vpop.xlane.xlu0 %1541
        %1543 = vadd.xlane.f32.xlu0 %v1540
        %v1544 = vpop.xlane.xlu0 %1543
        %v1545 = vmul.f32 %v1542, %v1534
        %v1546 = vmul.f32 %v1544, %v1534
        %v1547 = vadd.f32 %v1545, 1e-05
        %v1548 = vadd.f32 %v1546, 1e-05
        %v1549 = vrsqrt.pop %v1547
        %v1550 = vrsqrt.pop %v1548
        %v1551 = vmul.f32 %v1537, %v1549
        %v1552 = vmul.f32 %v1538, %v1550
        %v1554 = vlaneseq
        %v1555 = vshrl.u32 %v1554, 7
        %v1556 = vsub.s32 0, %v1555
        %v1557 = vrot.slane %v1528, %v1556
        %v1559 = vmul.f32 %v1551, %v1557
        %v1560 = vmul.f32 %v1552, %v1557
        %v1562 = vlaneseq
        %v1563 = vshrl.u32 %v1562, 7
        %v1564 = vsub.s32 0, %v1563
        %v1565 = vrot.slane %v1529, %v1564
        %v1567 = vadd.f32 %v1559, %v1565
        %v1568 = vadd.f32 %v1560, %v1565
        %v1569 = vpack.c.bf16 %v1568, %v1567
        %v1570 = vld [vmem:[#allocation8] sm:$0xff]
        %v1571 = vld [vmem:[#allocation8 + $0x8] sm:$0xff]
        %v1572 = vld [vmem:[#allocation8 + $0x10] sm:$0xff]
        %v1573 = vld [vmem:[#allocation8 + $0x18] sm:$0xff]
        %v1574 = vld [vmem:[#allocation8 + $0x20] sm:$0xff]
        %v1575 = vld [vmem:[#allocation8 + $0x28] sm:$0xff]
        %v1576 = vld [vmem:[#allocation8 + $0x30] sm:$0xff]
        %v1577 = vld [vmem:[#allocation8 + $0x38] sm:$0xff]
        %v1578 = vld [vmem:[#allocation8 + $0x40] sm:$0xff]
        %v1579 = vld [vmem:[#allocation8 + $0x48] sm:$0xff]
        %v1580 = vld [vmem:[#allocation8 + $0x50] sm:$0xff]
        %v1581 = vld [vmem:[#allocation8 + $0x58] sm:$0xff]
        %v1582 = vld [vmem:[#allocation8 + $0x60] sm:$0xff]
        %v1583 = vld [vmem:[#allocation8 + $0x68] sm:$0xff]
        %v1584 = vld [vmem:[#allocation8 + $0x70] sm:$0xff]
        %v1585 = vld [vmem:[#allocation8 + $0x78] sm:$0xff]
        %v1586 = vld [vmem:[%s6] sm:$0x3]
        %v1588 = vlaneseq
        %v1589 = vshrl.u32 %v1588, 7
        %v1590 = vsub.s32 0, %v1589
        %v1591 = vrot.slane %v1586, %v1590
        %v1592 = vlaneseq
        %v1593 = vshrl.u32 %v1592, 7
        %v1594 = vsub.s32 1, %v1593
        %v1595 = vrot.slane %v1586, %v1594
        %v1614 = vunpack.c.l.b16 %v1570
        %v1615 = vunpack.c.h.b16 %v1570
        %v1616 = vunpack.c.l.b16 %v1571
        %v1617 = vunpack.c.h.b16 %v1571
        %v1618 = vunpack.c.l.b16 %v1572
        %v1619 = vunpack.c.h.b16 %v1572
        %v1620 = vunpack.c.l.b16 %v1573
        %v1621 = vunpack.c.h.b16 %v1573
        %v1622 = vunpack.c.l.b16 %v1574
        %v1623 = vunpack.c.h.b16 %v1574
        %v1624 = vunpack.c.l.b16 %v1575
        %v1625 = vunpack.c.h.b16 %v1575
        %v1626 = vunpack.c.l.b16 %v1576
        %v1627 = vunpack.c.h.b16 %v1576
        %v1628 = vunpack.c.l.b16 %v1577
        %v1629 = vunpack.c.h.b16 %v1577
        %v1630 = vunpack.c.l.b16 %v1578
        %v1631 = vunpack.c.h.b16 %v1578
        %v1632 = vunpack.c.l.b16 %v1579
        %v1633 = vunpack.c.h.b16 %v1579
        %v1634 = vunpack.c.l.b16 %v1580
        %v1635 = vunpack.c.h.b16 %v1580
        %v1636 = vunpack.c.l.b16 %v1581
        %v1637 = vunpack.c.h.b16 %v1581
        %v1638 = vunpack.c.l.b16 %v1582
        %v1639 = vunpack.c.h.b16 %v1582
        %v1640 = vunpack.c.l.b16 %v1583
        %v1641 = vunpack.c.h.b16 %v1583
        %v1642 = vunpack.c.l.b16 %v1584
        %v1643 = vunpack.c.h.b16 %v1584
        %v1644 = vunpack.c.l.b16 %v1585
        %v1645 = vunpack.c.h.b16 %v1585
        %v1646 = vpack.c.b16 %v1616, %v1614
        %v1647 = vpack.c.b16 %v1617, %v1615
        %v1648 = vpack.c.b16 %v1620, %v1618
        %v1649 = vpack.c.b16 %v1621, %v1619
        %v1650 = vpack.c.b16 %v1624, %v1622
        %v1651 = vpack.c.b16 %v1625, %v1623
        %v1652 = vpack.c.b16 %v1628, %v1626
        %v1653 = vpack.c.b16 %v1629, %v1627
        %v1654 = vpack.c.b16 %v1632, %v1630
        %v1655 = vpack.c.b16 %v1633, %v1631
        %v1656 = vpack.c.b16 %v1636, %v1634
        %v1657 = vpack.c.b16 %v1637, %v1635
        %v1658 = vpack.c.b16 %v1640, %v1638
        %v1659 = vpack.c.b16 %v1641, %v1639
        %v1660 = vpack.c.b16 %v1644, %v1642
        %v1661 = vpack.c.b16 %v1645, %v1643
        %1678 = vmatprep.subr.bf16.mxu0 %v1647
        %1679 = vmatpush1.bf16.msra.mxu0 %v1646
        %1680 = vmatprep.subr.bf16.mxu0 %v1649
        %1681 = vmatpush1.bf16.msra.mxu0 %v1648
        %1682 = vmatprep.subr.bf16.mxu0 %v1651
        %1683 = vmatpush1.bf16.msra.mxu0 %v1650
        %1684 = vmatprep.subr.bf16.mxu0 %v1653
        %1685 = vmatpush1.bf16.msra.mxu0 %v1652
        %1686 = vmatprep.subr.bf16.mxu0 %v1655
        %1687 = vmatpush1.bf16.msra.mxu0 %v1654
        %1688 = vmatprep.subr.bf16.mxu0 %v1657
        %1689 = vmatpush1.bf16.msra.mxu0 %v1656
        %1690 = vmatprep.subr.bf16.mxu0 %v1659
        %1691 = vmatpush1.bf16.msra.mxu0 %v1658
        %1692 = vmatprep.subr.bf16.mxu0 %v1661
        %1693 = vmatpush1.bf16.msra.mxu0 %v1660
        %1694 = vmatprep.subr.bf16.mxu0 0
        %1695 = vmatpush1.bf16.msra.mxu0 0
        %1696 = vmatprep.subr.bf16.mxu0 0
        %1697 = vmatpush1.bf16.msra.mxu0 0
        %1698 = vmatprep.subr.bf16.mxu0 0
        %1699 = vmatpush1.bf16.msra.mxu0 0
        %1700 = vmatprep.subr.bf16.mxu0 0
        %1701 = vmatpush1.bf16.msra.mxu0 0
        %1702 = vmatprep.subr.bf16.mxu0 0
        %1703 = vmatpush1.bf16.msra.mxu0 0
        %1704 = vmatprep.subr.bf16.mxu0 0
        %1705 = vmatpush1.bf16.msra.mxu0 0
        %1706 = vmatprep.subr.bf16.mxu0 0
        %1707 = vmatpush1.bf16.msra.mxu0 0
        %1708 = vmatprep.subr.bf16.mxu0 0
        %1709 = vmatpush1.bf16.msra.mxu0 0
        %1710 = vmatprep.mubr.bf16.mxu0 0
        %1711 = vmatmul.mubr.bf16.gmra.mrb[0].mxu0 %v1569
        %v1712 = vpop.f32.mrb[0].mxu0
        %v1713 = vadd.f32 %v1591, %v1712
        %v1714 = vpop.f32.mrb[0].mxu0
        %v1715 = vadd.f32 %v1595, %v1714
        %v1716 = vpop.f32.mrb[0].mxu0
        %v1717 = vadd.f32 %v1591, %v1716
        %v1718 = vpop.f32.mrb[0].mxu0
        %v1719 = vadd.f32 %v1595, %v1718
        %1720 = vdwg.mxu0
        %v1721 = vmax.f32 %v1713, 0.0
        %v1722 = vmax.f32 %v1715, 0.0
        %v1723 = vmax.f32 %v1717, 0.0
        %v1724 = vmax.f32 %v1719, 0.0
        %v1725 = vpack.c.bf16 %v1723, %v1721
        %v1726 = vpack.c.bf16 %v1724, %v1722
        %v1727 = vld [vmem:[#allocation10] sm:$0xf]
        %v1728 = vld [vmem:[#allocation10 + $0x4] sm:$0xf]
        %v1729 = vld [vmem:[#allocation10 + $0x8] sm:$0xf]
        %v1730 = vld [vmem:[#allocation10 + $0xc] sm:$0xf]
        %v1731 = vld [vmem:[#allocation10 + $0x10] sm:$0xf]
        %v1732 = vld [vmem:[#allocation10 + $0x14] sm:$0xf]
        %v1733 = vld [vmem:[#allocation10 + $0x18] sm:$0xf]
        %v1734 = vld [vmem:[#allocation10 + $0x1c] sm:$0xf]
        %v1735 = vld [vmem:[#allocation10 + $0x20] sm:$0xf]
        %v1736 = vld [vmem:[#allocation10 + $0x24] sm:$0xf]
        %v1737 = vld [vmem:[#allocation10 + $0x28] sm:$0xf]
        %v1738 = vld [vmem:[#allocation10 + $0x2c] sm:$0xf]
        %v1739 = vld [vmem:[#allocation10 + $0x30] sm:$0xf]
        %v1740 = vld [vmem:[#allocation10 + $0x34] sm:$0xf]
        %v1741 = vld [vmem:[#allocation10 + $0x38] sm:$0xf]
        %v1742 = vld [vmem:[#allocation10 + $0x3c] sm:$0xf]
        %v1743 = vld [vmem:[#allocation10 + $0x40] sm:$0xf]
        %v1744 = vld [vmem:[#allocation10 + $0x44] sm:$0xf]
        %v1745 = vld [vmem:[#allocation10 + $0x48] sm:$0xf]
        %v1746 = vld [vmem:[#allocation10 + $0x4c] sm:$0xf]
        %v1747 = vld [vmem:[#allocation10 + $0x50] sm:$0xf]
        %v1748 = vld [vmem:[#allocation10 + $0x54] sm:$0xf]
        %v1749 = vld [vmem:[#allocation10 + $0x58] sm:$0xf]
        %v1750 = vld [vmem:[#allocation10 + $0x5c] sm:$0xf]
        %v1751 = vld [vmem:[#allocation10 + $0x60] sm:$0xf]
        %v1752 = vld [vmem:[#allocation10 + $0x64] sm:$0xf]
        %v1753 = vld [vmem:[#allocation10 + $0x68] sm:$0xf]
        %v1754 = vld [vmem:[#allocation10 + $0x6c] sm:$0xf]
        %v1755 = vld [vmem:[#allocation10 + $0x70] sm:$0xf]
        %v1756 = vld [vmem:[#allocation10 + $0x74] sm:$0xf]
        %v1757 = vld [vmem:[#allocation10 + $0x78] sm:$0xf]
        %v1758 = vld [vmem:[#allocation10 + $0x7c] sm:$0xf]
        %v1759 = vld [vmem:[%s8] sm:$0x1]
        %v1761 = vlaneseq
        %v1762 = vshrl.u32 %v1761, 7
        %v1763 = vsub.s32 0, %v1762
        %v1764 = vrot.slane %v1759, %v1763
        %v1798 = vunpack.c.l.b16 %v1727
        %v1799 = vunpack.c.l.b16 %v1728
        %v1800 = vunpack.c.l.b16 %v1729
        %v1801 = vunpack.c.l.b16 %v1730
        %v1802 = vunpack.c.l.b16 %v1731
        %v1803 = vunpack.c.l.b16 %v1732
        %v1804 = vunpack.c.l.b16 %v1733
        %v1805 = vunpack.c.l.b16 %v1734
        %v1806 = vunpack.c.l.b16 %v1735
        %v1807 = vunpack.c.l.b16 %v1736
        %v1808 = vunpack.c.l.b16 %v1737
        %v1809 = vunpack.c.l.b16 %v1738
        %v1810 = vunpack.c.l.b16 %v1739
        %v1811 = vunpack.c.l.b16 %v1740
        %v1812 = vunpack.c.l.b16 %v1741
        %v1813 = vunpack.c.l.b16 %v1742
        %v1814 = vunpack.c.l.b16 %v1743
        %v1815 = vunpack.c.l.b16 %v1744
        %v1816 = vunpack.c.l.b16 %v1745
        %v1817 = vunpack.c.l.b16 %v1746
        %v1818 = vunpack.c.l.b16 %v1747
        %v1819 = vunpack.c.l.b16 %v1748
        %v1820 = vunpack.c.l.b16 %v1749
        %v1821 = vunpack.c.l.b16 %v1750
        %v1822 = vunpack.c.l.b16 %v1751
        %v1823 = vunpack.c.l.b16 %v1752
        %v1824 = vunpack.c.l.b16 %v1753
        %v1825 = vunpack.c.l.b16 %v1754
        %v1826 = vunpack.c.l.b16 %v1755
        %v1827 = vunpack.c.l.b16 %v1756
        %v1828 = vunpack.c.l.b16 %v1757
        %v1829 = vunpack.c.l.b16 %v1758
        %v1830 = vpack.c.b16 %v1799, %v1798
        %v1831 = vpack.c.b16 %v1801, %v1800
        %v1832 = vpack.c.b16 %v1803, %v1802
        %v1833 = vpack.c.b16 %v1805, %v1804
        %v1834 = vpack.c.b16 %v1807, %v1806
        %v1835 = vpack.c.b16 %v1809, %v1808
        %v1836 = vpack.c.b16 %v1811, %v1810
        %v1837 = vpack.c.b16 %v1813, %v1812
        %v1838 = vpack.c.b16 %v1815, %v1814
        %v1839 = vpack.c.b16 %v1817, %v1816
        %v1840 = vpack.c.b16 %v1819, %v1818
        %v1841 = vpack.c.b16 %v1821, %v1820
        %v1842 = vpack.c.b16 %v1823, %v1822
        %v1843 = vpack.c.b16 %v1825, %v1824
        %v1844 = vpack.c.b16 %v1827, %v1826
        %v1845 = vpack.c.b16 %v1829, %v1828
        %1862 = vmatprep.subr.bf16.mxu0 0
        %1863 = vmatpush1.bf16.msra.mxu0 %v1830
        %1864 = vmatprep.subr.bf16.mxu0 0
        %1865 = vmatpush1.bf16.msra.mxu0 %v1831
        %1866 = vmatprep.subr.bf16.mxu0 0
        %1867 = vmatpush1.bf16.msra.mxu0 %v1832
        %1868 = vmatprep.subr.bf16.mxu0 0
        %1869 = vmatpush1.bf16.msra.mxu0 %v1833
        %1870 = vmatprep.subr.bf16.mxu0 0
        %1871 = vmatpush1.bf16.msra.mxu0 %v1834
        %1872 = vmatprep.subr.bf16.mxu0 0
        %1873 = vmatpush1.bf16.msra.mxu0 %v1835
        %1874 = vmatprep.subr.bf16.mxu0 0
        %1875 = vmatpush1.bf16.msra.mxu0 %v1836
        %1876 = vmatprep.subr.bf16.mxu0 0
        %1877 = vmatpush1.bf16.msra.mxu0 %v1837
        %1878 = vmatprep.subr.bf16.mxu0 0
        %1879 = vmatpush1.bf16.msra.mxu0 %v1838
        %1880 = vmatprep.subr.bf16.mxu0 0
        %1881 = vmatpush1.bf16.msra.mxu0 %v1839
        %1882 = vmatprep.subr.bf16.mxu0 0
        %1883 = vmatpush1.bf16.msra.mxu0 %v1840
        %1884 = vmatprep.subr.bf16.mxu0 0
        %1885 = vmatpush1.bf16.msra.mxu0 %v1841
        %1886 = vmatprep.subr.bf16.mxu0 0
        %1887 = vmatpush1.bf16.msra.mxu0 %v1842
        %1888 = vmatprep.subr.bf16.mxu0 0
        %1889 = vmatpush1.bf16.msra.mxu0 %v1843
        %1890 = vmatprep.subr.bf16.mxu0 0
        %1891 = vmatpush1.bf16.msra.mxu0 %v1844
        %1892 = vmatprep.subr.bf16.mxu0 0
        %1893 = vmatpush1.bf16.msra.mxu0 %v1845
        %1894 = vmatprep.mubr.bf16.mxu0 %v1726
        %1895 = vmatmul.mubr.bf16.gmra.mrb[0].mxu0 %v1725
        %v1896 = vpop.f32.mrb[0].mxu0
        %v1897 = vadd.f32 %v1764, %v1896
        %v1898 = vpop.f32.mrb[0].mxu0
        %v1899 = vpop.f32.mrb[0].mxu0
        %v1900 = vadd.f32 %v1764, %v1899
        %v1901 = vpop.f32.mrb[0].mxu0
        %1902 = vdwg.mxu0
        %v1903 = vadd.f32 %v1567, %v1897
        %v1904 = vadd.f32 %v1568, %v1900
        %v1905 = vld [vmem:[%s11] sm:$0x1]
        %v1906 = vld [vmem:[%s12] sm:$0x1]
        %1907 = vadd.xlane.f32.xlu0 %v1903
        %v1908 = vpop.xlane.xlu0 %1907
        %1909 = vadd.xlane.f32.xlu0 %v1904
        %v1910 = vpop.xlane.xlu0 %1909
        %v1911 = vmul.f32 %v1908, %v1534
        %v1912 = vmul.f32 %v1910, %v1534
        %v1913 = vsub.f32 %v1903, %v1911
        %v1914 = vsub.f32 %v1904, %v1912
        %v1915 = vmul.f32 %v1913, %v1913
        %v1916 = vmul.f32 %v1914, %v1914
        %1917 = vadd.xlane.f32.xlu0 %v1915
        %v1918 = vpop.xlane.xlu0 %1917
        %1919 = vadd.xlane.f32.xlu0 %v1916
        %v1920 = vpop.xlane.xlu0 %1919
        %v1921 = vmul.f32 %v1918, %v1534
        %v1922 = vmul.f32 %v1920, %v1534
        %v1923 = vadd.f32 %v1921, 1e-05
        %v1924 = vadd.f32 %v1922, 1e-05
        %v1925 = vrsqrt.pop %v1923
        %v1926 = vrsqrt.pop %v1924
        %v1927 = vmul.f32 %v1913, %v1925
        %v1928 = vmul.f32 %v1914, %v1926
        %v1930 = vlaneseq
        %v1931 = vshrl.u32 %v1930, 7
        %v1932 = vsub.s32 0, %v1931
        %v1933 = vrot.slane %v1905, %v1932
        %v1935 = vmul.f32 %v1927, %v1933
        %v1936 = vmul.f32 %v1928, %v1933
        %v1938 = vlaneseq
        %v1939 = vshrl.u32 %v1938, 7
        %v1940 = vsub.s32 0, %v1939
        %v1941 = vrot.slane %v1906, %v1940
        %v1943 = vadd.f32 %v1935, %v1941
        %v1944 = vadd.f32 %v1936, %v1941
        %1945 = vst [vmem:[%s516] sm:$0xff] %v1943
        %1946 = vst [vmem:[%s516 + $0x8] sm:$0xff] %v1944
        %s1947 = sand.u32 %s318, 1
        %s1948 = scalar_lea.sflag [#allocation4], %s1947
        %s1949 = sand.u32 %s318, 1
        %s1950 = smul.addr %s1949, 16
        %s1951 = scalar_lea.vmem [#allocation11], %s1950
        // Predicated region
        $region93: #{tpu_custom_call.1} parent=71 // pred_check
          %p1952 = pneg %p328
        $region94: #{tpu_custom_call.1} parent=71 // pred_check_branch
          %1954 = sbr.rel (%p1952) target = $region96
        $region95: #{tpu_custom_call.1} parent=71 // pred_region
          %s1956 = ssub.s32 256, 256
          %1957 = vsyncadd %s1948, %s1956
          %s1958 = smul.addr %s32, 2
          %s1959 = smul.addr %s1958, 128
          %s1960 = scalar_lea.hbm %s13, %s1959
          %s1961 = sshll.u32 %s1951, 4
          %s1962 = int_to_ptr.vmem [resolvable:$true] %s1961
          %1967 = dma.vmem_to_hbm [thread:$0]  %s1962, 256, %s1960, %s1948, 128, 128, 8
        $region96: #{tpu_custom_call.1} parent=71 // pred_fallthru
          _
      $region72: #{tpu_custom_call.1} parent=5 // pred_fallthru
        _
      %p1968 = scmp.le.s32.totalorder 2, %s27
      // Predicated region
      $region97: #{tpu_custom_call.1} parent=5 // pred_check
        %p1969 = pneg %p1968
      $region98: #{tpu_custom_call.1} parent=5 // pred_check_branch
        %1971 = sbr.rel (%p1969) target = $region100
      $region99: #{tpu_custom_call.1} parent=5 // pred_region
        %s1972 = ssub.s32 %s27, 2
        // Predicated region
        $region101: #{tpu_custom_call.1} parent=99 // pred_check
          %p1973 = pneg %p334
        $region102: #{tpu_custom_call.1} parent=99 // pred_check_branch
          %1975 = sbr.rel (%p1973) target = $region104
        $region103: #{tpu_custom_call.1} parent=99 // pred_region
          %s1976 = sand.u32 %s319, 1
          %s1977 = scalar_lea.sflag [#allocation4], %s1976
          %s1978 = sand.u32 %s319, 1
          %s1979 = smul.addr %s1978, 16
          %s1980 = scalar_lea.vmem [#allocation11], %s1979
          %1981 = dma.done %s1977, 256
        $region104: #{tpu_custom_call.1} parent=99 // pred_fallthru
          _
      $region100: #{tpu_custom_call.1} parent=5 // pred_fallthru
        _
    $region6: #{tpu_custom_call.1} parent=1 // loop_footer
      %s31 = sadd.s32 1, %s27
    $region7: #{tpu_custom_call.1} parent=1 // loop_footer_branch
      %26 = sbr.rel target = $region3
    $region8: #{tpu_custom_call.1} parent=1 // loop_exit
      _
    %1982 = vsyncpa [#allocation3], 1
    %s1983 = scalar_lea.sflag [#allocation3], 1
    %1984 = vsyncpa %s1983, 1
    %1985 = vsyncpa [#allocation6], 1
    %1986 = vsyncpa [#allocation9], 1
    %1987 = vsyncpa [#allocation4], 1
    %s1988 = scalar_lea.sflag [#allocation4], 1
    %1989 = vsyncpa %s1988, 1

</llo_original>
